<compile_context>
chip_gen: v7x
topology: tpu7x:2x2x1
jax: 0.10.0
libtpu: 0.0.40
codegen_flags: <defaults>
</compile_context>

<pallas_src>
import functools

import jax
import jax.numpy as jnp
from jax import lax
from jax.experimental import pallas as pl
from jax.experimental.pallas import tpu as pltpu


def _resblock_kernel(x_ref, w1_ref, s1_ref, b1_ref,
                     w2_ref, s2_ref, b2_ref,
                     w3_ref, s3_ref, b3_ref,
                     o_ref, pad_ref, im_ref, *, W):
    # Block shapes:
    #   x_ref : (H*W, Cin) f32       w1_ref: (Cin, Cmid) bf16      s*/b*: (1, C) f32
    #   w2_ref: (9*Cmid, Cmid) bf16 (HWIO flattened)  w3_ref: (Cmid, Cout) bf16
    #   o_ref : (H*W, Cout) f32
    #   pad_ref (scratch): (H*W + 2*(W+1), Cmid) f32   zero-bordered row buffer
    #   im_ref  (scratch): (H*W, 9*Cmid) bf16          im2col slab (MXU-ready)
    HW, _ = x_ref.shape
    Cmid = w1_ref.shape[1]
    base = W + 1                      # row offset of the image inside pad_ref

    xv = x_ref[...]                   # (HW, Cin) f32 -- kept for the residual add
    x_bf = xv.astype(jnp.bfloat16)    # MXU operand

    # ---- conv1 (1x1, bf16 MXU) + bn1 + relu (f32 epilogue) -------------------
    h = jnp.dot(x_bf, w1_ref[...], preferred_element_type=jnp.float32)
    h = jnp.maximum(h * s1_ref[...] + b1_ref[...], 0.0)          # (HW, Cmid) f32

    # ---- conv2 (3x3, stride=1, pad=1) as a single K=9*Cmid matmul ------------
    # Zero only the borders of the row buffer; interior rows hold h.
    pad_ref[0:base, :] = jnp.zeros((base, Cmid), jnp.float32)
    pad_ref[base + HW:base + HW + base, :] = jnp.zeros((base, Cmid), jnp.float32)
    pad_ref[base:base + HW, :] = h

    # x-coordinate of every flat row (W is a power of two -> bitwise and).
    col = lax.broadcasted_iota(jnp.int32, (HW, Cmid), 0) & (W - 1)
    left_ok = col != 0                # left tap invalid where x == 0
    right_ok = col != (W - 1)         # right tap invalid where x == W-1

    for dy in range(3):
        for dx in range(3):
            k = dy * 3 + dx
            s = (dy - 1) * W + (dx - 1)
            t = pad_ref[base + s:base + s + HW, :]                # rows shifted by s (f32)
            if dx == 0:
                t = jnp.where(left_ok, t, 0.0)
            elif dx == 2:
                t = jnp.where(right_ok, t, 0.0)
            im_ref[:, k * Cmid:(k + 1) * Cmid] = t.astype(jnp.bfloat16)

    h2 = jnp.dot(im_ref[...], w2_ref[...], preferred_element_type=jnp.float32)
    h2 = jnp.maximum(h2 * s2_ref[...] + b2_ref[...], 0.0)         # (HW, Cmid) f32

    # ---- conv3 (1x1) + bn3 + residual add + relu -----------------------------
    h3 = jnp.dot(h2.astype(jnp.bfloat16), w3_ref[...],
                 preferred_element_type=jnp.float32)
    h3 = h3 * s3_ref[...] + b3_ref[...]
    o_ref[...] = jnp.maximum(h3 + xv, 0.0).astype(o_ref.dtype)


def resblock_pallas(x_nhwc, params):
    """x_nhwc: (B, H, W, Cin) float32. params: folded weights/BN terms (weights in bf16)."""
    B, H, W, Cin = x_nhwc.shape
    w1, s1, b1 = params["w1"], params["s1"], params["b1"]
    w2, s2, b2 = params["w2"], params["s2"], params["b2"]
    w3, s3, b3 = params["w3"], params["s3"], params["b3"]
    Cmid = w1.shape[1]
    Cout = w3.shape[1]
    HW = H * W

    assert Cin == Cout, "identity shortcut requires in_channels == out_channels"
    assert W & (W - 1) == 0, "edge masks use a bitwise trick; W must be a power of two"

    x2d = x_nhwc.reshape(B, HW, Cin)              # channels stay on the lane axis
    w2_flat = w2.reshape(9 * Cmid, Cmid)          # (dy, dx, cin) flattened == im2col order

    kernel = functools.partial(_resblock_kernel, W=W)

    grid_spec = pltpu.PrefetchScalarGridSpec(
        num_scalar_prefetch=0,
        grid=(B,),
        in_specs=[
            pl.BlockSpec((None, HW, Cin), lambda b: (b, 0, 0)),
            pl.BlockSpec((Cin, Cmid), lambda b: (0, 0)),
            pl.BlockSpec((1, Cmid), lambda b: (0, 0)),
            pl.BlockSpec((1, Cmid), lambda b: (0, 0)),
            pl.BlockSpec((9 * Cmid, Cmid), lambda b: (0, 0)),
            pl.BlockSpec((1, Cmid), lambda b: (0, 0)),
            pl.BlockSpec((1, Cmid), lambda b: (0, 0)),
            pl.BlockSpec((Cmid, Cout), lambda b: (0, 0)),
            pl.BlockSpec((1, Cout), lambda b: (0, 0)),
            pl.BlockSpec((1, Cout), lambda b: (0, 0)),
        ],
        out_specs=pl.BlockSpec((None, HW, Cout), lambda b: (b, 0, 0)),
        scratch_shapes=[
            pltpu.VMEM((HW + 2 * (W + 1), Cmid), jnp.float32),   # zero-bordered row buffer
            pltpu.VMEM((HW, 9 * Cmid), jnp.bfloat16),            # im2col slab (MXU-ready)
        ],
    )

    out2d = pl.pallas_call(
        kernel,
        out_shape=jax.ShapeDtypeStruct((B, HW, Cout), x_nhwc.dtype),
        grid_spec=grid_spec,
        compiler_params=pltpu.CompilerParams(
            dimension_semantics=("parallel",)),
    )(x2d, w1, s1, b1, w2_flat, s2, b2, w3, s3, b3)

    return out2d.reshape(B, H, W, Cout)


def _fold_bn(gamma, beta, mean, var, eps=1e-5):
    scale = gamma / jnp.sqrt(var + eps)
    bias = beta - mean * scale
    return scale.reshape(1, -1), bias.reshape(1, -1)


def _reference_nhwc(x, params):
    """Pure-JAX reference (NHWC), mirroring the kernel's bf16-operand / f32-accumulate math."""
    w1, s1, b1 = params["w1"], params["s1"], params["b1"]
    w2, s2, b2 = params["w2"], params["s2"], params["b2"]
    w3, s3, b3 = params["w3"], params["s3"], params["b3"]
    dn = ("NHWC", "HWIO", "NHWC")

    h = lax.conv_general_dilated(x.astype(jnp.bfloat16), w1[None, None], (1, 1), "VALID",
                                 dimension_numbers=dn,
                                 preferred_element_type=jnp.float32)
    h = jnp.maximum(h * s1[0] + b1[0], 0.0)
    h = lax.conv_general_dilated(h.astype(jnp.bfloat16), w2, (1, 1), ((1, 1), (1, 1)),
                                 dimension_numbers=dn,
                                 preferred_element_type=jnp.float32)
    h = jnp.maximum(h * s2[0] + b2[0], 0.0)
    h = lax.conv_general_dilated(h.astype(jnp.bfloat16), w3[None, None], (1, 1), "VALID",
                                 dimension_numbers=dn,
                                 preferred_element_type=jnp.float32)
    h = h * s3[0] + b3[0]
    return jnp.maximum(h + x, 0.0)


if __name__ == "__main__":
    # in_channels = out_channels = 32 (identity shortcut), expansion=2 -> Cmid=16
    B, H, W = 2, 16, 16
    Cin, Cout = 32, 32
    Cmid = Cout // 2

    key = jax.random.PRNGKey(0)
    ks = jax.random.split(key, 8)

    # Conv weights stored kernel-ready (bf16 MXU operands):
    #   torch 1x1 weight (Co, Ci, 1, 1) -> (Ci, Co); 3x3 weight (Co, Ci, 3, 3) -> (3, 3, Ci, Co)
    w1 = (0.1 * jax.random.normal(ks[0], (Cin, Cmid), jnp.float32)).astype(jnp.bfloat16)
    w2 = (0.1 * jax.random.normal(ks[1], (3, 3, Cmid, Cmid), jnp.float32)).astype(jnp.bfloat16)
    w3 = (0.1 * jax.random.normal(ks[2], (Cmid, Cout), jnp.float32)).astype(jnp.bfloat16)

    def bn_params(k, c):
        k1, k2, k3, k4 = jax.random.split(k, 4)
        gamma = 1.0 + 0.1 * jax.random.normal(k1, (c,), jnp.float32)
        beta = 0.1 * jax.random.normal(k2, (c,), jnp.float32)
        mean = 0.1 * jax.random.normal(k3, (c,), jnp.float32)
        var = jnp.abs(jax.random.normal(k4, (c,), jnp.float32)) + 0.5
        return _fold_bn(gamma, beta, mean, var)

    s1, b1 = bn_params(ks[3], Cmid)
    s2, b2 = bn_params(ks[4], Cmid)
    s3, b3 = bn_params(ks[5], Cout)

    params = dict(w1=w1, s1=s1, b1=b1, w2=w2, s2=s2, b2=b2, w3=w3, s3=s3, b3=b3)

    # Input built in PyTorch's NCHW convention, transposed to NHWC for the kernel.
    x_nchw = jax.random.normal(ks[6], (B, Cin, H, W), jnp.float32)
    x_nhwc = jnp.transpose(x_nchw, (0, 2, 3, 1))

    out = jax.block_until_ready(resblock_pallas(x_nhwc, params))
    ref = _reference_nhwc(x_nhwc, params)

    assert out.shape == (B, H, W, Cout)
    assert jnp.allclose(out, ref, atol=2e-2, rtol=2e-2), "mismatch vs JAX reference"

    # Back to NCHW to match PyTorch output convention (shape check only).
    out_nchw = jnp.transpose(out, (0, 3, 1, 2))
    assert out_nchw.shape == (B, Cout, H, W)

    print("KERNEL_OK")
</pallas_src>

<mosaic_0001>
module attributes {stable_mosaic.version = 11 : i64} {
  func.func @_resblock_kernel(%arg0: i32, %arg1: memref<1x256x32xf32, #tpu.memory_space<vmem>>, %arg2: memref<32x16xbf16, #tpu.memory_space<vmem>>, %arg3: memref<1x16xf32, #tpu.memory_space<vmem>>, %arg4: memref<1x16xf32, #tpu.memory_space<vmem>>, %arg5: memref<144x16xbf16, #tpu.memory_space<vmem>>, %arg6: memref<1x16xf32, #tpu.memory_space<vmem>>, %arg7: memref<1x16xf32, #tpu.memory_space<vmem>>, %arg8: memref<16x32xbf16, #tpu.memory_space<vmem>>, %arg9: memref<1x32xf32, #tpu.memory_space<vmem>>, %arg10: memref<1x32xf32, #tpu.memory_space<vmem>>, %arg11: memref<1x256x32xf32, #tpu.memory_space<vmem>>, %arg12: memref<290x16xf32, #tpu.memory_space<vmem>>, %arg13: memref<256x144xbf16, #tpu.memory_space<vmem>>) attributes {dimension_semantics = [#tpu.dimension_semantics<parallel>], iteration_bounds = array<i64: 2>, scalar_prefetch = 0 : i64, scratch_operands = 2 : i64, tpu.core_type = #tpu.core_type<tc>, window_params = [{transform_indices = @transform_0, window_bounds = array<i64: 1, 256, 32>}, {pipeline_mode = #tpu.pipeline_mode<synchronous>, transform_indices = @transform_1, window_bounds = array<i64: 32, 16>}, {pipeline_mode = #tpu.pipeline_mode<synchronous>, transform_indices = @transform_2, window_bounds = array<i64: 1, 16>}, {pipeline_mode = #tpu.pipeline_mode<synchronous>, transform_indices = @transform_3, window_bounds = array<i64: 1, 16>}, {pipeline_mode = #tpu.pipeline_mode<synchronous>, transform_indices = @transform_4, window_bounds = array<i64: 144, 16>}, {pipeline_mode = #tpu.pipeline_mode<synchronous>, transform_indices = @transform_5, window_bounds = array<i64: 1, 16>}, {pipeline_mode = #tpu.pipeline_mode<synchronous>, transform_indices = @transform_6, window_bounds = array<i64: 1, 16>}, {pipeline_mode = #tpu.pipeline_mode<synchronous>, transform_indices = @transform_7, window_bounds = array<i64: 16, 32>}, {pipeline_mode = #tpu.pipeline_mode<synchronous>, transform_indices = @transform_8, window_bounds = array<i64: 1, 32>}, {pipeline_mode = #tpu.pipeline_mode<synchronous>, transform_indices = @transform_9, window_bounds = array<i64: 1, 32>}, {transform_indices = @transform_10, window_bounds = array<i64: 1, 256, 32>}]} {
    %c0 = arith.constant 0 : index
    %c0_0 = arith.constant 0 : index
    %c0_1 = arith.constant 0 : index
    %0 = vector.load %arg1[%c0, %c0_0, %c0_1] : memref<1x256x32xf32, #tpu.memory_space<vmem>>, vector<1x256x32xf32>
    %1 = vector.shape_cast %0 : vector<1x256x32xf32> to vector<256x32xf32>
    %2 = arith.truncf %1 : vector<256x32xf32> to vector<256x32xbf16>
    %c0_2 = arith.constant 0 : index
    %c0_3 = arith.constant 0 : index
    %3 = vector.load %arg2[%c0_2, %c0_3] : memref<32x16xbf16, #tpu.memory_space<vmem>>, vector<32x16xbf16>
    %cst = arith.constant dense<0.000000e+00> : vector<256x16xf32>
    %4 = tpu.matmul %2, %3, %cst {dimension_numbers = #tpu.dot_dimension_numbers<[1], [0], [0], [1], [0, 0, 1, 1], [], []>} : vector<256x32xbf16>, vector<32x16xbf16>, vector<256x16xf32> -> vector<256x16xf32>
    %c0_4 = arith.constant 0 : index
    %c0_5 = arith.constant 0 : index
    %5 = vector.load %arg3[%c0_4, %c0_5] : memref<1x16xf32, #tpu.memory_space<vmem>>, vector<1x16xf32>
    %6 = vector.broadcast %5 : vector<1x16xf32> to vector<256x16xf32>
    %7 = arith.mulf %4, %6 : vector<256x16xf32>
    %c0_6 = arith.constant 0 : index
    %c0_7 = arith.constant 0 : index
    %8 = vector.load %arg4[%c0_6, %c0_7] : memref<1x16xf32, #tpu.memory_space<vmem>>, vector<1x16xf32>
    %9 = vector.broadcast %8 : vector<1x16xf32> to vector<256x16xf32>
    %10 = arith.addf %7, %9 : vector<256x16xf32>
    %cst_8 = arith.constant 0.000000e+00 : f32
    %11 = vector.broadcast %cst_8 : f32 to vector<256x16xf32>
    %12 = arith.maximumf %10, %11 : vector<256x16xf32>
    %cst_9 = arith.constant 0.000000e+00 : f32
    %13 = vector.broadcast %cst_9 : f32 to vector<17x16xf32>
    %c0_10 = arith.constant 0 : index
    %c0_11 = arith.constant 0 : index
    %14 = vector.load %arg12[%c0_10, %c0_11] : memref<290x16xf32, #tpu.memory_space<vmem>>, vector<17x16xf32>
    tpu.vector_store %arg12[%c0_10, %c0_11], %13 {strides = array<i32>} : memref<290x16xf32, #tpu.memory_space<vmem>>, vector<17x16xf32>,
    %cst_12 = arith.constant 0.000000e+00 : f32
    %15 = vector.broadcast %cst_12 : f32 to vector<17x16xf32>
    %c273 = arith.constant 273 : index
    %c0_13 = arith.constant 0 : index
    %16 = vector.load %arg12[%c273, %c0_13] : memref<290x16xf32, #tpu.memory_space<vmem>>, vector<17x16xf32>
    tpu.vector_store %arg12[%c273, %c0_13], %15 {strides = array<i32>} : memref<290x16xf32, #tpu.memory_space<vmem>>, vector<17x16xf32>,
    %c17 = arith.constant 17 : index
    %c0_14 = arith.constant 0 : index
    %17 = vector.load %arg12[%c17, %c0_14] : memref<290x16xf32, #tpu.memory_space<vmem>>, vector<256x16xf32>
    tpu.vector_store %arg12[%c17, %c0_14], %12 {strides = array<i32>} : memref<290x16xf32, #tpu.memory_space<vmem>>, vector<256x16xf32>,
    %18 = tpu.iota {dimensions = array<i32: 0>} : vector<256x16xi32>
    %c15_i32 = arith.constant 15 : i32
    %19 = vector.broadcast %c15_i32 : i32 to vector<256x16xi32>
    %20 = arith.andi %18, %19 : vector<256x16xi32>
    %c0_i32 = arith.constant 0 : i32
    %21 = vector.broadcast %c0_i32 : i32 to vector<256x16xi32>
    %22 = arith.cmpi ne, %20, %21 : vector<256x16xi32>
    %c15_i32_15 = arith.constant 15 : i32
    %23 = vector.broadcast %c15_i32_15 : i32 to vector<256x16xi32>
    %24 = arith.cmpi ne, %20, %23 : vector<256x16xi32>
    %c0_16 = arith.constant 0 : index
    %c0_17 = arith.constant 0 : index
    %25 = vector.load %arg12[%c0_16, %c0_17] : memref<290x16xf32, #tpu.memory_space<vmem>>, vector<256x16xf32>
    %cst_18 = arith.constant 0.000000e+00 : f32
    %26 = vector.broadcast %cst_18 : f32 to vector<256x16xf32>
    %27 = arith.select %22, %25, %26 : vector<256x16xi1>, vector<256x16xf32>
    %28 = arith.truncf %27 : vector<256x16xf32> to vector<256x16xbf16>
    %c0_19 = arith.constant 0 : index
    %c0_20 = arith.constant 0 : index
    %29 = vector.load %arg13[%c0_19, %c0_20] : memref<256x144xbf16, #tpu.memory_space<vmem>>, vector<256x16xbf16>
    tpu.vector_store %arg13[%c0_19, %c0_20], %28 {strides = array<i32>} : memref<256x144xbf16, #tpu.memory_space<vmem>>, vector<256x16xbf16>,
    %c1 = arith.constant 1 : index
    %c0_21 = arith.constant 0 : index
    %30 = vector.load %arg12[%c1, %c0_21] : memref<290x16xf32, #tpu.memory_space<vmem>>, vector<256x16xf32>
    %31 = arith.truncf %30 : vector<256x16xf32> to vector<256x16xbf16>
    %c0_22 = arith.constant 0 : index
    %c16 = arith.constant 16 : index
    %32 = vector.load %arg13[%c0_22, %c16] : memref<256x144xbf16, #tpu.memory_space<vmem>>, vector<256x16xbf16>
    tpu.vector_store %arg13[%c0_22, %c16], %31 {strides = array<i32>} : memref<256x144xbf16, #tpu.memory_space<vmem>>, vector<256x16xbf16>,
    %c2 = arith.constant 2 : index
    %c0_23 = arith.constant 0 : index
    %33 = vector.load %arg12[%c2, %c0_23] : memref<290x16xf32, #tpu.memory_space<vmem>>, vector<256x16xf32>
    %cst_24 = arith.constant 0.000000e+00 : f32
    %34 = vector.broadcast %cst_24 : f32 to vector<256x16xf32>
    %35 = arith.select %24, %33, %34 : vector<256x16xi1>, vector<256x16xf32>
    %36 = arith.truncf %35 : vector<256x16xf32> to vector<256x16xbf16>
    %c0_25 = arith.constant 0 : index
    %c32 = arith.constant 32 : index
    %37 = vector.load %arg13[%c0_25, %c32] : memref<256x144xbf16, #tpu.memory_space<vmem>>, vector<256x16xbf16>
    tpu.vector_store %arg13[%c0_25, %c32], %36 {strides = array<i32>} : memref<256x144xbf16, #tpu.memory_space<vmem>>, vector<256x16xbf16>,
    %c16_26 = arith.constant 16 : index
    %c0_27 = arith.constant 0 : index
    %38 = vector.load %arg12[%c16_26, %c0_27] : memref<290x16xf32, #tpu.memory_space<vmem>>, vector<256x16xf32>
    %cst_28 = arith.constant 0.000000e+00 : f32
    %39 = vector.broadcast %cst_28 : f32 to vector<256x16xf32>
    %40 = arith.select %22, %38, %39 : vector<256x16xi1>, vector<256x16xf32>
    %41 = arith.truncf %40 : vector<256x16xf32> to vector<256x16xbf16>
    %c0_29 = arith.constant 0 : index
    %c48 = arith.constant 48 : index
    %42 = vector.load %arg13[%c0_29, %c48] : memref<256x144xbf16, #tpu.memory_space<vmem>>, vector<256x16xbf16>
    tpu.vector_store %arg13[%c0_29, %c48], %41 {strides = array<i32>} : memref<256x144xbf16, #tpu.memory_space<vmem>>, vector<256x16xbf16>,
    %c17_30 = arith.constant 17 : index
    %c0_31 = arith.constant 0 : index
    %43 = vector.load %arg12[%c17_30, %c0_31] : memref<290x16xf32, #tpu.memory_space<vmem>>, vector<256x16xf32>
    %44 = arith.truncf %43 : vector<256x16xf32> to vector<256x16xbf16>
    %c0_32 = arith.constant 0 : index
    %c64 = arith.constant 64 : index
    %45 = vector.load %arg13[%c0_32, %c64] : memref<256x144xbf16, #tpu.memory_space<vmem>>, vector<256x16xbf16>
    tpu.vector_store %arg13[%c0_32, %c64], %44 {strides = array<i32>} : memref<256x144xbf16, #tpu.memory_space<vmem>>, vector<256x16xbf16>,
    %c18 = arith.constant 18 : index
    %c0_33 = arith.constant 0 : index
    %46 = vector.load %arg12[%c18, %c0_33] : memref<290x16xf32, #tpu.memory_space<vmem>>, vector<256x16xf32>
    %cst_34 = arith.constant 0.000000e+00 : f32
    %47 = vector.broadcast %cst_34 : f32 to vector<256x16xf32>
    %48 = arith.select %24, %46, %47 : vector<256x16xi1>, vector<256x16xf32>
    %49 = arith.truncf %48 : vector<256x16xf32> to vector<256x16xbf16>
    %c0_35 = arith.constant 0 : index
    %c80 = arith.constant 80 : index
    %50 = vector.load %arg13[%c0_35, %c80] : memref<256x144xbf16, #tpu.memory_space<vmem>>, vector<256x16xbf16>
    tpu.vector_store %arg13[%c0_35, %c80], %49 {strides = array<i32>} : memref<256x144xbf16, #tpu.memory_space<vmem>>, vector<256x16xbf16>,
    %c32_36 = arith.constant 32 : index
    %c0_37 = arith.constant 0 : index
    %51 = vector.load %arg12[%c32_36, %c0_37] : memref<290x16xf32, #tpu.memory_space<vmem>>, vector<256x16xf32>
    %cst_38 = arith.constant 0.000000e+00 : f32
    %52 = vector.broadcast %cst_38 : f32 to vector<256x16xf32>
    %53 = arith.select %22, %51, %52 : vector<256x16xi1>, vector<256x16xf32>
    %54 = arith.truncf %53 : vector<256x16xf32> to vector<256x16xbf16>
    %c0_39 = arith.constant 0 : index
    %c96 = arith.constant 96 : index
    %55 = vector.load %arg13[%c0_39, %c96] : memref<256x144xbf16, #tpu.memory_space<vmem>>, vector<256x16xbf16>
    tpu.vector_store %arg13[%c0_39, %c96], %54 {strides = array<i32>} : memref<256x144xbf16, #tpu.memory_space<vmem>>, vector<256x16xbf16>,
    %c33 = arith.constant 33 : index
    %c0_40 = arith.constant 0 : index
    %56 = vector.load %arg12[%c33, %c0_40] : memref<290x16xf32, #tpu.memory_space<vmem>>, vector<256x16xf32>
    %57 = arith.truncf %56 : vector<256x16xf32> to vector<256x16xbf16>
    %c0_41 = arith.constant 0 : index
    %c112 = arith.constant 112 : index
    %58 = vector.load %arg13[%c0_41, %c112] : memref<256x144xbf16, #tpu.memory_space<vmem>>, vector<256x16xbf16>
    tpu.vector_store %arg13[%c0_41, %c112], %57 {strides = array<i32>} : memref<256x144xbf16, #tpu.memory_space<vmem>>, vector<256x16xbf16>,
    %c34 = arith.constant 34 : index
    %c0_42 = arith.constant 0 : index
    %59 = vector.load %arg12[%c34, %c0_42] : memref<290x16xf32, #tpu.memory_space<vmem>>, vector<256x16xf32>
    %cst_43 = arith.constant 0.000000e+00 : f32
    %60 = vector.broadcast %cst_43 : f32 to vector<256x16xf32>
    %61 = arith.select %24, %59, %60 : vector<256x16xi1>, vector<256x16xf32>
    %62 = arith.truncf %61 : vector<256x16xf32> to vector<256x16xbf16>
    %c0_44 = arith.constant 0 : index
    %c128 = arith.constant 128 : index
    %63 = vector.load %arg13[%c0_44, %c128] : memref<256x144xbf16, #tpu.memory_space<vmem>>, vector<256x16xbf16>
    tpu.vector_store %arg13[%c0_44, %c128], %62 {strides = array<i32>} : memref<256x144xbf16, #tpu.memory_space<vmem>>, vector<256x16xbf16>,
    %c0_45 = arith.constant 0 : index
    %c0_46 = arith.constant 0 : index
    %64 = vector.load %arg13[%c0_45, %c0_46] : memref<256x144xbf16, #tpu.memory_space<vmem>>, vector<256x144xbf16>
    %c0_47 = arith.constant 0 : index
    %c0_48 = arith.constant 0 : index
    %65 = vector.load %arg5[%c0_47, %c0_48] : memref<144x16xbf16, #tpu.memory_space<vmem>>, vector<144x16xbf16>
    %cst_49 = arith.constant dense<0.000000e+00> : vector<256x16xf32>
    %66 = tpu.matmul %64, %65, %cst_49 {dimension_numbers = #tpu.dot_dimension_numbers<[1], [0], [0], [1], [0, 0, 1, 1], [], []>} : vector<256x144xbf16>, vector<144x16xbf16>, vector<256x16xf32> -> vector<256x16xf32>
    %c0_50 = arith.constant 0 : index
    %c0_51 = arith.constant 0 : index
    %67 = vector.load %arg6[%c0_50, %c0_51] : memref<1x16xf32, #tpu.memory_space<vmem>>, vector<1x16xf32>
    %68 = vector.broadcast %67 : vector<1x16xf32> to vector<256x16xf32>
    %69 = arith.mulf %66, %68 : vector<256x16xf32>
    %c0_52 = arith.constant 0 : index
    %c0_53 = arith.constant 0 : index
    %70 = vector.load %arg7[%c0_52, %c0_53] : memref<1x16xf32, #tpu.memory_space<vmem>>, vector<1x16xf32>
    %71 = vector.broadcast %70 : vector<1x16xf32> to vector<256x16xf32>
    %72 = arith.addf %69, %71 : vector<256x16xf32>
    %cst_54 = arith.constant 0.000000e+00 : f32
    %73 = vector.broadcast %cst_54 : f32 to vector<256x16xf32>
    %74 = arith.maximumf %72, %73 : vector<256x16xf32>
    %75 = arith.truncf %74 : vector<256x16xf32> to vector<256x16xbf16>
    %c0_55 = arith.constant 0 : index
    %c0_56 = arith.constant 0 : index
    %76 = vector.load %arg8[%c0_55, %c0_56] : memref<16x32xbf16, #tpu.memory_space<vmem>>, vector<16x32xbf16>
    %cst_57 = arith.constant dense<0.000000e+00> : vector<256x32xf32>
    %77 = tpu.matmul %75, %76, %cst_57 {dimension_numbers = #tpu.dot_dimension_numbers<[1], [0], [0], [1], [0, 0, 1, 1], [], []>} : vector<256x16xbf16>, vector<16x32xbf16>, vector<256x32xf32> -> vector<256x32xf32>
    %c0_58 = arith.constant 0 : index
    %c0_59 = arith.constant 0 : index
    %78 = vector.load %arg9[%c0_58, %c0_59] : memref<1x32xf32, #tpu.memory_space<vmem>>, vector<1x32xf32>
    %79 = vector.broadcast %78 : vector<1x32xf32> to vector<256x32xf32>
    %80 = arith.mulf %77, %79 : vector<256x32xf32>
    %c0_60 = arith.constant 0 : index
    %c0_61 = arith.constant 0 : index
    %81 = vector.load %arg10[%c0_60, %c0_61] : memref<1x32xf32, #tpu.memory_space<vmem>>, vector<1x32xf32>
    %82 = vector.broadcast %81 : vector<1x32xf32> to vector<256x32xf32>
    %83 = arith.addf %80, %82 : vector<256x32xf32>
    %84 = arith.addf %83, %1 : vector<256x32xf32>
    %cst_62 = arith.constant 0.000000e+00 : f32
    %85 = vector.broadcast %cst_62 : f32 to vector<256x32xf32>
    %86 = arith.maximumf %84, %85 : vector<256x32xf32>
    %c0_63 = arith.constant 0 : index
    %c0_64 = arith.constant 0 : index
    %c0_65 = arith.constant 0 : index
    %87 = vector.load %arg11[%c0_63, %c0_64, %c0_65] : memref<1x256x32xf32, #tpu.memory_space<vmem>>, vector<1x256x32xf32>
    %88 = vector.shape_cast %87 : vector<1x256x32xf32> to vector<256x32xf32>
    %89 = vector.shape_cast %86 : vector<256x32xf32> to vector<1x256x32xf32>
    tpu.vector_store %arg11[%c0_63, %c0_64, %c0_65], %89 {strides = array<i32>} : memref<1x256x32xf32, #tpu.memory_space<vmem>>, vector<1x256x32xf32>,
    return
  }
  func.func @transform_0(%arg0: i32) -> (i32, i32, i32) {
    %c0_i32 = arith.constant 0 : i32
    %c0_i32_0 = arith.constant 0 : i32
    %c0_i32_1 = arith.constant 0 : i32
    return %arg0, %c0_i32, %c0_i32_0 : i32, i32, i32
  }
  func.func @transform_1(%arg0: i32) -> (i32, i32) {
    %c0_i32 = arith.constant 0 : i32
    %c0_i32_0 = arith.constant 0 : i32
    %c0_i32_1 = arith.constant 0 : i32
    return %c0_i32, %c0_i32_0 : i32, i32
  }
  func.func @transform_2(%arg0: i32) -> (i32, i32) {
    %c0_i32 = arith.constant 0 : i32
    %c0_i32_0 = arith.constant 0 : i32
    %c0_i32_1 = arith.constant 0 : i32
    return %c0_i32, %c0_i32_0 : i32, i32
  }
  func.func @transform_3(%arg0: i32) -> (i32, i32) {
    %c0_i32 = arith.constant 0 : i32
    %c0_i32_0 = arith.constant 0 : i32
    %c0_i32_1 = arith.constant 0 : i32
    return %c0_i32, %c0_i32_0 : i32, i32
  }
  func.func @transform_4(%arg0: i32) -> (i32, i32) {
    %c0_i32 = arith.constant 0 : i32
    %c0_i32_0 = arith.constant 0 : i32
    %c0_i32_1 = arith.constant 0 : i32
    return %c0_i32, %c0_i32_0 : i32, i32
  }
  func.func @transform_5(%arg0: i32) -> (i32, i32) {
    %c0_i32 = arith.constant 0 : i32
    %c0_i32_0 = arith.constant 0 : i32
    %c0_i32_1 = arith.constant 0 : i32
    return %c0_i32, %c0_i32_0 : i32, i32
  }
  func.func @transform_6(%arg0: i32) -> (i32, i32) {
    %c0_i32 = arith.constant 0 : i32
    %c0_i32_0 = arith.constant 0 : i32
    %c0_i32_1 = arith.constant 0 : i32
    return %c0_i32, %c0_i32_0 : i32, i32
  }
  func.func @transform_7(%arg0: i32) -> (i32, i32) {
    %c0_i32 = arith.constant 0 : i32
    %c0_i32_0 = arith.constant 0 : i32
    %c0_i32_1 = arith.constant 0 : i32
    return %c0_i32, %c0_i32_0 : i32, i32
  }
  func.func @transform_8(%arg0: i32) -> (i32, i32) {
    %c0_i32 = arith.constant 0 : i32
    %c0_i32_0 = arith.constant 0 : i32
    %c0_i32_1 = arith.constant 0 : i32
    return %c0_i32, %c0_i32_0 : i32, i32
  }
  func.func @transform_9(%arg0: i32) -> (i32, i32) {
    %c0_i32 = arith.constant 0 : i32
    %c0_i32_0 = arith.constant 0 : i32
    %c0_i32_1 = arith.constant 0 : i32
    return %c0_i32, %c0_i32_0 : i32, i32
  }
  func.func @transform_10(%arg0: i32) -> (i32, i32, i32) {
    %c0_i32 = arith.constant 0 : i32
    %c0_i32_0 = arith.constant 0 : i32
    %c0_i32_1 = arith.constant 0 : i32
    return %arg0, %c0_i32, %c0_i32_0 : i32, i32, i32
  }
}

</mosaic_0001>

<llo_original>
// kernel: tpu_custom_call.1
$region0: #{tpu_custom_call.1}
  #allocation0 [shape = 'u32[]', space=smem, size = 0x4, offset = 0x4, fixed_abs, tag = 'smem constant byte address 0x4 - core index']
  #allocation1 [shape = 'u32[144,128]{1,0:T(1,128)}', space=vmem, size = 0x12000, scoped, tag = 'internal scratch']
  #allocation2 [shape = 'f32[290,16]{1,0:T(8,128)}', space=vmem, size = 0x25000, scoped, tag = 'scratch operand']
  #allocation3 [shape = 'bf16[256,144]{1,0:T(16,128)(2,1)}', space=vmem, size = 0x20000, scoped, tag = 'scratch operand']
  %s0 = inlined_call_operand.vmem [shape: f32[2,256,32], index: 0, kind: input, shape index: {}]
  %s1 = inlined_call_operand.vmem [shape: bf16[32,16], index: 1, kind: input, shape index: {}]
  %s2 = inlined_call_operand.vmem [shape: f32[1,16], index: 2, kind: input, shape index: {}]
  %s3 = inlined_call_operand.vmem [shape: f32[1,16], index: 3, kind: input, shape index: {}]
  %s4 = inlined_call_operand.vmem [shape: bf16[144,16], index: 4, kind: input, shape index: {}]
  %s5 = inlined_call_operand.vmem [shape: f32[1,16], index: 5, kind: input, shape index: {}]
  %s6 = inlined_call_operand.vmem [shape: f32[1,16], index: 6, kind: input, shape index: {}]
  %s7 = inlined_call_operand.vmem [shape: bf16[16,32], index: 7, kind: input, shape index: {}]
  %s8 = inlined_call_operand.vmem [shape: f32[1,32], index: 8, kind: input, shape index: {}]
  %s9 = inlined_call_operand.vmem [shape: f32[1,32], index: 9, kind: input, shape index: {}]
  %s10 = inlined_call_operand.vmem [shape: f32[2,256,32], index: 10, kind: output, shape index: {}]
  %s11 = sld [smem:[#allocation0]]
  $region73: #{tpu_custom_call.1} parent=0
    _
  %s13 = ssub.s32 1, %s11
  %s14 = scalar_select 0, %s13, %s11
  loop: start=0, step=1, limit=4
  $region2: #{tpu_custom_call.1} parent=0 // loop_pre_header
    _
  $region3: #{tpu_custom_call.1} parent=0 // loop_header
    %s16 = sphi 0, %s20
    %p17 = scmp.ge.s32.totalorder %s16, 4
    %s26 = sphi 0, %s28
    %s29 = sphi 0, %s26
    %s30 = sphi 0, %s29
    %s46 = sphi 0, %s30
    %s50 = sphi 0, %s50
    %s52 = sphi 0, %s50
    %s53 = sphi 0, %s52
    %s67 = sphi 0, %s53
    %s71 = sphi 0, %s71
    %s73 = sphi 0, %s71
    %s74 = sphi 0, %s73
    %s88 = sphi 0, %s74
    %s92 = sphi 0, %s92
    %s94 = sphi 0, %s92
    %s95 = sphi 0, %s94
    %s109 = sphi 0, %s95
    %s113 = sphi 0, %s113
    %s115 = sphi 0, %s113
    %s116 = sphi 0, %s115
    %s130 = sphi 0, %s116
    %s134 = sphi 0, %s134
    %s136 = sphi 0, %s134
    %s137 = sphi 0, %s136
    %s151 = sphi 0, %s137
    %s155 = sphi 0, %s155
    %s157 = sphi 0, %s155
    %s158 = sphi 0, %s157
    %s172 = sphi 0, %s158
    %s176 = sphi 0, %s176
    %s178 = sphi 0, %s176
    %s179 = sphi 0, %s178
    %s193 = sphi 0, %s179
    %s197 = sphi 0, %s197
    %s199 = sphi 0, %s197
    %s200 = sphi 0, %s199
    %s214 = sphi 0, %s200
    %s218 = sphi 0, %s218
    %s220 = sphi 0, %s218
    %s221 = sphi 0, %s220
    %s235 = sphi 0, %s221
    %s241 = sphi 0, %s243
    %s244 = sphi 0, %s241
    %s245 = sphi 0, %s244
    %s261 = sphi 0, %s245
  $region4: #{tpu_custom_call.1} parent=0 // loop_header_branch
    %19 = sbr.rel (%p17) target = $region8
  $region5: #{tpu_custom_call.1} parent=0 // loop_body
    %s21 = ssub.s32 %s16, 1
    %s22 = ssub.s32 %s16, 2
    %s23 = sadd.s32 %s16, 1
    %s24 = ssub.s32 %s16, %s23
    %p25 = scmp.eq.s32.totalorder %s24, 0
    %s27 = sadd.s32 %s26, 1
    %s28 = scalar_select %p25, %s26, %s27
    %p31 = pneg %p25
    %p32 = scmp.eq.s32.totalorder %s16, 1
    %p33 = por %p31, %p32
    %p34 = scmp.ne.s32.totalorder %s26, %s29
    %p35 = scmp.eq.s32.totalorder %s16, 0
    %p36 = por %p34, %p35
    %p37 = scmp.ne.s32.totalorder %s26, %s29
    %p38 = scmp.eq.s32.totalorder %s21, 1
    %p39 = por %p37, %p38
    %p40 = scmp.ne.s32.totalorder %s29, %s30
    %p41 = scmp.eq.s32.totalorder %s21, 0
    %p42 = por %p40, %p41
    %p43 = scmp.ne.s32.totalorder %s29, %s30
    %p44 = scmp.eq.s32.totalorder %s22, 1
    %p45 = por %p43, %p44
    %p47 = scmp.ne.s32.totalorder %s30, %s46
    %p48 = scmp.eq.s32.totalorder %s22, 0
    %p49 = por %p47, %p48
    %s51 = sadd.s32 %s50, 1
    %p54 = scmp.eq.s32.totalorder %s16, 1
    %p55 = scmp.ne.s32.totalorder %s50, %s52
    %p56 = scmp.eq.s32.totalorder %s16, 0
    %p57 = por %p55, %p56
    %p58 = scmp.ne.s32.totalorder %s50, %s52
    %p59 = scmp.eq.s32.totalorder %s21, 1
    %p60 = por %p58, %p59
    %p61 = scmp.ne.s32.totalorder %s52, %s53
    %p62 = scmp.eq.s32.totalorder %s21, 0
    %p63 = por %p61, %p62
    %p64 = scmp.ne.s32.totalorder %s52, %s53
    %p65 = scmp.eq.s32.totalorder %s22, 1
    %p66 = por %p64, %p65
    %p68 = scmp.ne.s32.totalorder %s53, %s67
    %p69 = scmp.eq.s32.totalorder %s22, 0
    %p70 = por %p68, %p69
    %s72 = sadd.s32 %s71, 1
    %p75 = scmp.eq.s32.totalorder %s16, 1
    %p76 = scmp.ne.s32.totalorder %s71, %s73
    %p77 = scmp.eq.s32.totalorder %s16, 0
    %p78 = por %p76, %p77
    %p79 = scmp.ne.s32.totalorder %s71, %s73
    %p80 = scmp.eq.s32.totalorder %s21, 1
    %p81 = por %p79, %p80
    %p82 = scmp.ne.s32.totalorder %s73, %s74
    %p83 = scmp.eq.s32.totalorder %s21, 0
    %p84 = por %p82, %p83
    %p85 = scmp.ne.s32.totalorder %s73, %s74
    %p86 = scmp.eq.s32.totalorder %s22, 1
    %p87 = por %p85, %p86
    %p89 = scmp.ne.s32.totalorder %s74, %s88
    %p90 = scmp.eq.s32.totalorder %s22, 0
    %p91 = por %p89, %p90
    %s93 = sadd.s32 %s92, 1
    %p96 = scmp.eq.s32.totalorder %s16, 1
    %p97 = scmp.ne.s32.totalorder %s92, %s94
    %p98 = scmp.eq.s32.totalorder %s16, 0
    %p99 = por %p97, %p98
    %p100 = scmp.ne.s32.totalorder %s92, %s94
    %p101 = scmp.eq.s32.totalorder %s21, 1
    %p102 = por %p100, %p101
    %p103 = scmp.ne.s32.totalorder %s94, %s95
    %p104 = scmp.eq.s32.totalorder %s21, 0
    %p105 = por %p103, %p104
    %p106 = scmp.ne.s32.totalorder %s94, %s95
    %p107 = scmp.eq.s32.totalorder %s22, 1
    %p108 = por %p106, %p107
    %p110 = scmp.ne.s32.totalorder %s95, %s109
    %p111 = scmp.eq.s32.totalorder %s22, 0
    %p112 = por %p110, %p111
    %s114 = sadd.s32 %s113, 1
    %p117 = scmp.eq.s32.totalorder %s16, 1
    %p118 = scmp.ne.s32.totalorder %s113, %s115
    %p119 = scmp.eq.s32.totalorder %s16, 0
    %p120 = por %p118, %p119
    %p121 = scmp.ne.s32.totalorder %s113, %s115
    %p122 = scmp.eq.s32.totalorder %s21, 1
    %p123 = por %p121, %p122
    %p124 = scmp.ne.s32.totalorder %s115, %s116
    %p125 = scmp.eq.s32.totalorder %s21, 0
    %p126 = por %p124, %p125
    %p127 = scmp.ne.s32.totalorder %s115, %s116
    %p128 = scmp.eq.s32.totalorder %s22, 1
    %p129 = por %p127, %p128
    %p131 = scmp.ne.s32.totalorder %s116, %s130
    %p132 = scmp.eq.s32.totalorder %s22, 0
    %p133 = por %p131, %p132
    %s135 = sadd.s32 %s134, 1
    %p138 = scmp.eq.s32.totalorder %s16, 1
    %p139 = scmp.ne.s32.totalorder %s134, %s136
    %p140 = scmp.eq.s32.totalorder %s16, 0
    %p141 = por %p139, %p140
    %p142 = scmp.ne.s32.totalorder %s134, %s136
    %p143 = scmp.eq.s32.totalorder %s21, 1
    %p144 = por %p142, %p143
    %p145 = scmp.ne.s32.totalorder %s136, %s137
    %p146 = scmp.eq.s32.totalorder %s21, 0
    %p147 = por %p145, %p146
    %p148 = scmp.ne.s32.totalorder %s136, %s137
    %p149 = scmp.eq.s32.totalorder %s22, 1
    %p150 = por %p148, %p149
    %p152 = scmp.ne.s32.totalorder %s137, %s151
    %p153 = scmp.eq.s32.totalorder %s22, 0
    %p154 = por %p152, %p153
    %s156 = sadd.s32 %s155, 1
    %p159 = scmp.eq.s32.totalorder %s16, 1
    %p160 = scmp.ne.s32.totalorder %s155, %s157
    %p161 = scmp.eq.s32.totalorder %s16, 0
    %p162 = por %p160, %p161
    %p163 = scmp.ne.s32.totalorder %s155, %s157
    %p164 = scmp.eq.s32.totalorder %s21, 1
    %p165 = por %p163, %p164
    %p166 = scmp.ne.s32.totalorder %s157, %s158
    %p167 = scmp.eq.s32.totalorder %s21, 0
    %p168 = por %p166, %p167
    %p169 = scmp.ne.s32.totalorder %s157, %s158
    %p170 = scmp.eq.s32.totalorder %s22, 1
    %p171 = por %p169, %p170
    %p173 = scmp.ne.s32.totalorder %s158, %s172
    %p174 = scmp.eq.s32.totalorder %s22, 0
    %p175 = por %p173, %p174
    %s177 = sadd.s32 %s176, 1
    %p180 = scmp.eq.s32.totalorder %s16, 1
    %p181 = scmp.ne.s32.totalorder %s176, %s178
    %p182 = scmp.eq.s32.totalorder %s16, 0
    %p183 = por %p181, %p182
    %p184 = scmp.ne.s32.totalorder %s176, %s178
    %p185 = scmp.eq.s32.totalorder %s21, 1
    %p186 = por %p184, %p185
    %p187 = scmp.ne.s32.totalorder %s178, %s179
    %p188 = scmp.eq.s32.totalorder %s21, 0
    %p189 = por %p187, %p188
    %p190 = scmp.ne.s32.totalorder %s178, %s179
    %p191 = scmp.eq.s32.totalorder %s22, 1
    %p192 = por %p190, %p191
    %p194 = scmp.ne.s32.totalorder %s179, %s193
    %p195 = scmp.eq.s32.totalorder %s22, 0
    %p196 = por %p194, %p195
    %s198 = sadd.s32 %s197, 1
    %p201 = scmp.eq.s32.totalorder %s16, 1
    %p202 = scmp.ne.s32.totalorder %s197, %s199
    %p203 = scmp.eq.s32.totalorder %s16, 0
    %p204 = por %p202, %p203
    %p205 = scmp.ne.s32.totalorder %s197, %s199
    %p206 = scmp.eq.s32.totalorder %s21, 1
    %p207 = por %p205, %p206
    %p208 = scmp.ne.s32.totalorder %s199, %s200
    %p209 = scmp.eq.s32.totalorder %s21, 0
    %p210 = por %p208, %p209
    %p211 = scmp.ne.s32.totalorder %s199, %s200
    %p212 = scmp.eq.s32.totalorder %s22, 1
    %p213 = por %p211, %p212
    %p215 = scmp.ne.s32.totalorder %s200, %s214
    %p216 = scmp.eq.s32.totalorder %s22, 0
    %p217 = por %p215, %p216
    %s219 = sadd.s32 %s218, 1
    %p222 = scmp.eq.s32.totalorder %s16, 1
    %p223 = scmp.ne.s32.totalorder %s218, %s220
    %p224 = scmp.eq.s32.totalorder %s16, 0
    %p225 = por %p223, %p224
    %p226 = scmp.ne.s32.totalorder %s218, %s220
    %p227 = scmp.eq.s32.totalorder %s21, 1
    %p228 = por %p226, %p227
    %p229 = scmp.ne.s32.totalorder %s220, %s221
    %p230 = scmp.eq.s32.totalorder %s21, 0
    %p231 = por %p229, %p230
    %p232 = scmp.ne.s32.totalorder %s220, %s221
    %p233 = scmp.eq.s32.totalorder %s22, 1
    %p234 = por %p232, %p233
    %p236 = scmp.ne.s32.totalorder %s221, %s235
    %p237 = scmp.eq.s32.totalorder %s22, 0
    %p238 = por %p236, %p237
    %s239 = ssub.s32 %s16, %s23
    %p240 = scmp.eq.s32.totalorder %s239, 0
    %s242 = sadd.s32 %s241, 1
    %s243 = scalar_select %p240, %s241, %s242
    %p246 = pneg %p240
    %p247 = scmp.eq.s32.totalorder %s16, 1
    %p248 = por %p246, %p247
    %p249 = scmp.ne.s32.totalorder %s241, %s244
    %p250 = scmp.eq.s32.totalorder %s16, 0
    %p251 = por %p249, %p250
    %p252 = scmp.ne.s32.totalorder %s241, %s244
    %p253 = scmp.eq.s32.totalorder %s21, 1
    %p254 = por %p252, %p253
    %p255 = scmp.ne.s32.totalorder %s244, %s245
    %p256 = scmp.eq.s32.totalorder %s21, 0
    %p257 = por %p255, %p256
    %p258 = scmp.ne.s32.totalorder %s244, %s245
    %p259 = scmp.eq.s32.totalorder %s22, 1
    %p260 = por %p258, %p259
    %p262 = scmp.ne.s32.totalorder %s245, %s261
    %p263 = scmp.eq.s32.totalorder %s22, 0
    %p264 = por %p262, %p263
    %p265 = scmp.le.s32.totalorder 1, %s16
    %p266 = scmp.lt.s32.totalorder %s16, 3
    %p267 = pnand %p265, %p266
    %p268 = pneg %p267
    // Predicated region
    $region9: #{tpu_custom_call.1} parent=5 // pred_check
      _
    $region10: #{tpu_custom_call.1} parent=5 // pred_check_branch
      %270 = sbr.rel (%p267) target = $region12
    $region11: #{tpu_custom_call.1} parent=5 // pred_region
      %s271 = ssub.s32 %s16, 1
      // Predicated region
      $region13: #{tpu_custom_call.1} parent=11 // pred_check
        %p272 = pneg %p63
      $region14: #{tpu_custom_call.1} parent=11 // pred_check_branch
        %274 = sbr.rel (%p272) target = $region16
      $region15: #{tpu_custom_call.1} parent=11 // pred_region
        _
      $region16: #{tpu_custom_call.1} parent=11 // pred_fallthru
        _
      // Predicated region
      $region17: #{tpu_custom_call.1} parent=11 // pred_check
        %p275 = pneg %p84
      $region18: #{tpu_custom_call.1} parent=11 // pred_check_branch
        %277 = sbr.rel (%p275) target = $region20
      $region19: #{tpu_custom_call.1} parent=11 // pred_region
        _
      $region20: #{tpu_custom_call.1} parent=11 // pred_fallthru
        _
      // Predicated region
      $region21: #{tpu_custom_call.1} parent=11 // pred_check
        %p278 = pneg %p105
      $region22: #{tpu_custom_call.1} parent=11 // pred_check_branch
        %280 = sbr.rel (%p278) target = $region24
      $region23: #{tpu_custom_call.1} parent=11 // pred_region
        _
      $region24: #{tpu_custom_call.1} parent=11 // pred_fallthru
        _
      // Predicated region
      $region25: #{tpu_custom_call.1} parent=11 // pred_check
        %p281 = pneg %p126
      $region26: #{tpu_custom_call.1} parent=11 // pred_check_branch
        %283 = sbr.rel (%p281) target = $region28
      $region27: #{tpu_custom_call.1} parent=11 // pred_region
        _
      $region28: #{tpu_custom_call.1} parent=11 // pred_fallthru
        _
      // Predicated region
      $region29: #{tpu_custom_call.1} parent=11 // pred_check
        %p284 = pneg %p147
      $region30: #{tpu_custom_call.1} parent=11 // pred_check_branch
        %286 = sbr.rel (%p284) target = $region32
      $region31: #{tpu_custom_call.1} parent=11 // pred_region
        _
      $region32: #{tpu_custom_call.1} parent=11 // pred_fallthru
        _
      // Predicated region
      $region33: #{tpu_custom_call.1} parent=11 // pred_check
        %p287 = pneg %p168
      $region34: #{tpu_custom_call.1} parent=11 // pred_check_branch
        %289 = sbr.rel (%p287) target = $region36
      $region35: #{tpu_custom_call.1} parent=11 // pred_region
        _
      $region36: #{tpu_custom_call.1} parent=11 // pred_fallthru
        _
      // Predicated region
      $region37: #{tpu_custom_call.1} parent=11 // pred_check
        %p290 = pneg %p189
      $region38: #{tpu_custom_call.1} parent=11 // pred_check_branch
        %292 = sbr.rel (%p290) target = $region40
      $region39: #{tpu_custom_call.1} parent=11 // pred_region
        _
      $region40: #{tpu_custom_call.1} parent=11 // pred_fallthru
        _
      // Predicated region
      $region41: #{tpu_custom_call.1} parent=11 // pred_check
        %p293 = pneg %p210
      $region42: #{tpu_custom_call.1} parent=11 // pred_check_branch
        %295 = sbr.rel (%p293) target = $region44
      $region43: #{tpu_custom_call.1} parent=11 // pred_region
        _
      $region44: #{tpu_custom_call.1} parent=11 // pred_fallthru
        _
      // Predicated region
      $region45: #{tpu_custom_call.1} parent=11 // pred_check
        %p296 = pneg %p231
      $region46: #{tpu_custom_call.1} parent=11 // pred_check_branch
        %298 = sbr.rel (%p296) target = $region48
      $region47: #{tpu_custom_call.1} parent=11 // pred_region
        _
      $region48: #{tpu_custom_call.1} parent=11 // pred_fallthru
        _
    $region12: #{tpu_custom_call.1} parent=5 // pred_fallthru
      _
    %p299 = scmp.lt.s32.totalorder %s16, 2
    // Predicated region
    $region49: #{tpu_custom_call.1} parent=5 // pred_check
      %p300 = pneg %p299
    $region50: #{tpu_custom_call.1} parent=5 // pred_check_branch
      %302 = sbr.rel (%p300) target = $region52
    $region51: #{tpu_custom_call.1} parent=5 // pred_region
      // Predicated region
      $region53: #{tpu_custom_call.1} parent=51 // pred_check
        %p303 = pneg %p36
      $region54: #{tpu_custom_call.1} parent=51 // pred_check_branch
        %305 = sbr.rel (%p303) target = $region56
      $region55: #{tpu_custom_call.1} parent=51 // pred_region
        %p306 = scmp.lt.s32.totalorder %s16, 1
        %s307 = scalar_select %p306, %s16, 1
        %s308 = smul.addr %s307, 32
        %s309 = smul.addr %s308, 8
        %s310 = scalar_lea.vmem %s0, %s309
      $region56: #{tpu_custom_call.1} parent=51 // pred_fallthru
        _
    $region52: #{tpu_custom_call.1} parent=5 // pred_fallthru
      _
    %p311 = scmp.le.s32.totalorder 1, %s16
    %p312 = scmp.lt.s32.totalorder %s16, 3
    %p313 = pnand %p311, %p312
    %p314 = pneg %p313
    // Predicated region
    $region57: #{tpu_custom_call.1} parent=5 // pred_check
      _
    $region58: #{tpu_custom_call.1} parent=5 // pred_check_branch
      %316 = sbr.rel (%p313) target = $region60
    $region59: #{tpu_custom_call.1} parent=5 // pred_region
      %s317 = ssub.s32 %s16, 1
      %p318 = scmp.lt.s32.totalorder %s21, 1
      %s319 = scalar_select %p318, %s21, 1
      %s320 = smul.addr %s319, 32
      %s321 = smul.addr %s320, 8
      %s322 = scalar_lea.vmem %s0, %s321
      %p323 = pneg %p42
      %p324 = pneg %p39
      %p325 = pneg %p63
      %p326 = pneg %p60
      %p327 = pneg %p84
      %p328 = pneg %p81
      %p329 = pneg %p105
      %p330 = pneg %p102
      %p331 = pneg %p126
      %p332 = pneg %p123
      %p333 = pneg %p147
      %p334 = pneg %p144
      %p335 = pneg %p168
      %p336 = pneg %p165
      %p337 = pneg %p189
      %p338 = pneg %p186
      %p339 = pneg %p210
      %p340 = pneg %p207
      %p341 = pneg %p231
      %p342 = pneg %p228
      %p343 = pneg %p257
      %p344 = pneg %p254
      %p345 = scmp.lt.s32.totalorder %s21, 1
      %s346 = scalar_select %p345, %s21, 1
      %s347 = smul.addr %s346, 32
      %s348 = smul.addr %s347, 8
      %s349 = scalar_lea.vmem %s10, %s348
      %p350 = scmp.lt.s32.totalorder %s21, 1
      %s351 = scalar_select %p350, %s21, 1
      %s352 = smul.addr %s351, 32
      %s353 = smul.addr %s352, 8
      %s354 = scalar_lea.vmem %s0, %s353
      %p355 = scmp.lt.s32.totalorder %s21, 1
      %s356 = scalar_select %p355, %s21, 1
      %s357 = smul.addr %s356, 32
      %s358 = smul.addr %s357, 8
      %s359 = scalar_lea.vmem %s10, %s358
      %v361 = vld [vmem:[%s354] sm:$0xff]
      %v362 = vld [vmem:[%s354 + $0x8] sm:$0xff]
      %v363 = vld [vmem:[%s354 + $0x10] sm:$0xff]
      %v364 = vld [vmem:[%s354 + $0x18] sm:$0xff]
      %v365 = vld [vmem:[%s354 + $0x20] sm:$0xff]
      %v366 = vld [vmem:[%s354 + $0x28] sm:$0xff]
      %v367 = vld [vmem:[%s354 + $0x30] sm:$0xff]
      %v368 = vld [vmem:[%s354 + $0x38] sm:$0xff]
      %v369 = vld [vmem:[%s354 + $0x40] sm:$0xff]
      %v370 = vld [vmem:[%s354 + $0x48] sm:$0xff]
      %v371 = vld [vmem:[%s354 + $0x50] sm:$0xff]
      %v372 = vld [vmem:[%s354 + $0x58] sm:$0xff]
      %v373 = vld [vmem:[%s354 + $0x60] sm:$0xff]
      %v374 = vld [vmem:[%s354 + $0x68] sm:$0xff]
      %v375 = vld [vmem:[%s354 + $0x70] sm:$0xff]
      %v376 = vld [vmem:[%s354 + $0x78] sm:$0xff]
      %v377 = vld [vmem:[%s354 + $0x80] sm:$0xff]
      %v378 = vld [vmem:[%s354 + $0x88] sm:$0xff]
      %v379 = vld [vmem:[%s354 + $0x90] sm:$0xff]
      %v380 = vld [vmem:[%s354 + $0x98] sm:$0xff]
      %v381 = vld [vmem:[%s354 + $0xa0] sm:$0xff]
      %v382 = vld [vmem:[%s354 + $0xa8] sm:$0xff]
      %v383 = vld [vmem:[%s354 + $0xb0] sm:$0xff]
      %v384 = vld [vmem:[%s354 + $0xb8] sm:$0xff]
      %v385 = vld [vmem:[%s354 + $0xc0] sm:$0xff]
      %v386 = vld [vmem:[%s354 + $0xc8] sm:$0xff]
      %v387 = vld [vmem:[%s354 + $0xd0] sm:$0xff]
      %v388 = vld [vmem:[%s354 + $0xd8] sm:$0xff]
      %v389 = vld [vmem:[%s354 + $0xe0] sm:$0xff]
      %v390 = vld [vmem:[%s354 + $0xe8] sm:$0xff]
      %v391 = vld [vmem:[%s354 + $0xf0] sm:$0xff]
      %v392 = vld [vmem:[%s354 + $0xf8] sm:$0xff]
      %v393 = vpack.c.bf16 %v362, %v361
      %v394 = vpack.c.bf16 %v364, %v363
      %v395 = vpack.c.bf16 %v366, %v365
      %v396 = vpack.c.bf16 %v368, %v367
      %v397 = vpack.c.bf16 %v370, %v369
      %v398 = vpack.c.bf16 %v372, %v371
      %v399 = vpack.c.bf16 %v374, %v373
      %v400 = vpack.c.bf16 %v376, %v375
      %v401 = vpack.c.bf16 %v378, %v377
      %v402 = vpack.c.bf16 %v380, %v379
      %v403 = vpack.c.bf16 %v382, %v381
      %v404 = vpack.c.bf16 %v384, %v383
      %v405 = vpack.c.bf16 %v386, %v385
      %v406 = vpack.c.bf16 %v388, %v387
      %v407 = vpack.c.bf16 %v390, %v389
      %v408 = vpack.c.bf16 %v392, %v391
      %v409 = vld [vmem:[%s1] sm:$0xf]
      %v410 = vld [vmem:[%s1 + $0x4] sm:$0xf]
      %v411 = vld [vmem:[%s1 + $0x8] sm:$0xf]
      %v412 = vld [vmem:[%s1 + $0xc] sm:$0xf]
      %v417 = vunpack.c.l.b16 %v409
      %v418 = vunpack.c.l.b16 %v410
      %v419 = vunpack.c.l.b16 %v411
      %v420 = vunpack.c.l.b16 %v412
      %v421 = vpack.c.b16 %v418, %v417
      %v422 = vpack.c.b16 %v420, %v419
      %vm425 = vcmask 261120
      %v427 = vsel %vm425, %v393, 0
      %v430 = vsel %vm425, %v394, 0
      %v433 = vsel %vm425, %v395, 0
      %v436 = vsel %vm425, %v396, 0
      %v439 = vsel %vm425, %v397, 0
      %v442 = vsel %vm425, %v398, 0
      %v445 = vsel %vm425, %v399, 0
      %v448 = vsel %vm425, %v400, 0
      %v451 = vsel %vm425, %v401, 0
      %v454 = vsel %vm425, %v402, 0
      %v457 = vsel %vm425, %v403, 0
      %v460 = vsel %vm425, %v404, 0
      %v463 = vsel %vm425, %v405, 0
      %v466 = vsel %vm425, %v406, 0
      %v469 = vsel %vm425, %v407, 0
      %v472 = vsel %vm425, %v408, 0
      %474 = vmatprep.subr.bf16.mxu0 0
      %475 = vmatpush1.bf16.msra.mxu0 %v421
      %476 = vmatprep.subr.bf16.mxu0 0
      %477 = vmatpush1.bf16.msra.mxu0 %v422
      %478 = vmatprep.subr.bf16.mxu0 0
      %479 = vmatpush1.bf16.msra.mxu0 0
      %480 = vmatprep.subr.bf16.mxu0 0
      %481 = vmatpush1.bf16.msra.mxu0 0
      %482 = vmatprep.subr.bf16.mxu0 0
      %483 = vmatpush1.bf16.msra.mxu0 0
      %484 = vmatprep.subr.bf16.mxu0 0
      %485 = vmatpush1.bf16.msra.mxu0 0
      %486 = vmatprep.subr.bf16.mxu0 0
      %487 = vmatpush1.bf16.msra.mxu0 0
      %488 = vmatprep.subr.bf16.mxu0 0
      %489 = vmatpush1.bf16.msra.mxu0 0
      %490 = vmatprep.subr.bf16.mxu0 0
      %491 = vmatpush1.bf16.msra.mxu0 0
      %492 = vmatprep.subr.bf16.mxu0 0
      %493 = vmatpush1.bf16.msra.mxu0 0
      %494 = vmatprep.subr.bf16.mxu0 0
      %495 = vmatpush1.bf16.msra.mxu0 0
      %496 = vmatprep.subr.bf16.mxu0 0
      %497 = vmatpush1.bf16.msra.mxu0 0
      %498 = vmatprep.subr.bf16.mxu0 0
      %499 = vmatpush1.bf16.msra.mxu0 0
      %500 = vmatprep.subr.bf16.mxu0 0
      %501 = vmatpush1.bf16.msra.mxu0 0
      %502 = vmatprep.subr.bf16.mxu0 0
      %503 = vmatpush1.bf16.msra.mxu0 0
      %504 = vmatprep.subr.bf16.mxu0 0
      %505 = vmatpush1.bf16.msra.mxu0 0
      %506 = vmatprep.mubr.bf16.mxu0 0
      %507 = vmatmul.mubr.bf16.gmra.mrb[0].mxu0 %v427
      %v508 = vpop.f32.mrb[0].mxu0
      %v509 = vadd.f32 0.0, %v508
      %v510 = vpop.f32.mrb[0].mxu0
      %v511 = vpop.f32.mrb[0].mxu0
      %v512 = vadd.f32 0.0, %v511
      %v513 = vpop.f32.mrb[0].mxu0
      %514 = vmatprep.mubr.bf16.mxu0 0
      %515 = vmatmul.mubr.bf16.gmra.mrb[0].mxu0 %v430
      %v516 = vpop.f32.mrb[0].mxu0
      %v517 = vadd.f32 0.0, %v516
      %v518 = vpop.f32.mrb[0].mxu0
      %v519 = vpop.f32.mrb[0].mxu0
      %v520 = vadd.f32 0.0, %v519
      %v521 = vpop.f32.mrb[0].mxu0
      %522 = vmatprep.mubr.bf16.mxu0 0
      %523 = vmatmul.mubr.bf16.gmra.mrb[0].mxu0 %v433
      %v524 = vpop.f32.mrb[0].mxu0
      %v525 = vadd.f32 0.0, %v524
      %v526 = vpop.f32.mrb[0].mxu0
      %v527 = vpop.f32.mrb[0].mxu0
      %v528 = vadd.f32 0.0, %v527
      %v529 = vpop.f32.mrb[0].mxu0
      %530 = vmatprep.mubr.bf16.mxu0 0
      %531 = vmatmul.mubr.bf16.gmra.mrb[0].mxu0 %v436
      %v532 = vpop.f32.mrb[0].mxu0
      %v533 = vadd.f32 0.0, %v532
      %v534 = vpop.f32.mrb[0].mxu0
      %v535 = vpop.f32.mrb[0].mxu0
      %v536 = vadd.f32 0.0, %v535
      %v537 = vpop.f32.mrb[0].mxu0
      %538 = vmatprep.mubr.bf16.mxu0 0
      %539 = vmatmul.mubr.bf16.gmra.mrb[0].mxu0 %v439
      %v540 = vpop.f32.mrb[0].mxu0
      %v541 = vadd.f32 0.0, %v540
      %v542 = vpop.f32.mrb[0].mxu0
      %v543 = vpop.f32.mrb[0].mxu0
      %v544 = vadd.f32 0.0, %v543
      %v545 = vpop.f32.mrb[0].mxu0
      %546 = vmatprep.mubr.bf16.mxu0 0
      %547 = vmatmul.mubr.bf16.gmra.mrb[0].mxu0 %v442
      %v548 = vpop.f32.mrb[0].mxu0
      %v549 = vadd.f32 0.0, %v548
      %v550 = vpop.f32.mrb[0].mxu0
      %v551 = vpop.f32.mrb[0].mxu0
      %v552 = vadd.f32 0.0, %v551
      %v553 = vpop.f32.mrb[0].mxu0
      %554 = vmatprep.mubr.bf16.mxu0 0
      %555 = vmatmul.mubr.bf16.gmra.mrb[0].mxu0 %v445
      %v556 = vpop.f32.mrb[0].mxu0
      %v557 = vadd.f32 0.0, %v556
      %v558 = vpop.f32.mrb[0].mxu0
      %v559 = vpop.f32.mrb[0].mxu0
      %v560 = vadd.f32 0.0, %v559
      %v561 = vpop.f32.mrb[0].mxu0
      %562 = vmatprep.mubr.bf16.mxu0 0
      %563 = vmatmul.mubr.bf16.gmra.mrb[0].mxu0 %v448
      %v564 = vpop.f32.mrb[0].mxu0
      %v565 = vadd.f32 0.0, %v564
      %v566 = vpop.f32.mrb[0].mxu0
      %v567 = vpop.f32.mrb[0].mxu0
      %v568 = vadd.f32 0.0, %v567
      %v569 = vpop.f32.mrb[0].mxu0
      %570 = vmatprep.mubr.bf16.mxu0 0
      %571 = vmatmul.mubr.bf16.gmra.mrb[0].mxu0 %v451
      %v572 = vpop.f32.mrb[0].mxu0
      %v573 = vadd.f32 0.0, %v572
      %v574 = vpop.f32.mrb[0].mxu0
      %v575 = vpop.f32.mrb[0].mxu0
      %v576 = vadd.f32 0.0, %v575
      %v577 = vpop.f32.mrb[0].mxu0
      %578 = vmatprep.mubr.bf16.mxu0 0
      %579 = vmatmul.mubr.bf16.gmra.mrb[0].mxu0 %v454
      %v580 = vpop.f32.mrb[0].mxu0
      %v581 = vadd.f32 0.0, %v580
      %v582 = vpop.f32.mrb[0].mxu0
      %v583 = vpop.f32.mrb[0].mxu0
      %v584 = vadd.f32 0.0, %v583
      %v585 = vpop.f32.mrb[0].mxu0
      %586 = vmatprep.mubr.bf16.mxu0 0
      %587 = vmatmul.mubr.bf16.gmra.mrb[0].mxu0 %v457
      %v588 = vpop.f32.mrb[0].mxu0
      %v589 = vadd.f32 0.0, %v588
      %v590 = vpop.f32.mrb[0].mxu0
      %v591 = vpop.f32.mrb[0].mxu0
      %v592 = vadd.f32 0.0, %v591
      %v593 = vpop.f32.mrb[0].mxu0
      %594 = vmatprep.mubr.bf16.mxu0 0
      %595 = vmatmul.mubr.bf16.gmra.mrb[0].mxu0 %v460
      %v596 = vpop.f32.mrb[0].mxu0
      %v597 = vadd.f32 0.0, %v596
      %v598 = vpop.f32.mrb[0].mxu0
      %v599 = vpop.f32.mrb[0].mxu0
      %v600 = vadd.f32 0.0, %v599
      %v601 = vpop.f32.mrb[0].mxu0
      %602 = vmatprep.mubr.bf16.mxu0 0
      %603 = vmatmul.mubr.bf16.gmra.mrb[0].mxu0 %v463
      %v604 = vpop.f32.mrb[0].mxu0
      %v605 = vadd.f32 0.0, %v604
      %v606 = vpop.f32.mrb[0].mxu0
      %v607 = vpop.f32.mrb[0].mxu0
      %v608 = vadd.f32 0.0, %v607
      %v609 = vpop.f32.mrb[0].mxu0
      %610 = vmatprep.mubr.bf16.mxu0 0
      %611 = vmatmul.mubr.bf16.gmra.mrb[0].mxu0 %v466
      %v612 = vpop.f32.mrb[0].mxu0
      %v613 = vadd.f32 0.0, %v612
      %v614 = vpop.f32.mrb[0].mxu0
      %v615 = vpop.f32.mrb[0].mxu0
      %v616 = vadd.f32 0.0, %v615
      %v617 = vpop.f32.mrb[0].mxu0
      %618 = vmatprep.mubr.bf16.mxu0 0
      %619 = vmatmul.mubr.bf16.gmra.mrb[0].mxu0 %v469
      %v620 = vpop.f32.mrb[0].mxu0
      %v621 = vadd.f32 0.0, %v620
      %v622 = vpop.f32.mrb[0].mxu0
      %v623 = vpop.f32.mrb[0].mxu0
      %v624 = vadd.f32 0.0, %v623
      %v625 = vpop.f32.mrb[0].mxu0
      %626 = vmatprep.mubr.bf16.mxu0 0
      %627 = vmatmul.mubr.bf16.gmra.mrb[0].mxu0 %v472
      %v628 = vpop.f32.mrb[0].mxu0
      %v629 = vadd.f32 0.0, %v628
      %v630 = vpop.f32.mrb[0].mxu0
      %v631 = vpop.f32.mrb[0].mxu0
      %v632 = vadd.f32 0.0, %v631
      %v633 = vpop.f32.mrb[0].mxu0
      %634 = vdwg.mxu0
      %v635 = vld [vmem:[%s2] sm:$0x1]
      %v637 = vlaneseq
      %v638 = vshrl.u32 %v637, 7
      %v639 = vsub.s32 0, %v638
      %v640 = vrot.slane %v635, %v639
      %v642 = vmul.f32 %v509, %v640
      %v643 = vmul.f32 %v512, %v640
      %v644 = vmul.f32 %v517, %v640
      %v645 = vmul.f32 %v520, %v640
      %v646 = vmul.f32 %v525, %v640
      %v647 = vmul.f32 %v528, %v640
      %v648 = vmul.f32 %v533, %v640
      %v649 = vmul.f32 %v536, %v640
      %v650 = vmul.f32 %v541, %v640
      %v651 = vmul.f32 %v544, %v640
      %v652 = vmul.f32 %v549, %v640
      %v653 = vmul.f32 %v552, %v640
      %v654 = vmul.f32 %v557, %v640
      %v655 = vmul.f32 %v560, %v640
      %v656 = vmul.f32 %v565, %v640
      %v657 = vmul.f32 %v568, %v640
      %v658 = vmul.f32 %v573, %v640
      %v659 = vmul.f32 %v576, %v640
      %v660 = vmul.f32 %v581, %v640
      %v661 = vmul.f32 %v584, %v640
      %v662 = vmul.f32 %v589, %v640
      %v663 = vmul.f32 %v592, %v640
      %v664 = vmul.f32 %v597, %v640
      %v665 = vmul.f32 %v600, %v640
      %v666 = vmul.f32 %v605, %v640
      %v667 = vmul.f32 %v608, %v640
      %v668 = vmul.f32 %v613, %v640
      %v669 = vmul.f32 %v616, %v640
      %v670 = vmul.f32 %v621, %v640
      %v671 = vmul.f32 %v624, %v640
      %v672 = vmul.f32 %v629, %v640
      %v673 = vmul.f32 %v632, %v640
      %v674 = vld [vmem:[%s3] sm:$0x1]
      %v676 = vlaneseq
      %v677 = vshrl.u32 %v676, 7
      %v678 = vsub.s32 0, %v677
      %v679 = vrot.slane %v674, %v678
      %v681 = vadd.f32 %v642, %v679
      %v682 = vadd.f32 %v643, %v679
      %v683 = vadd.f32 %v644, %v679
      %v684 = vadd.f32 %v645, %v679
      %v685 = vadd.f32 %v646, %v679
      %v686 = vadd.f32 %v647, %v679
      %v687 = vadd.f32 %v648, %v679
      %v688 = vadd.f32 %v649, %v679
      %v689 = vadd.f32 %v650, %v679
      %v690 = vadd.f32 %v651, %v679
      %v691 = vadd.f32 %v652, %v679
      %v692 = vadd.f32 %v653, %v679
      %v693 = vadd.f32 %v654, %v679
      %v694 = vadd.f32 %v655, %v679
      %v695 = vadd.f32 %v656, %v679
      %v696 = vadd.f32 %v657, %v679
      %v697 = vadd.f32 %v658, %v679
      %v698 = vadd.f32 %v659, %v679
      %v699 = vadd.f32 %v660, %v679
      %v700 = vadd.f32 %v661, %v679
      %v701 = vadd.f32 %v662, %v679
      %v702 = vadd.f32 %v663, %v679
      %v703 = vadd.f32 %v664, %v679
      %v704 = vadd.f32 %v665, %v679
      %v705 = vadd.f32 %v666, %v679
      %v706 = vadd.f32 %v667, %v679
      %v707 = vadd.f32 %v668, %v679
      %v708 = vadd.f32 %v669, %v679
      %v709 = vadd.f32 %v670, %v679
      %v710 = vadd.f32 %v671, %v679
      %v711 = vadd.f32 %v672, %v679
      %v712 = vadd.f32 %v673, %v679
      %v713 = vmax.f32 %v681, 0.0
      %v714 = vmax.f32 %v682, 0.0
      %v715 = vmax.f32 %v683, 0.0
      %v716 = vmax.f32 %v684, 0.0
      %v717 = vmax.f32 %v685, 0.0
      %v718 = vmax.f32 %v686, 0.0
      %v719 = vmax.f32 %v687, 0.0
      %v720 = vmax.f32 %v688, 0.0
      %v721 = vmax.f32 %v689, 0.0
      %v722 = vmax.f32 %v690, 0.0
      %v723 = vmax.f32 %v691, 0.0
      %v724 = vmax.f32 %v692, 0.0
      %v725 = vmax.f32 %v693, 0.0
      %v726 = vmax.f32 %v694, 0.0
      %v727 = vmax.f32 %v695, 0.0
      %v728 = vmax.f32 %v696, 0.0
      %v729 = vmax.f32 %v697, 0.0
      %v730 = vmax.f32 %v698, 0.0
      %v731 = vmax.f32 %v699, 0.0
      %v732 = vmax.f32 %v700, 0.0
      %v733 = vmax.f32 %v701, 0.0
      %v734 = vmax.f32 %v702, 0.0
      %v735 = vmax.f32 %v703, 0.0
      %v736 = vmax.f32 %v704, 0.0
      %v737 = vmax.f32 %v705, 0.0
      %v738 = vmax.f32 %v706, 0.0
      %v739 = vmax.f32 %v707, 0.0
      %v740 = vmax.f32 %v708, 0.0
      %v741 = vmax.f32 %v709, 0.0
      %v742 = vmax.f32 %v710, 0.0
      %v743 = vmax.f32 %v711, 0.0
      %v744 = vmax.f32 %v712, 0.0
      %vm745 = vcmask 130048
      %746 = vst.msk [vmem:[#allocation2] sm:$0xff] %vm745, 0.0
      %747 = vst.msk [vmem:[#allocation2 + $0x8] sm:$0xff] %vm745, 0.0
      %vm748 = vcmask 122880
      %749 = vst.msk [vmem:[#allocation2 + $0x10] sm:$0x1] %vm748, 0.0
      %750 = vst.msk [vmem:[#allocation2 + $0x111] sm:$0xff] %vm745, 0.0
      %751 = vst.msk [vmem:[#allocation2 + $0x119] sm:$0xff] %vm745, 0.0
      %752 = vst.msk [vmem:[#allocation2 + $0x121] sm:$0x1] %vm748, 0.0
      %753 = vst.msk [vmem:[#allocation2 + $0x11] sm:$0xff] %vm745, %v713
      %754 = vst.msk [vmem:[#allocation2 + $0x19] sm:$0xff] %vm745, %v714
      %755 = vst.msk [vmem:[#allocation2 + $0x21] sm:$0xff] %vm745, %v715
      %756 = vst.msk [vmem:[#allocation2 + $0x29] sm:$0xff] %vm745, %v716
      %757 = vst.msk [vmem:[#allocation2 + $0x31] sm:$0xff] %vm745, %v717
      %758 = vst.msk [vmem:[#allocation2 + $0x39] sm:$0xff] %vm745, %v718
      %759 = vst.msk [vmem:[#allocation2 + $0x41] sm:$0xff] %vm745, %v719
      %760 = vst.msk [vmem:[#allocation2 + $0x49] sm:$0xff] %vm745, %v720
      %761 = vst.msk [vmem:[#allocation2 + $0x51] sm:$0xff] %vm745, %v721
      %762 = vst.msk [vmem:[#allocation2 + $0x59] sm:$0xff] %vm745, %v722
      %763 = vst.msk [vmem:[#allocation2 + $0x61] sm:$0xff] %vm745, %v723
      %764 = vst.msk [vmem:[#allocation2 + $0x69] sm:$0xff] %vm745, %v724
      %765 = vst.msk [vmem:[#allocation2 + $0x71] sm:$0xff] %vm745, %v725
      %766 = vst.msk [vmem:[#allocation2 + $0x79] sm:$0xff] %vm745, %v726
      %767 = vst.msk [vmem:[#allocation2 + $0x81] sm:$0xff] %vm745, %v727
      %768 = vst.msk [vmem:[#allocation2 + $0x89] sm:$0xff] %vm745, %v728
      %769 = vst.msk [vmem:[#allocation2 + $0x91] sm:$0xff] %vm745, %v729
      %770 = vst.msk [vmem:[#allocation2 + $0x99] sm:$0xff] %vm745, %v730
      %771 = vst.msk [vmem:[#allocation2 + $0xa1] sm:$0xff] %vm745, %v731
      %772 = vst.msk [vmem:[#allocation2 + $0xa9] sm:$0xff] %vm745, %v732
      %773 = vst.msk [vmem:[#allocation2 + $0xb1] sm:$0xff] %vm745, %v733
      %774 = vst.msk [vmem:[#allocation2 + $0xb9] sm:$0xff] %vm745, %v734
      %775 = vst.msk [vmem:[#allocation2 + $0xc1] sm:$0xff] %vm745, %v735
      %776 = vst.msk [vmem:[#allocation2 + $0xc9] sm:$0xff] %vm745, %v736
      %777 = vst.msk [vmem:[#allocation2 + $0xd1] sm:$0xff] %vm745, %v737
      %778 = vst.msk [vmem:[#allocation2 + $0xd9] sm:$0xff] %vm745, %v738
      %779 = vst.msk [vmem:[#allocation2 + $0xe1] sm:$0xff] %vm745, %v739
      %780 = vst.msk [vmem:[#allocation2 + $0xe9] sm:$0xff] %vm745, %v740
      %781 = vst.msk [vmem:[#allocation2 + $0xf1] sm:$0xff] %vm745, %v741
      %782 = vst.msk [vmem:[#allocation2 + $0xf9] sm:$0xff] %vm745, %v742
      %783 = vst.msk [vmem:[#allocation2 + $0x101] sm:$0xff] %vm745, %v743
      %784 = vst.msk [vmem:[#allocation2 + $0x109] sm:$0xff] %vm745, %v744
      %v785 = vlaneseq
      %v786 = vshrl.u32 %v785, 7
      %v787 = vadd.s32 %v786, 8
      %v788 = vadd.s32 %v786, 16
      %v789 = vadd.s32 %v786, 24
      %v790 = vadd.s32 %v786, 32
      %v791 = vadd.s32 %v786, 40
      %v792 = vadd.s32 %v786, 48
      %v793 = vadd.s32 %v786, 56
      %v794 = vadd.s32 %v786, 64
      %v795 = vadd.s32 %v786, 72
      %v796 = vadd.s32 %v786, 80
      %v797 = vadd.s32 %v786, 88
      %v798 = vadd.s32 %v786, 96
      %v799 = vadd.s32 %v786, 104
      %v800 = vadd.s32 %v786, 112
      %v801 = vadd.s32 %v786, 120
      %v802 = vadd.s32 %v786, 128
      %v803 = vadd.s32 %v786, 136
      %v804 = vadd.s32 %v786, 144
      %v805 = vadd.s32 %v786, 152
      %v806 = vadd.s32 %v786, 160
      %v807 = vadd.s32 %v786, 168
      %v808 = vadd.s32 %v786, 176
      %v809 = vadd.s32 %v786, 184
      %v810 = vadd.s32 %v786, 192
      %v811 = vadd.s32 %v786, 200
      %v812 = vadd.s32 %v786, 208
      %v813 = vadd.s32 %v786, 216
      %v814 = vadd.s32 %v786, 224
      %v815 = vadd.s32 %v786, 232
      %v816 = vadd.s32 %v786, 240
      %v817 = vadd.s32 %v786, 248
      %v818 = vand.u32 %v786, 15
      %v819 = vand.u32 %v787, 15
      %v820 = vand.u32 %v788, 15
      %v821 = vand.u32 %v789, 15
      %v822 = vand.u32 %v790, 15
      %v823 = vand.u32 %v791, 15
      %v824 = vand.u32 %v792, 15
      %v825 = vand.u32 %v793, 15
      %v826 = vand.u32 %v794, 15
      %v827 = vand.u32 %v795, 15
      %v828 = vand.u32 %v796, 15
      %v829 = vand.u32 %v797, 15
      %v830 = vand.u32 %v798, 15
      %v831 = vand.u32 %v799, 15
      %v832 = vand.u32 %v800, 15
      %v833 = vand.u32 %v801, 15
      %v834 = vand.u32 %v802, 15
      %v835 = vand.u32 %v803, 15
      %v836 = vand.u32 %v804, 15
      %v837 = vand.u32 %v805, 15
      %v838 = vand.u32 %v806, 15
      %v839 = vand.u32 %v807, 15
      %v840 = vand.u32 %v808, 15
      %v841 = vand.u32 %v809, 15
      %v842 = vand.u32 %v810, 15
      %v843 = vand.u32 %v811, 15
      %v844 = vand.u32 %v812, 15
      %v845 = vand.u32 %v813, 15
      %v846 = vand.u32 %v814, 15
      %v847 = vand.u32 %v815, 15
      %v848 = vand.u32 %v816, 15
      %v849 = vand.u32 %v817, 15
      %vm850 = vcmp.ne.s32.totalorder %v818, 0
      %vm851 = vcmp.ne.s32.totalorder %v819, 0
      %vm852 = vcmp.ne.s32.totalorder %v820, 0
      %vm853 = vcmp.ne.s32.totalorder %v821, 0
      %vm854 = vcmp.ne.s32.totalorder %v822, 0
      %vm855 = vcmp.ne.s32.totalorder %v823, 0
      %vm856 = vcmp.ne.s32.totalorder %v824, 0
      %vm857 = vcmp.ne.s32.totalorder %v825, 0
      %vm858 = vcmp.ne.s32.totalorder %v826, 0
      %vm859 = vcmp.ne.s32.totalorder %v827, 0
      %vm860 = vcmp.ne.s32.totalorder %v828, 0
      %vm861 = vcmp.ne.s32.totalorder %v829, 0
      %vm862 = vcmp.ne.s32.totalorder %v830, 0
      %vm863 = vcmp.ne.s32.totalorder %v831, 0
      %vm864 = vcmp.ne.s32.totalorder %v832, 0
      %vm865 = vcmp.ne.s32.totalorder %v833, 0
      %vm866 = vcmp.ne.s32.totalorder %v834, 0
      %vm867 = vcmp.ne.s32.totalorder %v835, 0
      %vm868 = vcmp.ne.s32.totalorder %v836, 0
      %vm869 = vcmp.ne.s32.totalorder %v837, 0
      %vm870 = vcmp.ne.s32.totalorder %v838, 0
      %vm871 = vcmp.ne.s32.totalorder %v839, 0
      %vm872 = vcmp.ne.s32.totalorder %v840, 0
      %vm873 = vcmp.ne.s32.totalorder %v841, 0
      %vm874 = vcmp.ne.s32.totalorder %v842, 0
      %vm875 = vcmp.ne.s32.totalorder %v843, 0
      %vm876 = vcmp.ne.s32.totalorder %v844, 0
      %vm877 = vcmp.ne.s32.totalorder %v845, 0
      %vm878 = vcmp.ne.s32.totalorder %v846, 0
      %vm879 = vcmp.ne.s32.totalorder %v847, 0
      %vm880 = vcmp.ne.s32.totalorder %v848, 0
      %vm881 = vcmp.ne.s32.totalorder %v849, 0
      %vm882 = vcmp.ne.s32.totalorder %v818, 15
      %vm883 = vcmp.ne.s32.totalorder %v819, 15
      %vm884 = vcmp.ne.s32.totalorder %v820, 15
      %vm885 = vcmp.ne.s32.totalorder %v821, 15
      %vm886 = vcmp.ne.s32.totalorder %v822, 15
      %vm887 = vcmp.ne.s32.totalorder %v823, 15
      %vm888 = vcmp.ne.s32.totalorder %v824, 15
      %vm889 = vcmp.ne.s32.totalorder %v825, 15
      %vm890 = vcmp.ne.s32.totalorder %v826, 15
      %vm891 = vcmp.ne.s32.totalorder %v827, 15
      %vm892 = vcmp.ne.s32.totalorder %v828, 15
      %vm893 = vcmp.ne.s32.totalorder %v829, 15
      %vm894 = vcmp.ne.s32.totalorder %v830, 15
      %vm895 = vcmp.ne.s32.totalorder %v831, 15
      %vm896 = vcmp.ne.s32.totalorder %v832, 15
      %vm897 = vcmp.ne.s32.totalorder %v833, 15
      %vm898 = vcmp.ne.s32.totalorder %v834, 15
      %vm899 = vcmp.ne.s32.totalorder %v835, 15
      %vm900 = vcmp.ne.s32.totalorder %v836, 15
      %vm901 = vcmp.ne.s32.totalorder %v837, 15
      %vm902 = vcmp.ne.s32.totalorder %v838, 15
      %vm903 = vcmp.ne.s32.totalorder %v839, 15
      %vm904 = vcmp.ne.s32.totalorder %v840, 15
      %vm905 = vcmp.ne.s32.totalorder %v841, 15
      %vm906 = vcmp.ne.s32.totalorder %v842, 15
      %vm907 = vcmp.ne.s32.totalorder %v843, 15
      %vm908 = vcmp.ne.s32.totalorder %v844, 15
      %vm909 = vcmp.ne.s32.totalorder %v845, 15
      %vm910 = vcmp.ne.s32.totalorder %v846, 15
      %vm911 = vcmp.ne.s32.totalorder %v847, 15
      %vm912 = vcmp.ne.s32.totalorder %v848, 15
      %vm913 = vcmp.ne.s32.totalorder %v849, 15
      %v914 = vld [vmem:[#allocation2] sm:$0xff]
      %v915 = vld [vmem:[#allocation2 + $0x8] sm:$0xff]
      %v916 = vld [vmem:[#allocation2 + $0x10] sm:$0xff]
      %v917 = vld [vmem:[#allocation2 + $0x18] sm:$0xff]
      %v918 = vld [vmem:[#allocation2 + $0x20] sm:$0xff]
      %v919 = vld [vmem:[#allocation2 + $0x28] sm:$0xff]
      %v920 = vld [vmem:[#allocation2 + $0x30] sm:$0xff]
      %v921 = vld [vmem:[#allocation2 + $0x38] sm:$0xff]
      %v922 = vld [vmem:[#allocation2 + $0x40] sm:$0xff]
      %v923 = vld [vmem:[#allocation2 + $0x48] sm:$0xff]
      %v924 = vld [vmem:[#allocation2 + $0x50] sm:$0xff]
      %v925 = vld [vmem:[#allocation2 + $0x58] sm:$0xff]
      %v926 = vld [vmem:[#allocation2 + $0x60] sm:$0xff]
      %v927 = vld [vmem:[#allocation2 + $0x68] sm:$0xff]
      %v928 = vld [vmem:[#allocation2 + $0x70] sm:$0xff]
      %v929 = vld [vmem:[#allocation2 + $0x78] sm:$0xff]
      %v930 = vld [vmem:[#allocation2 + $0x80] sm:$0xff]
      %v931 = vld [vmem:[#allocation2 + $0x88] sm:$0xff]
      %v932 = vld [vmem:[#allocation2 + $0x90] sm:$0xff]
      %v933 = vld [vmem:[#allocation2 + $0x98] sm:$0xff]
      %v934 = vld [vmem:[#allocation2 + $0xa0] sm:$0xff]
      %v935 = vld [vmem:[#allocation2 + $0xa8] sm:$0xff]
      %v936 = vld [vmem:[#allocation2 + $0xb0] sm:$0xff]
      %v937 = vld [vmem:[#allocation2 + $0xb8] sm:$0xff]
      %v938 = vld [vmem:[#allocation2 + $0xc0] sm:$0xff]
      %v939 = vld [vmem:[#allocation2 + $0xc8] sm:$0xff]
      %v940 = vld [vmem:[#allocation2 + $0xd0] sm:$0xff]
      %v941 = vld [vmem:[#allocation2 + $0xd8] sm:$0xff]
      %v942 = vld [vmem:[#allocation2 + $0xe0] sm:$0xff]
      %v943 = vld [vmem:[#allocation2 + $0xe8] sm:$0xff]
      %v944 = vld [vmem:[#allocation2 + $0xf0] sm:$0xff]
      %v945 = vld [vmem:[#allocation2 + $0xf8] sm:$0xff]
      %v946 = vsel %vm850, %v914, 0.0
      %v947 = vsel %vm851, %v915, 0.0
      %v948 = vsel %vm852, %v916, 0.0
      %v949 = vsel %vm853, %v917, 0.0
      %v950 = vsel %vm854, %v918, 0.0
      %v951 = vsel %vm855, %v919, 0.0
      %v952 = vsel %vm856, %v920, 0.0
      %v953 = vsel %vm857, %v921, 0.0
      %v954 = vsel %vm858, %v922, 0.0
      %v955 = vsel %vm859, %v923, 0.0
      %v956 = vsel %vm860, %v924, 0.0
      %v957 = vsel %vm861, %v925, 0.0
      %v958 = vsel %vm862, %v926, 0.0
      %v959 = vsel %vm863, %v927, 0.0
      %v960 = vsel %vm864, %v928, 0.0
      %v961 = vsel %vm865, %v929, 0.0
      %v962 = vsel %vm866, %v930, 0.0
      %v963 = vsel %vm867, %v931, 0.0
      %v964 = vsel %vm868, %v932, 0.0
      %v965 = vsel %vm869, %v933, 0.0
      %v966 = vsel %vm870, %v934, 0.0
      %v967 = vsel %vm871, %v935, 0.0
      %v968 = vsel %vm872, %v936, 0.0
      %v969 = vsel %vm873, %v937, 0.0
      %v970 = vsel %vm874, %v938, 0.0
      %v971 = vsel %vm875, %v939, 0.0
      %v972 = vsel %vm876, %v940, 0.0
      %v973 = vsel %vm877, %v941, 0.0
      %v974 = vsel %vm878, %v942, 0.0
      %v975 = vsel %vm879, %v943, 0.0
      %v976 = vsel %vm880, %v944, 0.0
      %v977 = vsel %vm881, %v945, 0.0
      %v978 = vpack.c.bf16 %v947, %v946
      %v979 = vpack.c.bf16 %v949, %v948
      %v980 = vpack.c.bf16 %v951, %v950
      %v981 = vpack.c.bf16 %v953, %v952
      %v982 = vpack.c.bf16 %v955, %v954
      %v983 = vpack.c.bf16 %v957, %v956
      %v984 = vpack.c.bf16 %v959, %v958
      %v985 = vpack.c.bf16 %v961, %v960
      %v986 = vpack.c.bf16 %v963, %v962
      %v987 = vpack.c.bf16 %v965, %v964
      %v988 = vpack.c.bf16 %v967, %v966
      %v989 = vpack.c.bf16 %v969, %v968
      %v990 = vpack.c.bf16 %v971, %v970
      %v991 = vpack.c.bf16 %v973, %v972
      %v992 = vpack.c.bf16 %v975, %v974
      %v993 = vpack.c.bf16 %v977, %v976
      %994 = vst.msk [vmem:[#allocation3] sm:$0xff] %vm745, %v978
      %995 = vst.msk [vmem:[#allocation3 + $0x10] sm:$0xff] %vm745, %v979
      %996 = vst.msk [vmem:[#allocation3 + $0x20] sm:$0xff] %vm745, %v980
      %997 = vst.msk [vmem:[#allocation3 + $0x30] sm:$0xff] %vm745, %v981
      %998 = vst.msk [vmem:[#allocation3 + $0x40] sm:$0xff] %vm745, %v982
      %999 = vst.msk [vmem:[#allocation3 + $0x50] sm:$0xff] %vm745, %v983
      %1000 = vst.msk [vmem:[#allocation3 + $0x60] sm:$0xff] %vm745, %v984
      %1001 = vst.msk [vmem:[#allocation3 + $0x70] sm:$0xff] %vm745, %v985
      %1002 = vst.msk [vmem:[#allocation3 + $0x80] sm:$0xff] %vm745, %v986
      %1003 = vst.msk [vmem:[#allocation3 + $0x90] sm:$0xff] %vm745, %v987
      %1004 = vst.msk [vmem:[#allocation3 + $0xa0] sm:$0xff] %vm745, %v988
      %1005 = vst.msk [vmem:[#allocation3 + $0xb0] sm:$0xff] %vm745, %v989
      %1006 = vst.msk [vmem:[#allocation3 + $0xc0] sm:$0xff] %vm745, %v990
      %1007 = vst.msk [vmem:[#allocation3 + $0xd0] sm:$0xff] %vm745, %v991
      %1008 = vst.msk [vmem:[#allocation3 + $0xe0] sm:$0xff] %vm745, %v992
      %1009 = vst.msk [vmem:[#allocation3 + $0xf0] sm:$0xff] %vm745, %v993
      %v1010 = vld [vmem:[#allocation2 + $0x1] sm:$0xff]
      %v1011 = vld [vmem:[#allocation2 + $0x9] sm:$0xff]
      %v1012 = vld [vmem:[#allocation2 + $0x11] sm:$0xff]
      %v1013 = vld [vmem:[#allocation2 + $0x19] sm:$0xff]
      %v1014 = vld [vmem:[#allocation2 + $0x21] sm:$0xff]
      %v1015 = vld [vmem:[#allocation2 + $0x29] sm:$0xff]
      %v1016 = vld [vmem:[#allocation2 + $0x31] sm:$0xff]
      %v1017 = vld [vmem:[#allocation2 + $0x39] sm:$0xff]
      %v1018 = vld [vmem:[#allocation2 + $0x41] sm:$0xff]
      %v1019 = vld [vmem:[#allocation2 + $0x49] sm:$0xff]
      %v1020 = vld [vmem:[#allocation2 + $0x51] sm:$0xff]
      %v1021 = vld [vmem:[#allocation2 + $0x59] sm:$0xff]
      %v1022 = vld [vmem:[#allocation2 + $0x61] sm:$0xff]
      %v1023 = vld [vmem:[#allocation2 + $0x69] sm:$0xff]
      %v1024 = vld [vmem:[#allocation2 + $0x71] sm:$0xff]
      %v1025 = vld [vmem:[#allocation2 + $0x79] sm:$0xff]
      %v1026 = vld [vmem:[#allocation2 + $0x81] sm:$0xff]
      %v1027 = vld [vmem:[#allocation2 + $0x89] sm:$0xff]
      %v1028 = vld [vmem:[#allocation2 + $0x91] sm:$0xff]
      %v1029 = vld [vmem:[#allocation2 + $0x99] sm:$0xff]
      %v1030 = vld [vmem:[#allocation2 + $0xa1] sm:$0xff]
      %v1031 = vld [vmem:[#allocation2 + $0xa9] sm:$0xff]
      %v1032 = vld [vmem:[#allocation2 + $0xb1] sm:$0xff]
      %v1033 = vld [vmem:[#allocation2 + $0xb9] sm:$0xff]
      %v1034 = vld [vmem:[#allocation2 + $0xc1] sm:$0xff]
      %v1035 = vld [vmem:[#allocation2 + $0xc9] sm:$0xff]
      %v1036 = vld [vmem:[#allocation2 + $0xd1] sm:$0xff]
      %v1037 = vld [vmem:[#allocation2 + $0xd9] sm:$0xff]
      %v1038 = vld [vmem:[#allocation2 + $0xe1] sm:$0xff]
      %v1039 = vld [vmem:[#allocation2 + $0xe9] sm:$0xff]
      %v1040 = vld [vmem:[#allocation2 + $0xf1] sm:$0xff]
      %v1041 = vld [vmem:[#allocation2 + $0xf9] sm:$0xff]
      %v1042 = vpack.c.bf16 %v1011, %v1010
      %v1043 = vpack.c.bf16 %v1013, %v1012
      %v1044 = vpack.c.bf16 %v1015, %v1014
      %v1045 = vpack.c.bf16 %v1017, %v1016
      %v1046 = vpack.c.bf16 %v1019, %v1018
      %v1047 = vpack.c.bf16 %v1021, %v1020
      %v1048 = vpack.c.bf16 %v1023, %v1022
      %v1049 = vpack.c.bf16 %v1025, %v1024
      %v1050 = vpack.c.bf16 %v1027, %v1026
      %v1051 = vpack.c.bf16 %v1029, %v1028
      %v1052 = vpack.c.bf16 %v1031, %v1030
      %v1053 = vpack.c.bf16 %v1033, %v1032
      %v1054 = vpack.c.bf16 %v1035, %v1034
      %v1055 = vpack.c.bf16 %v1037, %v1036
      %v1056 = vpack.c.bf16 %v1039, %v1038
      %v1057 = vpack.c.bf16 %v1041, %v1040
      %1074 = vrot.lane.b32.xlu0 %v1042, 16
      %v1075 = vpop.permute.xlu0 %1074
      %1076 = vrot.lane.b32.xlu0 %v1043, 16
      %v1077 = vpop.permute.xlu0 %1076
      %1078 = vrot.lane.b32.xlu0 %v1044, 16
      %v1079 = vpop.permute.xlu0 %1078
      %1080 = vrot.lane.b32.xlu0 %v1045, 16
      %v1081 = vpop.permute.xlu0 %1080
      %1082 = vrot.lane.b32.xlu0 %v1046, 16
      %v1083 = vpop.permute.xlu0 %1082
      %1084 = vrot.lane.b32.xlu0 %v1047, 16
      %v1085 = vpop.permute.xlu0 %1084
      %1086 = vrot.lane.b32.xlu0 %v1048, 16
      %v1087 = vpop.permute.xlu0 %1086
      %1088 = vrot.lane.b32.xlu0 %v1049, 16
      %v1089 = vpop.permute.xlu0 %1088
      %1090 = vrot.lane.b32.xlu0 %v1050, 16
      %v1091 = vpop.permute.xlu0 %1090
      %1092 = vrot.lane.b32.xlu0 %v1051, 16
      %v1093 = vpop.permute.xlu0 %1092
      %1094 = vrot.lane.b32.xlu0 %v1052, 16
      %v1095 = vpop.permute.xlu0 %1094
      %1096 = vrot.lane.b32.xlu0 %v1053, 16
      %v1097 = vpop.permute.xlu0 %1096
      %1098 = vrot.lane.b32.xlu0 %v1054, 16
      %v1099 = vpop.permute.xlu0 %1098
      %1100 = vrot.lane.b32.xlu0 %v1055, 16
      %v1101 = vpop.permute.xlu0 %1100
      %1102 = vrot.lane.b32.xlu0 %v1056, 16
      %v1103 = vpop.permute.xlu0 %1102
      %1104 = vrot.lane.b32.xlu0 %v1057, 16
      %v1105 = vpop.permute.xlu0 %1104
      %vm1122 = vcmask 261248
      %1123 = vst.msk [vmem:[#allocation3] sm:$0xff] %vm1122, %v1075
      %1124 = vst.msk [vmem:[#allocation3 + $0x10] sm:$0xff] %vm1122, %v1077
      %1125 = vst.msk [vmem:[#allocation3 + $0x20] sm:$0xff] %vm1122, %v1079
      %1126 = vst.msk [vmem:[#allocation3 + $0x30] sm:$0xff] %vm1122, %v1081
      %1127 = vst.msk [vmem:[#allocation3 + $0x40] sm:$0xff] %vm1122, %v1083
      %1128 = vst.msk [vmem:[#allocation3 + $0x50] sm:$0xff] %vm1122, %v1085
      %1129 = vst.msk [vmem:[#allocation3 + $0x60] sm:$0xff] %vm1122, %v1087
      %1130 = vst.msk [vmem:[#allocation3 + $0x70] sm:$0xff] %vm1122, %v1089
      %1131 = vst.msk [vmem:[#allocation3 + $0x80] sm:$0xff] %vm1122, %v1091
      %1132 = vst.msk [vmem:[#allocation3 + $0x90] sm:$0xff] %vm1122, %v1093
      %1133 = vst.msk [vmem:[#allocation3 + $0xa0] sm:$0xff] %vm1122, %v1095
      %1134 = vst.msk [vmem:[#allocation3 + $0xb0] sm:$0xff] %vm1122, %v1097
      %1135 = vst.msk [vmem:[#allocation3 + $0xc0] sm:$0xff] %vm1122, %v1099
      %1136 = vst.msk [vmem:[#allocation3 + $0xd0] sm:$0xff] %vm1122, %v1101
      %1137 = vst.msk [vmem:[#allocation3 + $0xe0] sm:$0xff] %vm1122, %v1103
      %1138 = vst.msk [vmem:[#allocation3 + $0xf0] sm:$0xff] %vm1122, %v1105
      %v1139 = vld [vmem:[#allocation2 + $0x2] sm:$0xff]
      %v1140 = vld [vmem:[#allocation2 + $0xa] sm:$0xff]
      %v1141 = vld [vmem:[#allocation2 + $0x12] sm:$0xff]
      %v1142 = vld [vmem:[#allocation2 + $0x1a] sm:$0xff]
      %v1143 = vld [vmem:[#allocation2 + $0x22] sm:$0xff]
      %v1144 = vld [vmem:[#allocation2 + $0x2a] sm:$0xff]
      %v1145 = vld [vmem:[#allocation2 + $0x32] sm:$0xff]
      %v1146 = vld [vmem:[#allocation2 + $0x3a] sm:$0xff]
      %v1147 = vld [vmem:[#allocation2 + $0x42] sm:$0xff]
      %v1148 = vld [vmem:[#allocation2 + $0x4a] sm:$0xff]
      %v1149 = vld [vmem:[#allocation2 + $0x52] sm:$0xff]
      %v1150 = vld [vmem:[#allocation2 + $0x5a] sm:$0xff]
      %v1151 = vld [vmem:[#allocation2 + $0x62] sm:$0xff]
      %v1152 = vld [vmem:[#allocation2 + $0x6a] sm:$0xff]
      %v1153 = vld [vmem:[#allocation2 + $0x72] sm:$0xff]
      %v1154 = vld [vmem:[#allocation2 + $0x7a] sm:$0xff]
      %v1155 = vld [vmem:[#allocation2 + $0x82] sm:$0xff]
      %v1156 = vld [vmem:[#allocation2 + $0x8a] sm:$0xff]
      %v1157 = vld [vmem:[#allocation2 + $0x92] sm:$0xff]
      %v1158 = vld [vmem:[#allocation2 + $0x9a] sm:$0xff]
      %v1159 = vld [vmem:[#allocation2 + $0xa2] sm:$0xff]
      %v1160 = vld [vmem:[#allocation2 + $0xaa] sm:$0xff]
      %v1161 = vld [vmem:[#allocation2 + $0xb2] sm:$0xff]
      %v1162 = vld [vmem:[#allocation2 + $0xba] sm:$0xff]
      %v1163 = vld [vmem:[#allocation2 + $0xc2] sm:$0xff]
      %v1164 = vld [vmem:[#allocation2 + $0xca] sm:$0xff]
      %v1165 = vld [vmem:[#allocation2 + $0xd2] sm:$0xff]
      %v1166 = vld [vmem:[#allocation2 + $0xda] sm:$0xff]
      %v1167 = vld [vmem:[#allocation2 + $0xe2] sm:$0xff]
      %v1168 = vld [vmem:[#allocation2 + $0xea] sm:$0xff]
      %v1169 = vld [vmem:[#allocation2 + $0xf2] sm:$0xff]
      %v1170 = vld [vmem:[#allocation2 + $0xfa] sm:$0xff]
      %v1171 = vsel %vm882, %v1139, 0.0
      %v1172 = vsel %vm883, %v1140, 0.0
      %v1173 = vsel %vm884, %v1141, 0.0
      %v1174 = vsel %vm885, %v1142, 0.0
      %v1175 = vsel %vm886, %v1143, 0.0
      %v1176 = vsel %vm887, %v1144, 0.0
      %v1177 = vsel %vm888, %v1145, 0.0
      %v1178 = vsel %vm889, %v1146, 0.0
      %v1179 = vsel %vm890, %v1147, 0.0
      %v1180 = vsel %vm891, %v1148, 0.0
      %v1181 = vsel %vm892, %v1149, 0.0
      %v1182 = vsel %vm893, %v1150, 0.0
      %v1183 = vsel %vm894, %v1151, 0.0
      %v1184 = vsel %vm895, %v1152, 0.0
      %v1185 = vsel %vm896, %v1153, 0.0
      %v1186 = vsel %vm897, %v1154, 0.0
      %v1187 = vsel %vm898, %v1155, 0.0
      %v1188 = vsel %vm899, %v1156, 0.0
      %v1189 = vsel %vm900, %v1157, 0.0
      %v1190 = vsel %vm901, %v1158, 0.0
      %v1191 = vsel %vm902, %v1159, 0.0
      %v1192 = vsel %vm903, %v1160, 0.0
      %v1193 = vsel %vm904, %v1161, 0.0
      %v1194 = vsel %vm905, %v1162, 0.0
      %v1195 = vsel %vm906, %v1163, 0.0
      %v1196 = vsel %vm907, %v1164, 0.0
      %v1197 = vsel %vm908, %v1165, 0.0
      %v1198 = vsel %vm909, %v1166, 0.0
      %v1199 = vsel %vm910, %v1167, 0.0
      %v1200 = vsel %vm911, %v1168, 0.0
      %v1201 = vsel %vm912, %v1169, 0.0
      %v1202 = vsel %vm913, %v1170, 0.0
      %v1203 = vpack.c.bf16 %v1172, %v1171
      %v1204 = vpack.c.bf16 %v1174, %v1173
      %v1205 = vpack.c.bf16 %v1176, %v1175
      %v1206 = vpack.c.bf16 %v1178, %v1177
      %v1207 = vpack.c.bf16 %v1180, %v1179
      %v1208 = vpack.c.bf16 %v1182, %v1181
      %v1209 = vpack.c.bf16 %v1184, %v1183
      %v1210 = vpack.c.bf16 %v1186, %v1185
      %v1211 = vpack.c.bf16 %v1188, %v1187
      %v1212 = vpack.c.bf16 %v1190, %v1189
      %v1213 = vpack.c.bf16 %v1192, %v1191
      %v1214 = vpack.c.bf16 %v1194, %v1193
      %v1215 = vpack.c.bf16 %v1196, %v1195
      %v1216 = vpack.c.bf16 %v1198, %v1197
      %v1217 = vpack.c.bf16 %v1200, %v1199
      %v1218 = vpack.c.bf16 %v1202, %v1201
      %1235 = vrot.lane.b32.xlu0 %v1203, 32
      %v1236 = vpop.permute.xlu0 %1235
      %1237 = vrot.lane.b32.xlu0 %v1204, 32
      %v1238 = vpop.permute.xlu0 %1237
      %1239 = vrot.lane.b32.xlu0 %v1205, 32
      %v1240 = vpop.permute.xlu0 %1239
      %1241 = vrot.lane.b32.xlu0 %v1206, 32
      %v1242 = vpop.permute.xlu0 %1241
      %1243 = vrot.lane.b32.xlu0 %v1207, 32
      %v1244 = vpop.permute.xlu0 %1243
      %1245 = vrot.lane.b32.xlu0 %v1208, 32
      %v1246 = vpop.permute.xlu0 %1245
      %1247 = vrot.lane.b32.xlu0 %v1209, 32
      %v1248 = vpop.permute.xlu0 %1247
      %1249 = vrot.lane.b32.xlu0 %v1210, 32
      %v1250 = vpop.permute.xlu0 %1249
      %1251 = vrot.lane.b32.xlu0 %v1211, 32
      %v1252 = vpop.permute.xlu0 %1251
      %1253 = vrot.lane.b32.xlu0 %v1212, 32
      %v1254 = vpop.permute.xlu0 %1253
      %1255 = vrot.lane.b32.xlu0 %v1213, 32
      %v1256 = vpop.permute.xlu0 %1255
      %1257 = vrot.lane.b32.xlu0 %v1214, 32
      %v1258 = vpop.permute.xlu0 %1257
      %1259 = vrot.lane.b32.xlu0 %v1215, 32
      %v1260 = vpop.permute.xlu0 %1259
      %1261 = vrot.lane.b32.xlu0 %v1216, 32
      %v1262 = vpop.permute.xlu0 %1261
      %1263 = vrot.lane.b32.xlu0 %v1217, 32
      %v1264 = vpop.permute.xlu0 %1263
      %1265 = vrot.lane.b32.xlu0 %v1218, 32
      %v1266 = vpop.permute.xlu0 %1265
      %vm1283 = vcmask 392448
      %1284 = vst.msk [vmem:[#allocation3] sm:$0xff] %vm1283, %v1236
      %1285 = vst.msk [vmem:[#allocation3 + $0x10] sm:$0xff] %vm1283, %v1238
      %1286 = vst.msk [vmem:[#allocation3 + $0x20] sm:$0xff] %vm1283, %v1240
      %1287 = vst.msk [vmem:[#allocation3 + $0x30] sm:$0xff] %vm1283, %v1242
      %1288 = vst.msk [vmem:[#allocation3 + $0x40] sm:$0xff] %vm1283, %v1244
      %1289 = vst.msk [vmem:[#allocation3 + $0x50] sm:$0xff] %vm1283, %v1246
      %1290 = vst.msk [vmem:[#allocation3 + $0x60] sm:$0xff] %vm1283, %v1248
      %1291 = vst.msk [vmem:[#allocation3 + $0x70] sm:$0xff] %vm1283, %v1250
      %1292 = vst.msk [vmem:[#allocation3 + $0x80] sm:$0xff] %vm1283, %v1252
      %1293 = vst.msk [vmem:[#allocation3 + $0x90] sm:$0xff] %vm1283, %v1254
      %1294 = vst.msk [vmem:[#allocation3 + $0xa0] sm:$0xff] %vm1283, %v1256
      %1295 = vst.msk [vmem:[#allocation3 + $0xb0] sm:$0xff] %vm1283, %v1258
      %1296 = vst.msk [vmem:[#allocation3 + $0xc0] sm:$0xff] %vm1283, %v1260
      %1297 = vst.msk [vmem:[#allocation3 + $0xd0] sm:$0xff] %vm1283, %v1262
      %1298 = vst.msk [vmem:[#allocation3 + $0xe0] sm:$0xff] %vm1283, %v1264
      %1299 = vst.msk [vmem:[#allocation3 + $0xf0] sm:$0xff] %vm1283, %v1266
      %v1300 = vld [vmem:[#allocation2 + $0x10] sm:$0xff]
      %v1301 = vld [vmem:[#allocation2 + $0x18] sm:$0xff]
      %v1302 = vld [vmem:[#allocation2 + $0x20] sm:$0xff]
      %v1303 = vld [vmem:[#allocation2 + $0x28] sm:$0xff]
      %v1304 = vld [vmem:[#allocation2 + $0x30] sm:$0xff]
      %v1305 = vld [vmem:[#allocation2 + $0x38] sm:$0xff]
      %v1306 = vld [vmem:[#allocation2 + $0x40] sm:$0xff]
      %v1307 = vld [vmem:[#allocation2 + $0x48] sm:$0xff]
      %v1308 = vld [vmem:[#allocation2 + $0x50] sm:$0xff]
      %v1309 = vld [vmem:[#allocation2 + $0x58] sm:$0xff]
      %v1310 = vld [vmem:[#allocation2 + $0x60] sm:$0xff]
      %v1311 = vld [vmem:[#allocation2 + $0x68] sm:$0xff]
      %v1312 = vld [vmem:[#allocation2 + $0x70] sm:$0xff]
      %v1313 = vld [vmem:[#allocation2 + $0x78] sm:$0xff]
      %v1314 = vld [vmem:[#allocation2 + $0x80] sm:$0xff]
      %v1315 = vld [vmem:[#allocation2 + $0x88] sm:$0xff]
      %v1316 = vld [vmem:[#allocation2 + $0x90] sm:$0xff]
      %v1317 = vld [vmem:[#allocation2 + $0x98] sm:$0xff]
      %v1318 = vld [vmem:[#allocation2 + $0xa0] sm:$0xff]
      %v1319 = vld [vmem:[#allocation2 + $0xa8] sm:$0xff]
      %v1320 = vld [vmem:[#allocation2 + $0xb0] sm:$0xff]
      %v1321 = vld [vmem:[#allocation2 + $0xb8] sm:$0xff]
      %v1322 = vld [vmem:[#allocation2 + $0xc0] sm:$0xff]
      %v1323 = vld [vmem:[#allocation2 + $0xc8] sm:$0xff]
      %v1324 = vld [vmem:[#allocation2 + $0xd0] sm:$0xff]
      %v1325 = vld [vmem:[#allocation2 + $0xd8] sm:$0xff]
      %v1326 = vld [vmem:[#allocation2 + $0xe0] sm:$0xff]
      %v1327 = vld [vmem:[#allocation2 + $0xe8] sm:$0xff]
      %v1328 = vld [vmem:[#allocation2 + $0xf0] sm:$0xff]
      %v1329 = vld [vmem:[#allocation2 + $0xf8] sm:$0xff]
      %v1330 = vld [vmem:[#allocation2 + $0x100] sm:$0xff]
      %v1331 = vld [vmem:[#allocation2 + $0x108] sm:$0xff]
      %v1332 = vsel %vm850, %v1300, 0.0
      %v1333 = vsel %vm851, %v1301, 0.0
      %v1334 = vsel %vm852, %v1302, 0.0
      %v1335 = vsel %vm853, %v1303, 0.0
      %v1336 = vsel %vm854, %v1304, 0.0
      %v1337 = vsel %vm855, %v1305, 0.0
      %v1338 = vsel %vm856, %v1306, 0.0
      %v1339 = vsel %vm857, %v1307, 0.0
      %v1340 = vsel %vm858, %v1308, 0.0
      %v1341 = vsel %vm859, %v1309, 0.0
      %v1342 = vsel %vm860, %v1310, 0.0
      %v1343 = vsel %vm861, %v1311, 0.0
      %v1344 = vsel %vm862, %v1312, 0.0
      %v1345 = vsel %vm863, %v1313, 0.0
      %v1346 = vsel %vm864, %v1314, 0.0
      %v1347 = vsel %vm865, %v1315, 0.0
      %v1348 = vsel %vm866, %v1316, 0.0
      %v1349 = vsel %vm867, %v1317, 0.0
      %v1350 = vsel %vm868, %v1318, 0.0
      %v1351 = vsel %vm869, %v1319, 0.0
      %v1352 = vsel %vm870, %v1320, 0.0
      %v1353 = vsel %vm871, %v1321, 0.0
      %v1354 = vsel %vm872, %v1322, 0.0
      %v1355 = vsel %vm873, %v1323, 0.0
      %v1356 = vsel %vm874, %v1324, 0.0
      %v1357 = vsel %vm875, %v1325, 0.0
      %v1358 = vsel %vm876, %v1326, 0.0
      %v1359 = vsel %vm877, %v1327, 0.0
      %v1360 = vsel %vm878, %v1328, 0.0
      %v1361 = vsel %vm879, %v1329, 0.0
      %v1362 = vsel %vm880, %v1330, 0.0
      %v1363 = vsel %vm881, %v1331, 0.0
      %v1364 = vpack.c.bf16 %v1333, %v1332
      %v1365 = vpack.c.bf16 %v1335, %v1334
      %v1366 = vpack.c.bf16 %v1337, %v1336
      %v1367 = vpack.c.bf16 %v1339, %v1338
      %v1368 = vpack.c.bf16 %v1341, %v1340
      %v1369 = vpack.c.bf16 %v1343, %v1342
      %v1370 = vpack.c.bf16 %v1345, %v1344
      %v1371 = vpack.c.bf16 %v1347, %v1346
      %v1372 = vpack.c.bf16 %v1349, %v1348
      %v1373 = vpack.c.bf16 %v1351, %v1350
      %v1374 = vpack.c.bf16 %v1353, %v1352
      %v1375 = vpack.c.bf16 %v1355, %v1354
      %v1376 = vpack.c.bf16 %v1357, %v1356
      %v1377 = vpack.c.bf16 %v1359, %v1358
      %v1378 = vpack.c.bf16 %v1361, %v1360
      %v1379 = vpack.c.bf16 %v1363, %v1362
      %1396 = vrot.lane.b32.xlu0 %v1364, 48
      %v1397 = vpop.permute.xlu0 %1396
      %1398 = vrot.lane.b32.xlu0 %v1365, 48
      %v1399 = vpop.permute.xlu0 %1398
      %1400 = vrot.lane.b32.xlu0 %v1366, 48
      %v1401 = vpop.permute.xlu0 %1400
      %1402 = vrot.lane.b32.xlu0 %v1367, 48
      %v1403 = vpop.permute.xlu0 %1402
      %1404 = vrot.lane.b32.xlu0 %v1368, 48
      %v1405 = vpop.permute.xlu0 %1404
      %1406 = vrot.lane.b32.xlu0 %v1369, 48
      %v1407 = vpop.permute.xlu0 %1406
      %1408 = vrot.lane.b32.xlu0 %v1370, 48
      %v1409 = vpop.permute.xlu0 %1408
      %1410 = vrot.lane.b32.xlu0 %v1371, 48
      %v1411 = vpop.permute.xlu0 %1410
      %1412 = vrot.lane.b32.xlu0 %v1372, 48
      %v1413 = vpop.permute.xlu0 %1412
      %1414 = vrot.lane.b32.xlu0 %v1373, 48
      %v1415 = vpop.permute.xlu0 %1414
      %1416 = vrot.lane.b32.xlu0 %v1374, 48
      %v1417 = vpop.permute.xlu0 %1416
      %1418 = vrot.lane.b32.xlu0 %v1375, 48
      %v1419 = vpop.permute.xlu0 %1418
      %1420 = vrot.lane.b32.xlu0 %v1376, 48
      %v1421 = vpop.permute.xlu0 %1420
      %1422 = vrot.lane.b32.xlu0 %v1377, 48
      %v1423 = vpop.permute.xlu0 %1422
      %1424 = vrot.lane.b32.xlu0 %v1378, 48
      %v1425 = vpop.permute.xlu0 %1424
      %1426 = vrot.lane.b32.xlu0 %v1379, 48
      %v1427 = vpop.permute.xlu0 %1426
      %vm1444 = vcmask 523648
      %1445 = vst.msk [vmem:[#allocation3] sm:$0xff] %vm1444, %v1397
      %1446 = vst.msk [vmem:[#allocation3 + $0x10] sm:$0xff] %vm1444, %v1399
      %1447 = vst.msk [vmem:[#allocation3 + $0x20] sm:$0xff] %vm1444, %v1401
      %1448 = vst.msk [vmem:[#allocation3 + $0x30] sm:$0xff] %vm1444, %v1403
      %1449 = vst.msk [vmem:[#allocation3 + $0x40] sm:$0xff] %vm1444, %v1405
      %1450 = vst.msk [vmem:[#allocation3 + $0x50] sm:$0xff] %vm1444, %v1407
      %1451 = vst.msk [vmem:[#allocation3 + $0x60] sm:$0xff] %vm1444, %v1409
      %1452 = vst.msk [vmem:[#allocation3 + $0x70] sm:$0xff] %vm1444, %v1411
      %1453 = vst.msk [vmem:[#allocation3 + $0x80] sm:$0xff] %vm1444, %v1413
      %1454 = vst.msk [vmem:[#allocation3 + $0x90] sm:$0xff] %vm1444, %v1415
      %1455 = vst.msk [vmem:[#allocation3 + $0xa0] sm:$0xff] %vm1444, %v1417
      %1456 = vst.msk [vmem:[#allocation3 + $0xb0] sm:$0xff] %vm1444, %v1419
      %1457 = vst.msk [vmem:[#allocation3 + $0xc0] sm:$0xff] %vm1444, %v1421
      %1458 = vst.msk [vmem:[#allocation3 + $0xd0] sm:$0xff] %vm1444, %v1423
      %1459 = vst.msk [vmem:[#allocation3 + $0xe0] sm:$0xff] %vm1444, %v1425
      %1460 = vst.msk [vmem:[#allocation3 + $0xf0] sm:$0xff] %vm1444, %v1427
      %v1461 = vld [vmem:[#allocation2 + $0x11] sm:$0xff]
      %v1462 = vld [vmem:[#allocation2 + $0x19] sm:$0xff]
      %v1463 = vld [vmem:[#allocation2 + $0x21] sm:$0xff]
      %v1464 = vld [vmem:[#allocation2 + $0x29] sm:$0xff]
      %v1465 = vld [vmem:[#allocation2 + $0x31] sm:$0xff]
      %v1466 = vld [vmem:[#allocation2 + $0x39] sm:$0xff]
      %v1467 = vld [vmem:[#allocation2 + $0x41] sm:$0xff]
      %v1468 = vld [vmem:[#allocation2 + $0x49] sm:$0xff]
      %v1469 = vld [vmem:[#allocation2 + $0x51] sm:$0xff]
      %v1470 = vld [vmem:[#allocation2 + $0x59] sm:$0xff]
      %v1471 = vld [vmem:[#allocation2 + $0x61] sm:$0xff]
      %v1472 = vld [vmem:[#allocation2 + $0x69] sm:$0xff]
      %v1473 = vld [vmem:[#allocation2 + $0x71] sm:$0xff]
      %v1474 = vld [vmem:[#allocation2 + $0x79] sm:$0xff]
      %v1475 = vld [vmem:[#allocation2 + $0x81] sm:$0xff]
      %v1476 = vld [vmem:[#allocation2 + $0x89] sm:$0xff]
      %v1477 = vld [vmem:[#allocation2 + $0x91] sm:$0xff]
      %v1478 = vld [vmem:[#allocation2 + $0x99] sm:$0xff]
      %v1479 = vld [vmem:[#allocation2 + $0xa1] sm:$0xff]
      %v1480 = vld [vmem:[#allocation2 + $0xa9] sm:$0xff]
      %v1481 = vld [vmem:[#allocation2 + $0xb1] sm:$0xff]
      %v1482 = vld [vmem:[#allocation2 + $0xb9] sm:$0xff]
      %v1483 = vld [vmem:[#allocation2 + $0xc1] sm:$0xff]
      %v1484 = vld [vmem:[#allocation2 + $0xc9] sm:$0xff]
      %v1485 = vld [vmem:[#allocation2 + $0xd1] sm:$0xff]
      %v1486 = vld [vmem:[#allocation2 + $0xd9] sm:$0xff]
      %v1487 = vld [vmem:[#allocation2 + $0xe1] sm:$0xff]
      %v1488 = vld [vmem:[#allocation2 + $0xe9] sm:$0xff]
      %v1489 = vld [vmem:[#allocation2 + $0xf1] sm:$0xff]
      %v1490 = vld [vmem:[#allocation2 + $0xf9] sm:$0xff]
      %v1491 = vld [vmem:[#allocation2 + $0x101] sm:$0xff]
      %v1492 = vld [vmem:[#allocation2 + $0x109] sm:$0xff]
      %v1493 = vpack.c.bf16 %v1462, %v1461
      %v1494 = vpack.c.bf16 %v1464, %v1463
      %v1495 = vpack.c.bf16 %v1466, %v1465
      %v1496 = vpack.c.bf16 %v1468, %v1467
      %v1497 = vpack.c.bf16 %v1470, %v1469
      %v1498 = vpack.c.bf16 %v1472, %v1471
      %v1499 = vpack.c.bf16 %v1474, %v1473
      %v1500 = vpack.c.bf16 %v1476, %v1475
      %v1501 = vpack.c.bf16 %v1478, %v1477
      %v1502 = vpack.c.bf16 %v1480, %v1479
      %v1503 = vpack.c.bf16 %v1482, %v1481
      %v1504 = vpack.c.bf16 %v1484, %v1483
      %v1505 = vpack.c.bf16 %v1486, %v1485
      %v1506 = vpack.c.bf16 %v1488, %v1487
      %v1507 = vpack.c.bf16 %v1490, %v1489
      %v1508 = vpack.c.bf16 %v1492, %v1491
      %1525 = vrot.lane.b32.xlu0 %v1493, 64
      %v1526 = vpop.permute.xlu0 %1525
      %1527 = vrot.lane.b32.xlu0 %v1494, 64
      %v1528 = vpop.permute.xlu0 %1527
      %1529 = vrot.lane.b32.xlu0 %v1495, 64
      %v1530 = vpop.permute.xlu0 %1529
      %1531 = vrot.lane.b32.xlu0 %v1496, 64
      %v1532 = vpop.permute.xlu0 %1531
      %1533 = vrot.lane.b32.xlu0 %v1497, 64
      %v1534 = vpop.permute.xlu0 %1533
      %1535 = vrot.lane.b32.xlu0 %v1498, 64
      %v1536 = vpop.permute.xlu0 %1535
      %1537 = vrot.lane.b32.xlu0 %v1499, 64
      %v1538 = vpop.permute.xlu0 %1537
      %1539 = vrot.lane.b32.xlu0 %v1500, 64
      %v1540 = vpop.permute.xlu0 %1539
      %1541 = vrot.lane.b32.xlu0 %v1501, 64
      %v1542 = vpop.permute.xlu0 %1541
      %1543 = vrot.lane.b32.xlu0 %v1502, 64
      %v1544 = vpop.permute.xlu0 %1543
      %1545 = vrot.lane.b32.xlu0 %v1503, 64
      %v1546 = vpop.permute.xlu0 %1545
      %1547 = vrot.lane.b32.xlu0 %v1504, 64
      %v1548 = vpop.permute.xlu0 %1547
      %1549 = vrot.lane.b32.xlu0 %v1505, 64
      %v1550 = vpop.permute.xlu0 %1549
      %1551 = vrot.lane.b32.xlu0 %v1506, 64
      %v1552 = vpop.permute.xlu0 %1551
      %1553 = vrot.lane.b32.xlu0 %v1507, 64
      %v1554 = vpop.permute.xlu0 %1553
      %1555 = vrot.lane.b32.xlu0 %v1508, 64
      %v1556 = vpop.permute.xlu0 %1555
      %vm1573 = vcmask 654848
      %1574 = vst.msk [vmem:[#allocation3] sm:$0xff] %vm1573, %v1526
      %1575 = vst.msk [vmem:[#allocation3 + $0x10] sm:$0xff] %vm1573, %v1528
      %1576 = vst.msk [vmem:[#allocation3 + $0x20] sm:$0xff] %vm1573, %v1530
      %1577 = vst.msk [vmem:[#allocation3 + $0x30] sm:$0xff] %vm1573, %v1532
      %1578 = vst.msk [vmem:[#allocation3 + $0x40] sm:$0xff] %vm1573, %v1534
      %1579 = vst.msk [vmem:[#allocation3 + $0x50] sm:$0xff] %vm1573, %v1536
      %1580 = vst.msk [vmem:[#allocation3 + $0x60] sm:$0xff] %vm1573, %v1538
      %1581 = vst.msk [vmem:[#allocation3 + $0x70] sm:$0xff] %vm1573, %v1540
      %1582 = vst.msk [vmem:[#allocation3 + $0x80] sm:$0xff] %vm1573, %v1542
      %1583 = vst.msk [vmem:[#allocation3 + $0x90] sm:$0xff] %vm1573, %v1544
      %1584 = vst.msk [vmem:[#allocation3 + $0xa0] sm:$0xff] %vm1573, %v1546
      %1585 = vst.msk [vmem:[#allocation3 + $0xb0] sm:$0xff] %vm1573, %v1548
      %1586 = vst.msk [vmem:[#allocation3 + $0xc0] sm:$0xff] %vm1573, %v1550
      %1587 = vst.msk [vmem:[#allocation3 + $0xd0] sm:$0xff] %vm1573, %v1552
      %1588 = vst.msk [vmem:[#allocation3 + $0xe0] sm:$0xff] %vm1573, %v1554
      %1589 = vst.msk [vmem:[#allocation3 + $0xf0] sm:$0xff] %vm1573, %v1556
      %v1590 = vld [vmem:[#allocation2 + $0x12] sm:$0xff]
      %v1591 = vld [vmem:[#allocation2 + $0x1a] sm:$0xff]
      %v1592 = vld [vmem:[#allocation2 + $0x22] sm:$0xff]
      %v1593 = vld [vmem:[#allocation2 + $0x2a] sm:$0xff]
      %v1594 = vld [vmem:[#allocation2 + $0x32] sm:$0xff]
      %v1595 = vld [vmem:[#allocation2 + $0x3a] sm:$0xff]
      %v1596 = vld [vmem:[#allocation2 + $0x42] sm:$0xff]
      %v1597 = vld [vmem:[#allocation2 + $0x4a] sm:$0xff]
      %v1598 = vld [vmem:[#allocation2 + $0x52] sm:$0xff]
      %v1599 = vld [vmem:[#allocation2 + $0x5a] sm:$0xff]
      %v1600 = vld [vmem:[#allocation2 + $0x62] sm:$0xff]
      %v1601 = vld [vmem:[#allocation2 + $0x6a] sm:$0xff]
      %v1602 = vld [vmem:[#allocation2 + $0x72] sm:$0xff]
      %v1603 = vld [vmem:[#allocation2 + $0x7a] sm:$0xff]
      %v1604 = vld [vmem:[#allocation2 + $0x82] sm:$0xff]
      %v1605 = vld [vmem:[#allocation2 + $0x8a] sm:$0xff]
      %v1606 = vld [vmem:[#allocation2 + $0x92] sm:$0xff]
      %v1607 = vld [vmem:[#allocation2 + $0x9a] sm:$0xff]
      %v1608 = vld [vmem:[#allocation2 + $0xa2] sm:$0xff]
      %v1609 = vld [vmem:[#allocation2 + $0xaa] sm:$0xff]
      %v1610 = vld [vmem:[#allocation2 + $0xb2] sm:$0xff]
      %v1611 = vld [vmem:[#allocation2 + $0xba] sm:$0xff]
      %v1612 = vld [vmem:[#allocation2 + $0xc2] sm:$0xff]
      %v1613 = vld [vmem:[#allocation2 + $0xca] sm:$0xff]
      %v1614 = vld [vmem:[#allocation2 + $0xd2] sm:$0xff]
      %v1615 = vld [vmem:[#allocation2 + $0xda] sm:$0xff]
      %v1616 = vld [vmem:[#allocation2 + $0xe2] sm:$0xff]
      %v1617 = vld [vmem:[#allocation2 + $0xea] sm:$0xff]
      %v1618 = vld [vmem:[#allocation2 + $0xf2] sm:$0xff]
      %v1619 = vld [vmem:[#allocation2 + $0xfa] sm:$0xff]
      %v1620 = vld [vmem:[#allocation2 + $0x102] sm:$0xff]
      %v1621 = vld [vmem:[#allocation2 + $0x10a] sm:$0xff]
      %v1622 = vsel %vm882, %v1590, 0.0
      %v1623 = vsel %vm883, %v1591, 0.0
      %v1624 = vsel %vm884, %v1592, 0.0
      %v1625 = vsel %vm885, %v1593, 0.0
      %v1626 = vsel %vm886, %v1594, 0.0
      %v1627 = vsel %vm887, %v1595, 0.0
      %v1628 = vsel %vm888, %v1596, 0.0
      %v1629 = vsel %vm889, %v1597, 0.0
      %v1630 = vsel %vm890, %v1598, 0.0
      %v1631 = vsel %vm891, %v1599, 0.0
      %v1632 = vsel %vm892, %v1600, 0.0
      %v1633 = vsel %vm893, %v1601, 0.0
      %v1634 = vsel %vm894, %v1602, 0.0
      %v1635 = vsel %vm895, %v1603, 0.0
      %v1636 = vsel %vm896, %v1604, 0.0
      %v1637 = vsel %vm897, %v1605, 0.0
      %v1638 = vsel %vm898, %v1606, 0.0
      %v1639 = vsel %vm899, %v1607, 0.0
      %v1640 = vsel %vm900, %v1608, 0.0
      %v1641 = vsel %vm901, %v1609, 0.0
      %v1642 = vsel %vm902, %v1610, 0.0
      %v1643 = vsel %vm903, %v1611, 0.0
      %v1644 = vsel %vm904, %v1612, 0.0
      %v1645 = vsel %vm905, %v1613, 0.0
      %v1646 = vsel %vm906, %v1614, 0.0
      %v1647 = vsel %vm907, %v1615, 0.0
      %v1648 = vsel %vm908, %v1616, 0.0
      %v1649 = vsel %vm909, %v1617, 0.0
      %v1650 = vsel %vm910, %v1618, 0.0
      %v1651 = vsel %vm911, %v1619, 0.0
      %v1652 = vsel %vm912, %v1620, 0.0
      %v1653 = vsel %vm913, %v1621, 0.0
      %v1654 = vpack.c.bf16 %v1623, %v1622
      %v1655 = vpack.c.bf16 %v1625, %v1624
      %v1656 = vpack.c.bf16 %v1627, %v1626
      %v1657 = vpack.c.bf16 %v1629, %v1628
      %v1658 = vpack.c.bf16 %v1631, %v1630
      %v1659 = vpack.c.bf16 %v1633, %v1632
      %v1660 = vpack.c.bf16 %v1635, %v1634
      %v1661 = vpack.c.bf16 %v1637, %v1636
      %v1662 = vpack.c.bf16 %v1639, %v1638
      %v1663 = vpack.c.bf16 %v1641, %v1640
      %v1664 = vpack.c.bf16 %v1643, %v1642
      %v1665 = vpack.c.bf16 %v1645, %v1644
      %v1666 = vpack.c.bf16 %v1647, %v1646
      %v1667 = vpack.c.bf16 %v1649, %v1648
      %v1668 = vpack.c.bf16 %v1651, %v1650
      %v1669 = vpack.c.bf16 %v1653, %v1652
      %1686 = vrot.lane.b32.xlu0 %v1654, 80
      %v1687 = vpop.permute.xlu0 %1686
      %1688 = vrot.lane.b32.xlu0 %v1655, 80
      %v1689 = vpop.permute.xlu0 %1688
      %1690 = vrot.lane.b32.xlu0 %v1656, 80
      %v1691 = vpop.permute.xlu0 %1690
      %1692 = vrot.lane.b32.xlu0 %v1657, 80
      %v1693 = vpop.permute.xlu0 %1692
      %1694 = vrot.lane.b32.xlu0 %v1658, 80
      %v1695 = vpop.permute.xlu0 %1694
      %1696 = vrot.lane.b32.xlu0 %v1659, 80
      %v1697 = vpop.permute.xlu0 %1696
      %1698 = vrot.lane.b32.xlu0 %v1660, 80
      %v1699 = vpop.permute.xlu0 %1698
      %1700 = vrot.lane.b32.xlu0 %v1661, 80
      %v1701 = vpop.permute.xlu0 %1700
      %1702 = vrot.lane.b32.xlu0 %v1662, 80
      %v1703 = vpop.permute.xlu0 %1702
      %1704 = vrot.lane.b32.xlu0 %v1663, 80
      %v1705 = vpop.permute.xlu0 %1704
      %1706 = vrot.lane.b32.xlu0 %v1664, 80
      %v1707 = vpop.permute.xlu0 %1706
      %1708 = vrot.lane.b32.xlu0 %v1665, 80
      %v1709 = vpop.permute.xlu0 %1708
      %1710 = vrot.lane.b32.xlu0 %v1666, 80
      %v1711 = vpop.permute.xlu0 %1710
      %1712 = vrot.lane.b32.xlu0 %v1667, 80
      %v1713 = vpop.permute.xlu0 %1712
      %1714 = vrot.lane.b32.xlu0 %v1668, 80
      %v1715 = vpop.permute.xlu0 %1714
      %1716 = vrot.lane.b32.xlu0 %v1669, 80
      %v1717 = vpop.permute.xlu0 %1716
      %vm1734 = vcmask 786048
      %1735 = vst.msk [vmem:[#allocation3] sm:$0xff] %vm1734, %v1687
      %1736 = vst.msk [vmem:[#allocation3 + $0x10] sm:$0xff] %vm1734, %v1689
      %1737 = vst.msk [vmem:[#allocation3 + $0x20] sm:$0xff] %vm1734, %v1691
      %1738 = vst.msk [vmem:[#allocation3 + $0x30] sm:$0xff] %vm1734, %v1693
      %1739 = vst.msk [vmem:[#allocation3 + $0x40] sm:$0xff] %vm1734, %v1695
      %1740 = vst.msk [vmem:[#allocation3 + $0x50] sm:$0xff] %vm1734, %v1697
      %1741 = vst.msk [vmem:[#allocation3 + $0x60] sm:$0xff] %vm1734, %v1699
      %1742 = vst.msk [vmem:[#allocation3 + $0x70] sm:$0xff] %vm1734, %v1701
      %1743 = vst.msk [vmem:[#allocation3 + $0x80] sm:$0xff] %vm1734, %v1703
      %1744 = vst.msk [vmem:[#allocation3 + $0x90] sm:$0xff] %vm1734, %v1705
      %1745 = vst.msk [vmem:[#allocation3 + $0xa0] sm:$0xff] %vm1734, %v1707
      %1746 = vst.msk [vmem:[#allocation3 + $0xb0] sm:$0xff] %vm1734, %v1709
      %1747 = vst.msk [vmem:[#allocation3 + $0xc0] sm:$0xff] %vm1734, %v1711
      %1748 = vst.msk [vmem:[#allocation3 + $0xd0] sm:$0xff] %vm1734, %v1713
      %1749 = vst.msk [vmem:[#allocation3 + $0xe0] sm:$0xff] %vm1734, %v1715
      %1750 = vst.msk [vmem:[#allocation3 + $0xf0] sm:$0xff] %vm1734, %v1717
      %v1751 = vld [vmem:[#allocation2 + $0x20] sm:$0xff]
      %v1752 = vld [vmem:[#allocation2 + $0x28] sm:$0xff]
      %v1753 = vld [vmem:[#allocation2 + $0x30] sm:$0xff]
      %v1754 = vld [vmem:[#allocation2 + $0x38] sm:$0xff]
      %v1755 = vld [vmem:[#allocation2 + $0x40] sm:$0xff]
      %v1756 = vld [vmem:[#allocation2 + $0x48] sm:$0xff]
      %v1757 = vld [vmem:[#allocation2 + $0x50] sm:$0xff]
      %v1758 = vld [vmem:[#allocation2 + $0x58] sm:$0xff]
      %v1759 = vld [vmem:[#allocation2 + $0x60] sm:$0xff]
      %v1760 = vld [vmem:[#allocation2 + $0x68] sm:$0xff]
      %v1761 = vld [vmem:[#allocation2 + $0x70] sm:$0xff]
      %v1762 = vld [vmem:[#allocation2 + $0x78] sm:$0xff]
      %v1763 = vld [vmem:[#allocation2 + $0x80] sm:$0xff]
      %v1764 = vld [vmem:[#allocation2 + $0x88] sm:$0xff]
      %v1765 = vld [vmem:[#allocation2 + $0x90] sm:$0xff]
      %v1766 = vld [vmem:[#allocation2 + $0x98] sm:$0xff]
      %v1767 = vld [vmem:[#allocation2 + $0xa0] sm:$0xff]
      %v1768 = vld [vmem:[#allocation2 + $0xa8] sm:$0xff]
      %v1769 = vld [vmem:[#allocation2 + $0xb0] sm:$0xff]
      %v1770 = vld [vmem:[#allocation2 + $0xb8] sm:$0xff]
      %v1771 = vld [vmem:[#allocation2 + $0xc0] sm:$0xff]
      %v1772 = vld [vmem:[#allocation2 + $0xc8] sm:$0xff]
      %v1773 = vld [vmem:[#allocation2 + $0xd0] sm:$0xff]
      %v1774 = vld [vmem:[#allocation2 + $0xd8] sm:$0xff]
      %v1775 = vld [vmem:[#allocation2 + $0xe0] sm:$0xff]
      %v1776 = vld [vmem:[#allocation2 + $0xe8] sm:$0xff]
      %v1777 = vld [vmem:[#allocation2 + $0xf0] sm:$0xff]
      %v1778 = vld [vmem:[#allocation2 + $0xf8] sm:$0xff]
      %v1779 = vld [vmem:[#allocation2 + $0x100] sm:$0xff]
      %v1780 = vld [vmem:[#allocation2 + $0x108] sm:$0xff]
      %v1781 = vld [vmem:[#allocation2 + $0x110] sm:$0xff]
      %v1782 = vld [vmem:[#allocation2 + $0x118] sm:$0xff]
      %v1783 = vsel %vm850, %v1751, 0.0
      %v1784 = vsel %vm851, %v1752, 0.0
      %v1785 = vsel %vm852, %v1753, 0.0
      %v1786 = vsel %vm853, %v1754, 0.0
      %v1787 = vsel %vm854, %v1755, 0.0
      %v1788 = vsel %vm855, %v1756, 0.0
      %v1789 = vsel %vm856, %v1757, 0.0
      %v1790 = vsel %vm857, %v1758, 0.0
      %v1791 = vsel %vm858, %v1759, 0.0
      %v1792 = vsel %vm859, %v1760, 0.0
      %v1793 = vsel %vm860, %v1761, 0.0
      %v1794 = vsel %vm861, %v1762, 0.0
      %v1795 = vsel %vm862, %v1763, 0.0
      %v1796 = vsel %vm863, %v1764, 0.0
      %v1797 = vsel %vm864, %v1765, 0.0
      %v1798 = vsel %vm865, %v1766, 0.0
      %v1799 = vsel %vm866, %v1767, 0.0
      %v1800 = vsel %vm867, %v1768, 0.0
      %v1801 = vsel %vm868, %v1769, 0.0
      %v1802 = vsel %vm869, %v1770, 0.0
      %v1803 = vsel %vm870, %v1771, 0.0
      %v1804 = vsel %vm871, %v1772, 0.0
      %v1805 = vsel %vm872, %v1773, 0.0
      %v1806 = vsel %vm873, %v1774, 0.0
      %v1807 = vsel %vm874, %v1775, 0.0
      %v1808 = vsel %vm875, %v1776, 0.0
      %v1809 = vsel %vm876, %v1777, 0.0
      %v1810 = vsel %vm877, %v1778, 0.0
      %v1811 = vsel %vm878, %v1779, 0.0
      %v1812 = vsel %vm879, %v1780, 0.0
      %v1813 = vsel %vm880, %v1781, 0.0
      %v1814 = vsel %vm881, %v1782, 0.0
      %v1815 = vpack.c.bf16 %v1784, %v1783
      %v1816 = vpack.c.bf16 %v1786, %v1785
      %v1817 = vpack.c.bf16 %v1788, %v1787
      %v1818 = vpack.c.bf16 %v1790, %v1789
      %v1819 = vpack.c.bf16 %v1792, %v1791
      %v1820 = vpack.c.bf16 %v1794, %v1793
      %v1821 = vpack.c.bf16 %v1796, %v1795
      %v1822 = vpack.c.bf16 %v1798, %v1797
      %v1823 = vpack.c.bf16 %v1800, %v1799
      %v1824 = vpack.c.bf16 %v1802, %v1801
      %v1825 = vpack.c.bf16 %v1804, %v1803
      %v1826 = vpack.c.bf16 %v1806, %v1805
      %v1827 = vpack.c.bf16 %v1808, %v1807
      %v1828 = vpack.c.bf16 %v1810, %v1809
      %v1829 = vpack.c.bf16 %v1812, %v1811
      %v1830 = vpack.c.bf16 %v1814, %v1813
      %1847 = vrot.lane.b32.xlu0 %v1815, 96
      %v1848 = vpop.permute.xlu0 %1847
      %1849 = vrot.lane.b32.xlu0 %v1816, 96
      %v1850 = vpop.permute.xlu0 %1849
      %1851 = vrot.lane.b32.xlu0 %v1817, 96
      %v1852 = vpop.permute.xlu0 %1851
      %1853 = vrot.lane.b32.xlu0 %v1818, 96
      %v1854 = vpop.permute.xlu0 %1853
      %1855 = vrot.lane.b32.xlu0 %v1819, 96
      %v1856 = vpop.permute.xlu0 %1855
      %1857 = vrot.lane.b32.xlu0 %v1820, 96
      %v1858 = vpop.permute.xlu0 %1857
      %1859 = vrot.lane.b32.xlu0 %v1821, 96
      %v1860 = vpop.permute.xlu0 %1859
      %1861 = vrot.lane.b32.xlu0 %v1822, 96
      %v1862 = vpop.permute.xlu0 %1861
      %1863 = vrot.lane.b32.xlu0 %v1823, 96
      %v1864 = vpop.permute.xlu0 %1863
      %1865 = vrot.lane.b32.xlu0 %v1824, 96
      %v1866 = vpop.permute.xlu0 %1865
      %1867 = vrot.lane.b32.xlu0 %v1825, 96
      %v1868 = vpop.permute.xlu0 %1867
      %1869 = vrot.lane.b32.xlu0 %v1826, 96
      %v1870 = vpop.permute.xlu0 %1869
      %1871 = vrot.lane.b32.xlu0 %v1827, 96
      %v1872 = vpop.permute.xlu0 %1871
      %1873 = vrot.lane.b32.xlu0 %v1828, 96
      %v1874 = vpop.permute.xlu0 %1873
      %1875 = vrot.lane.b32.xlu0 %v1829, 96
      %v1876 = vpop.permute.xlu0 %1875
      %1877 = vrot.lane.b32.xlu0 %v1830, 96
      %v1878 = vpop.permute.xlu0 %1877
      %vm1895 = vcmask 917248
      %1896 = vst.msk [vmem:[#allocation3] sm:$0xff] %vm1895, %v1848
      %1897 = vst.msk [vmem:[#allocation3 + $0x10] sm:$0xff] %vm1895, %v1850
      %1898 = vst.msk [vmem:[#allocation3 + $0x20] sm:$0xff] %vm1895, %v1852
      %1899 = vst.msk [vmem:[#allocation3 + $0x30] sm:$0xff] %vm1895, %v1854
      %1900 = vst.msk [vmem:[#allocation3 + $0x40] sm:$0xff] %vm1895, %v1856
      %1901 = vst.msk [vmem:[#allocation3 + $0x50] sm:$0xff] %vm1895, %v1858
      %1902 = vst.msk [vmem:[#allocation3 + $0x60] sm:$0xff] %vm1895, %v1860
      %1903 = vst.msk [vmem:[#allocation3 + $0x70] sm:$0xff] %vm1895, %v1862
      %1904 = vst.msk [vmem:[#allocation3 + $0x80] sm:$0xff] %vm1895, %v1864
      %1905 = vst.msk [vmem:[#allocation3 + $0x90] sm:$0xff] %vm1895, %v1866
      %1906 = vst.msk [vmem:[#allocation3 + $0xa0] sm:$0xff] %vm1895, %v1868
      %1907 = vst.msk [vmem:[#allocation3 + $0xb0] sm:$0xff] %vm1895, %v1870
      %1908 = vst.msk [vmem:[#allocation3 + $0xc0] sm:$0xff] %vm1895, %v1872
      %1909 = vst.msk [vmem:[#allocation3 + $0xd0] sm:$0xff] %vm1895, %v1874
      %1910 = vst.msk [vmem:[#allocation3 + $0xe0] sm:$0xff] %vm1895, %v1876
      %1911 = vst.msk [vmem:[#allocation3 + $0xf0] sm:$0xff] %vm1895, %v1878
      %v1912 = vld [vmem:[#allocation2 + $0x21] sm:$0xff]
      %v1913 = vld [vmem:[#allocation2 + $0x29] sm:$0xff]
      %v1914 = vld [vmem:[#allocation2 + $0x31] sm:$0xff]
      %v1915 = vld [vmem:[#allocation2 + $0x39] sm:$0xff]
      %v1916 = vld [vmem:[#allocation2 + $0x41] sm:$0xff]
      %v1917 = vld [vmem:[#allocation2 + $0x49] sm:$0xff]
      %v1918 = vld [vmem:[#allocation2 + $0x51] sm:$0xff]
      %v1919 = vld [vmem:[#allocation2 + $0x59] sm:$0xff]
      %v1920 = vld [vmem:[#allocation2 + $0x61] sm:$0xff]
      %v1921 = vld [vmem:[#allocation2 + $0x69] sm:$0xff]
      %v1922 = vld [vmem:[#allocation2 + $0x71] sm:$0xff]
      %v1923 = vld [vmem:[#allocation2 + $0x79] sm:$0xff]
      %v1924 = vld [vmem:[#allocation2 + $0x81] sm:$0xff]
      %v1925 = vld [vmem:[#allocation2 + $0x89] sm:$0xff]
      %v1926 = vld [vmem:[#allocation2 + $0x91] sm:$0xff]
      %v1927 = vld [vmem:[#allocation2 + $0x99] sm:$0xff]
      %v1928 = vld [vmem:[#allocation2 + $0xa1] sm:$0xff]
      %v1929 = vld [vmem:[#allocation2 + $0xa9] sm:$0xff]
      %v1930 = vld [vmem:[#allocation2 + $0xb1] sm:$0xff]
      %v1931 = vld [vmem:[#allocation2 + $0xb9] sm:$0xff]
      %v1932 = vld [vmem:[#allocation2 + $0xc1] sm:$0xff]
      %v1933 = vld [vmem:[#allocation2 + $0xc9] sm:$0xff]
      %v1934 = vld [vmem:[#allocation2 + $0xd1] sm:$0xff]
      %v1935 = vld [vmem:[#allocation2 + $0xd9] sm:$0xff]
      %v1936 = vld [vmem:[#allocation2 + $0xe1] sm:$0xff]
      %v1937 = vld [vmem:[#allocation2 + $0xe9] sm:$0xff]
      %v1938 = vld [vmem:[#allocation2 + $0xf1] sm:$0xff]
      %v1939 = vld [vmem:[#allocation2 + $0xf9] sm:$0xff]
      %v1940 = vld [vmem:[#allocation2 + $0x101] sm:$0xff]
      %v1941 = vld [vmem:[#allocation2 + $0x109] sm:$0xff]
      %v1942 = vld [vmem:[#allocation2 + $0x111] sm:$0xff]
      %v1943 = vld [vmem:[#allocation2 + $0x119] sm:$0xff]
      %v1944 = vpack.c.bf16 %v1913, %v1912
      %v1945 = vpack.c.bf16 %v1915, %v1914
      %v1946 = vpack.c.bf16 %v1917, %v1916
      %v1947 = vpack.c.bf16 %v1919, %v1918
      %v1948 = vpack.c.bf16 %v1921, %v1920
      %v1949 = vpack.c.bf16 %v1923, %v1922
      %v1950 = vpack.c.bf16 %v1925, %v1924
      %v1951 = vpack.c.bf16 %v1927, %v1926
      %v1952 = vpack.c.bf16 %v1929, %v1928
      %v1953 = vpack.c.bf16 %v1931, %v1930
      %v1954 = vpack.c.bf16 %v1933, %v1932
      %v1955 = vpack.c.bf16 %v1935, %v1934
      %v1956 = vpack.c.bf16 %v1937, %v1936
      %v1957 = vpack.c.bf16 %v1939, %v1938
      %v1958 = vpack.c.bf16 %v1941, %v1940
      %v1959 = vpack.c.bf16 %v1943, %v1942
      %1976 = vrot.lane.b32.xlu0 %v1944, 112
      %v1977 = vpop.permute.xlu0 %1976
      %1978 = vrot.lane.b32.xlu0 %v1945, 112
      %v1979 = vpop.permute.xlu0 %1978
      %1980 = vrot.lane.b32.xlu0 %v1946, 112
      %v1981 = vpop.permute.xlu0 %1980
      %1982 = vrot.lane.b32.xlu0 %v1947, 112
      %v1983 = vpop.permute.xlu0 %1982
      %1984 = vrot.lane.b32.xlu0 %v1948, 112
      %v1985 = vpop.permute.xlu0 %1984
      %1986 = vrot.lane.b32.xlu0 %v1949, 112
      %v1987 = vpop.permute.xlu0 %1986
      %1988 = vrot.lane.b32.xlu0 %v1950, 112
      %v1989 = vpop.permute.xlu0 %1988
      %1990 = vrot.lane.b32.xlu0 %v1951, 112
      %v1991 = vpop.permute.xlu0 %1990
      %1992 = vrot.lane.b32.xlu0 %v1952, 112
      %v1993 = vpop.permute.xlu0 %1992
      %1994 = vrot.lane.b32.xlu0 %v1953, 112
      %v1995 = vpop.permute.xlu0 %1994
      %1996 = vrot.lane.b32.xlu0 %v1954, 112
      %v1997 = vpop.permute.xlu0 %1996
      %1998 = vrot.lane.b32.xlu0 %v1955, 112
      %v1999 = vpop.permute.xlu0 %1998
      %2000 = vrot.lane.b32.xlu0 %v1956, 112
      %v2001 = vpop.permute.xlu0 %2000
      %2002 = vrot.lane.b32.xlu0 %v1957, 112
      %v2003 = vpop.permute.xlu0 %2002
      %2004 = vrot.lane.b32.xlu0 %v1958, 112
      %v2005 = vpop.permute.xlu0 %2004
      %2006 = vrot.lane.b32.xlu0 %v1959, 112
      %v2007 = vpop.permute.xlu0 %2006
      %vm2024 = vcmask 1048448
      %2025 = vst.msk [vmem:[#allocation3] sm:$0xff] %vm2024, %v1977
      %2026 = vst.msk [vmem:[#allocation3 + $0x10] sm:$0xff] %vm2024, %v1979
      %2027 = vst.msk [vmem:[#allocation3 + $0x20] sm:$0xff] %vm2024, %v1981
      %2028 = vst.msk [vmem:[#allocation3 + $0x30] sm:$0xff] %vm2024, %v1983
      %2029 = vst.msk [vmem:[#allocation3 + $0x40] sm:$0xff] %vm2024, %v1985
      %2030 = vst.msk [vmem:[#allocation3 + $0x50] sm:$0xff] %vm2024, %v1987
      %2031 = vst.msk [vmem:[#allocation3 + $0x60] sm:$0xff] %vm2024, %v1989
      %2032 = vst.msk [vmem:[#allocation3 + $0x70] sm:$0xff] %vm2024, %v1991
      %2033 = vst.msk [vmem:[#allocation3 + $0x80] sm:$0xff] %vm2024, %v1993
      %2034 = vst.msk [vmem:[#allocation3 + $0x90] sm:$0xff] %vm2024, %v1995
      %2035 = vst.msk [vmem:[#allocation3 + $0xa0] sm:$0xff] %vm2024, %v1997
      %2036 = vst.msk [vmem:[#allocation3 + $0xb0] sm:$0xff] %vm2024, %v1999
      %2037 = vst.msk [vmem:[#allocation3 + $0xc0] sm:$0xff] %vm2024, %v2001
      %2038 = vst.msk [vmem:[#allocation3 + $0xd0] sm:$0xff] %vm2024, %v2003
      %2039 = vst.msk [vmem:[#allocation3 + $0xe0] sm:$0xff] %vm2024, %v2005
      %2040 = vst.msk [vmem:[#allocation3 + $0xf0] sm:$0xff] %vm2024, %v2007
      %v2041 = vld [vmem:[#allocation2 + $0x22] sm:$0xff]
      %v2042 = vld [vmem:[#allocation2 + $0x2a] sm:$0xff]
      %v2043 = vld [vmem:[#allocation2 + $0x32] sm:$0xff]
      %v2044 = vld [vmem:[#allocation2 + $0x3a] sm:$0xff]
      %v2045 = vld [vmem:[#allocation2 + $0x42] sm:$0xff]
      %v2046 = vld [vmem:[#allocation2 + $0x4a] sm:$0xff]
      %v2047 = vld [vmem:[#allocation2 + $0x52] sm:$0xff]
      %v2048 = vld [vmem:[#allocation2 + $0x5a] sm:$0xff]
      %v2049 = vld [vmem:[#allocation2 + $0x62] sm:$0xff]
      %v2050 = vld [vmem:[#allocation2 + $0x6a] sm:$0xff]
      %v2051 = vld [vmem:[#allocation2 + $0x72] sm:$0xff]
      %v2052 = vld [vmem:[#allocation2 + $0x7a] sm:$0xff]
      %v2053 = vld [vmem:[#allocation2 + $0x82] sm:$0xff]
      %v2054 = vld [vmem:[#allocation2 + $0x8a] sm:$0xff]
      %v2055 = vld [vmem:[#allocation2 + $0x92] sm:$0xff]
      %v2056 = vld [vmem:[#allocation2 + $0x9a] sm:$0xff]
      %v2057 = vld [vmem:[#allocation2 + $0xa2] sm:$0xff]
      %v2058 = vld [vmem:[#allocation2 + $0xaa] sm:$0xff]
      %v2059 = vld [vmem:[#allocation2 + $0xb2] sm:$0xff]
      %v2060 = vld [vmem:[#allocation2 + $0xba] sm:$0xff]
      %v2061 = vld [vmem:[#allocation2 + $0xc2] sm:$0xff]
      %v2062 = vld [vmem:[#allocation2 + $0xca] sm:$0xff]
      %v2063 = vld [vmem:[#allocation2 + $0xd2] sm:$0xff]
      %v2064 = vld [vmem:[#allocation2 + $0xda] sm:$0xff]
      %v2065 = vld [vmem:[#allocation2 + $0xe2] sm:$0xff]
      %v2066 = vld [vmem:[#allocation2 + $0xea] sm:$0xff]
      %v2067 = vld [vmem:[#allocation2 + $0xf2] sm:$0xff]
      %v2068 = vld [vmem:[#allocation2 + $0xfa] sm:$0xff]
      %v2069 = vld [vmem:[#allocation2 + $0x102] sm:$0xff]
      %v2070 = vld [vmem:[#allocation2 + $0x10a] sm:$0xff]
      %v2071 = vld [vmem:[#allocation2 + $0x112] sm:$0xff]
      %v2072 = vld [vmem:[#allocation2 + $0x11a] sm:$0xff]
      %v2073 = vsel %vm882, %v2041, 0.0
      %v2074 = vsel %vm883, %v2042, 0.0
      %v2075 = vsel %vm884, %v2043, 0.0
      %v2076 = vsel %vm885, %v2044, 0.0
      %v2077 = vsel %vm886, %v2045, 0.0
      %v2078 = vsel %vm887, %v2046, 0.0
      %v2079 = vsel %vm888, %v2047, 0.0
      %v2080 = vsel %vm889, %v2048, 0.0
      %v2081 = vsel %vm890, %v2049, 0.0
      %v2082 = vsel %vm891, %v2050, 0.0
      %v2083 = vsel %vm892, %v2051, 0.0
      %v2084 = vsel %vm893, %v2052, 0.0
      %v2085 = vsel %vm894, %v2053, 0.0
      %v2086 = vsel %vm895, %v2054, 0.0
      %v2087 = vsel %vm896, %v2055, 0.0
      %v2088 = vsel %vm897, %v2056, 0.0
      %v2089 = vsel %vm898, %v2057, 0.0
      %v2090 = vsel %vm899, %v2058, 0.0
      %v2091 = vsel %vm900, %v2059, 0.0
      %v2092 = vsel %vm901, %v2060, 0.0
      %v2093 = vsel %vm902, %v2061, 0.0
      %v2094 = vsel %vm903, %v2062, 0.0
      %v2095 = vsel %vm904, %v2063, 0.0
      %v2096 = vsel %vm905, %v2064, 0.0
      %v2097 = vsel %vm906, %v2065, 0.0
      %v2098 = vsel %vm907, %v2066, 0.0
      %v2099 = vsel %vm908, %v2067, 0.0
      %v2100 = vsel %vm909, %v2068, 0.0
      %v2101 = vsel %vm910, %v2069, 0.0
      %v2102 = vsel %vm911, %v2070, 0.0
      %v2103 = vsel %vm912, %v2071, 0.0
      %v2104 = vsel %vm913, %v2072, 0.0
      %v2105 = vpack.c.bf16 %v2074, %v2073
      %v2106 = vpack.c.bf16 %v2076, %v2075
      %v2107 = vpack.c.bf16 %v2078, %v2077
      %v2108 = vpack.c.bf16 %v2080, %v2079
      %v2109 = vpack.c.bf16 %v2082, %v2081
      %v2110 = vpack.c.bf16 %v2084, %v2083
      %v2111 = vpack.c.bf16 %v2086, %v2085
      %v2112 = vpack.c.bf16 %v2088, %v2087
      %v2113 = vpack.c.bf16 %v2090, %v2089
      %v2114 = vpack.c.bf16 %v2092, %v2091
      %v2115 = vpack.c.bf16 %v2094, %v2093
      %v2116 = vpack.c.bf16 %v2096, %v2095
      %v2117 = vpack.c.bf16 %v2098, %v2097
      %v2118 = vpack.c.bf16 %v2100, %v2099
      %v2119 = vpack.c.bf16 %v2102, %v2101
      %v2120 = vpack.c.bf16 %v2104, %v2103
      %2121 = vst.msk [vmem:[#allocation3 + $0x8] sm:$0xff] %vm745, %v2105
      %2122 = vst.msk [vmem:[#allocation3 + $0x18] sm:$0xff] %vm745, %v2106
      %2123 = vst.msk [vmem:[#allocation3 + $0x28] sm:$0xff] %vm745, %v2107
      %2124 = vst.msk [vmem:[#allocation3 + $0x38] sm:$0xff] %vm745, %v2108
      %2125 = vst.msk [vmem:[#allocation3 + $0x48] sm:$0xff] %vm745, %v2109
      %2126 = vst.msk [vmem:[#allocation3 + $0x58] sm:$0xff] %vm745, %v2110
      %2127 = vst.msk [vmem:[#allocation3 + $0x68] sm:$0xff] %vm745, %v2111
      %2128 = vst.msk [vmem:[#allocation3 + $0x78] sm:$0xff] %vm745, %v2112
      %2129 = vst.msk [vmem:[#allocation3 + $0x88] sm:$0xff] %vm745, %v2113
      %2130 = vst.msk [vmem:[#allocation3 + $0x98] sm:$0xff] %vm745, %v2114
      %2131 = vst.msk [vmem:[#allocation3 + $0xa8] sm:$0xff] %vm745, %v2115
      %2132 = vst.msk [vmem:[#allocation3 + $0xb8] sm:$0xff] %vm745, %v2116
      %2133 = vst.msk [vmem:[#allocation3 + $0xc8] sm:$0xff] %vm745, %v2117
      %2134 = vst.msk [vmem:[#allocation3 + $0xd8] sm:$0xff] %vm745, %v2118
      %2135 = vst.msk [vmem:[#allocation3 + $0xe8] sm:$0xff] %vm745, %v2119
      %2136 = vst.msk [vmem:[#allocation3 + $0xf8] sm:$0xff] %vm745, %v2120
      %v2137 = vld [vmem:[#allocation3] sm:$0xff]
      %v2138 = vld [vmem:[#allocation3 + $0x8] sm:$0xff]
      %v2139 = vld [vmem:[#allocation3 + $0x10] sm:$0xff]
      %v2140 = vld [vmem:[#allocation3 + $0x18] sm:$0xff]
      %v2141 = vld [vmem:[#allocation3 + $0x20] sm:$0xff]
      %v2142 = vld [vmem:[#allocation3 + $0x28] sm:$0xff]
      %v2143 = vld [vmem:[#allocation3 + $0x30] sm:$0xff]
      %v2144 = vld [vmem:[#allocation3 + $0x38] sm:$0xff]
      %v2145 = vld [vmem:[#allocation3 + $0x40] sm:$0xff]
      %v2146 = vld [vmem:[#allocation3 + $0x48] sm:$0xff]
      %v2147 = vld [vmem:[#allocation3 + $0x50] sm:$0xff]
      %v2148 = vld [vmem:[#allocation3 + $0x58] sm:$0xff]
      %v2149 = vld [vmem:[#allocation3 + $0x60] sm:$0xff]
      %v2150 = vld [vmem:[#allocation3 + $0x68] sm:$0xff]
      %v2151 = vld [vmem:[#allocation3 + $0x70] sm:$0xff]
      %v2152 = vld [vmem:[#allocation3 + $0x78] sm:$0xff]
      %v2153 = vld [vmem:[#allocation3 + $0x80] sm:$0xff]
      %v2154 = vld [vmem:[#allocation3 + $0x88] sm:$0xff]
      %v2155 = vld [vmem:[#allocation3 + $0x90] sm:$0xff]
      %v2156 = vld [vmem:[#allocation3 + $0x98] sm:$0xff]
      %v2157 = vld [vmem:[#allocation3 + $0xa0] sm:$0xff]
      %v2158 = vld [vmem:[#allocation3 + $0xa8] sm:$0xff]
      %v2159 = vld [vmem:[#allocation3 + $0xb0] sm:$0xff]
      %v2160 = vld [vmem:[#allocation3 + $0xb8] sm:$0xff]
      %v2161 = vld [vmem:[#allocation3 + $0xc0] sm:$0xff]
      %v2162 = vld [vmem:[#allocation3 + $0xc8] sm:$0xff]
      %v2163 = vld [vmem:[#allocation3 + $0xd0] sm:$0xff]
      %v2164 = vld [vmem:[#allocation3 + $0xd8] sm:$0xff]
      %v2165 = vld [vmem:[#allocation3 + $0xe0] sm:$0xff]
      %v2166 = vld [vmem:[#allocation3 + $0xe8] sm:$0xff]
      %v2167 = vld [vmem:[#allocation3 + $0xf0] sm:$0xff]
      %v2168 = vld [vmem:[#allocation3 + $0xf8] sm:$0xff]
      %v2169 = vld [vmem:[%s4] sm:$0xf]
      %v2170 = vld [vmem:[%s4 + $0x4] sm:$0xf]
      %v2171 = vld [vmem:[%s4 + $0x8] sm:$0xf]
      %v2172 = vld [vmem:[%s4 + $0xc] sm:$0xf]
      %v2173 = vld [vmem:[%s4 + $0x10] sm:$0xf]
      %v2174 = vld [vmem:[%s4 + $0x14] sm:$0xf]
      %v2175 = vld [vmem:[%s4 + $0x18] sm:$0xf]
      %v2176 = vld [vmem:[%s4 + $0x1c] sm:$0xf]
      %v2177 = vld [vmem:[%s4 + $0x20] sm:$0xf]
      %v2178 = vld [vmem:[%s4 + $0x24] sm:$0xf]
      %v2179 = vld [vmem:[%s4 + $0x28] sm:$0xf]
      %v2180 = vld [vmem:[%s4 + $0x2c] sm:$0xf]
      %v2181 = vld [vmem:[%s4 + $0x30] sm:$0xf]
      %v2182 = vld [vmem:[%s4 + $0x34] sm:$0xf]
      %v2183 = vld [vmem:[%s4 + $0x38] sm:$0xf]
      %v2184 = vld [vmem:[%s4 + $0x3c] sm:$0xf]
      %v2185 = vld [vmem:[%s4 + $0x40] sm:$0xf]
      %v2186 = vld [vmem:[%s4 + $0x44] sm:$0xf]
      %v2205 = vunpack.c.l.b16 %v2169
      %v2206 = vunpack.c.l.b16 %v2170
      %v2207 = vunpack.c.l.b16 %v2171
      %v2208 = vunpack.c.l.b16 %v2172
      %v2209 = vunpack.c.l.b16 %v2173
      %v2210 = vunpack.c.l.b16 %v2174
      %v2211 = vunpack.c.l.b16 %v2175
      %v2212 = vunpack.c.l.b16 %v2176
      %v2213 = vunpack.c.l.b16 %v2177
      %v2214 = vunpack.c.l.b16 %v2178
      %v2215 = vunpack.c.l.b16 %v2179
      %v2216 = vunpack.c.l.b16 %v2180
      %v2217 = vunpack.c.l.b16 %v2181
      %v2218 = vunpack.c.l.b16 %v2182
      %v2219 = vunpack.c.l.b16 %v2183
      %v2220 = vunpack.c.l.b16 %v2184
      %v2221 = vunpack.c.l.b16 %v2185
      %v2222 = vunpack.c.l.b16 %v2186
      %v2223 = vpack.c.b16 %v2206, %v2205
      %v2224 = vpack.c.b16 %v2208, %v2207
      %v2225 = vpack.c.b16 %v2210, %v2209
      %v2226 = vpack.c.b16 %v2212, %v2211
      %v2227 = vpack.c.b16 %v2214, %v2213
      %v2228 = vpack.c.b16 %v2216, %v2215
      %v2229 = vpack.c.b16 %v2218, %v2217
      %v2230 = vpack.c.b16 %v2220, %v2219
      %v2231 = vpack.c.b16 %v2222, %v2221
      %v2242 = vsel %vm745, %v2138, 0
      %v2245 = vsel %vm745, %v2140, 0
      %v2248 = vsel %vm745, %v2142, 0
      %v2251 = vsel %vm745, %v2144, 0
      %v2254 = vsel %vm745, %v2146, 0
      %v2257 = vsel %vm745, %v2148, 0
      %v2260 = vsel %vm745, %v2150, 0
      %v2263 = vsel %vm745, %v2152, 0
      %v2266 = vsel %vm745, %v2154, 0
      %v2269 = vsel %vm745, %v2156, 0
      %v2272 = vsel %vm745, %v2158, 0
      %v2275 = vsel %vm745, %v2160, 0
      %v2278 = vsel %vm745, %v2162, 0
      %v2281 = vsel %vm745, %v2164, 0
      %v2284 = vsel %vm745, %v2166, 0
      %v2287 = vsel %vm745, %v2168, 0
      %2289 = vmatprep.subr.bf16.mxu0 0
      %2290 = vmatpush1.bf16.msra.mxu0 %v2223
      %2291 = vmatprep.subr.bf16.mxu0 0
      %2292 = vmatpush1.bf16.msra.mxu0 %v2224
      %2293 = vmatprep.subr.bf16.mxu0 0
      %2294 = vmatpush1.bf16.msra.mxu0 %v2225
      %2295 = vmatprep.subr.bf16.mxu0 0
      %2296 = vmatpush1.bf16.msra.mxu0 %v2226
      %2297 = vmatprep.subr.bf16.mxu0 0
      %2298 = vmatpush1.bf16.msra.mxu0 %v2227
      %2299 = vmatprep.subr.bf16.mxu0 0
      %2300 = vmatpush1.bf16.msra.mxu0 %v2228
      %2301 = vmatprep.subr.bf16.mxu0 0
      %2302 = vmatpush1.bf16.msra.mxu0 %v2229
      %2303 = vmatprep.subr.bf16.mxu0 0
      %2304 = vmatpush1.bf16.msra.mxu0 %v2230
      %2305 = vmatprep.subr.bf16.mxu0 0
      %2306 = vmatpush1.bf16.msra.mxu0 %v2231
      %2307 = vmatprep.subr.bf16.mxu0 0
      %2308 = vmatpush1.bf16.msra.mxu0 0
      %2309 = vmatprep.subr.bf16.mxu0 0
      %2310 = vmatpush1.bf16.msra.mxu0 0
      %2311 = vmatprep.subr.bf16.mxu0 0
      %2312 = vmatpush1.bf16.msra.mxu0 0
      %2313 = vmatprep.subr.bf16.mxu0 0
      %2314 = vmatpush1.bf16.msra.mxu0 0
      %2315 = vmatprep.subr.bf16.mxu0 0
      %2316 = vmatpush1.bf16.msra.mxu0 0
      %2317 = vmatprep.subr.bf16.mxu0 0
      %2318 = vmatpush1.bf16.msra.mxu0 0
      %2319 = vmatprep.subr.bf16.mxu0 0
      %2320 = vmatpush1.bf16.msra.mxu0 0
      %2321 = vmatprep.mubr.bf16.mxu0 %v2242
      %2322 = vmatmul.mubr.bf16.gmra.mrb[0].mxu0 %v2137
      %v2323 = vpop.f32.mrb[0].mxu0
      %v2324 = vadd.f32 0.0, %v2323
      %v2325 = vpop.f32.mrb[0].mxu0
      %v2326 = vpop.f32.mrb[0].mxu0
      %v2327 = vadd.f32 0.0, %v2326
      %v2328 = vpop.f32.mrb[0].mxu0
      %2329 = vmatprep.mubr.bf16.mxu0 %v2245
      %2330 = vmatmul.mubr.bf16.gmra.mrb[0].mxu0 %v2139
      %v2331 = vpop.f32.mrb[0].mxu0
      %v2332 = vadd.f32 0.0, %v2331
      %v2333 = vpop.f32.mrb[0].mxu0
      %v2334 = vpop.f32.mrb[0].mxu0
      %v2335 = vadd.f32 0.0, %v2334
      %v2336 = vpop.f32.mrb[0].mxu0
      %2337 = vmatprep.mubr.bf16.mxu0 %v2248
      %2338 = vmatmul.mubr.bf16.gmra.mrb[0].mxu0 %v2141
      %v2339 = vpop.f32.mrb[0].mxu0
      %v2340 = vadd.f32 0.0, %v2339
      %v2341 = vpop.f32.mrb[0].mxu0
      %v2342 = vpop.f32.mrb[0].mxu0
      %v2343 = vadd.f32 0.0, %v2342
      %v2344 = vpop.f32.mrb[0].mxu0
      %2345 = vmatprep.mubr.bf16.mxu0 %v2251
      %2346 = vmatmul.mubr.bf16.gmra.mrb[0].mxu0 %v2143
      %v2347 = vpop.f32.mrb[0].mxu0
      %v2348 = vadd.f32 0.0, %v2347
      %v2349 = vpop.f32.mrb[0].mxu0
      %v2350 = vpop.f32.mrb[0].mxu0
      %v2351 = vadd.f32 0.0, %v2350
      %v2352 = vpop.f32.mrb[0].mxu0
      %2353 = vmatprep.mubr.bf16.mxu0 %v2254
      %2354 = vmatmul.mubr.bf16.gmra.mrb[0].mxu0 %v2145
      %v2355 = vpop.f32.mrb[0].mxu0
      %v2356 = vadd.f32 0.0, %v2355
      %v2357 = vpop.f32.mrb[0].mxu0
      %v2358 = vpop.f32.mrb[0].mxu0
      %v2359 = vadd.f32 0.0, %v2358
      %v2360 = vpop.f32.mrb[0].mxu0
      %2361 = vmatprep.mubr.bf16.mxu0 %v2257
      %2362 = vmatmul.mubr.bf16.gmra.mrb[0].mxu0 %v2147
      %v2363 = vpop.f32.mrb[0].mxu0
      %v2364 = vadd.f32 0.0, %v2363
      %v2365 = vpop.f32.mrb[0].mxu0
      %v2366 = vpop.f32.mrb[0].mxu0
      %v2367 = vadd.f32 0.0, %v2366
      %v2368 = vpop.f32.mrb[0].mxu0
      %2369 = vmatprep.mubr.bf16.mxu0 %v2260
      %2370 = vmatmul.mubr.bf16.gmra.mrb[0].mxu0 %v2149
      %v2371 = vpop.f32.mrb[0].mxu0
      %v2372 = vadd.f32 0.0, %v2371
      %v2373 = vpop.f32.mrb[0].mxu0
      %v2374 = vpop.f32.mrb[0].mxu0
      %v2375 = vadd.f32 0.0, %v2374
      %v2376 = vpop.f32.mrb[0].mxu0
      %2377 = vmatprep.mubr.bf16.mxu0 %v2263
      %2378 = vmatmul.mubr.bf16.gmra.mrb[0].mxu0 %v2151
      %v2379 = vpop.f32.mrb[0].mxu0
      %v2380 = vadd.f32 0.0, %v2379
      %v2381 = vpop.f32.mrb[0].mxu0
      %v2382 = vpop.f32.mrb[0].mxu0
      %v2383 = vadd.f32 0.0, %v2382
      %v2384 = vpop.f32.mrb[0].mxu0
      %2385 = vmatprep.mubr.bf16.mxu0 %v2266
      %2386 = vmatmul.mubr.bf16.gmra.mrb[0].mxu0 %v2153
      %v2387 = vpop.f32.mrb[0].mxu0
      %v2388 = vadd.f32 0.0, %v2387
      %v2389 = vpop.f32.mrb[0].mxu0
      %v2390 = vpop.f32.mrb[0].mxu0
      %v2391 = vadd.f32 0.0, %v2390
      %v2392 = vpop.f32.mrb[0].mxu0
      %2393 = vmatprep.mubr.bf16.mxu0 %v2269
      %2394 = vmatmul.mubr.bf16.gmra.mrb[0].mxu0 %v2155
      %v2395 = vpop.f32.mrb[0].mxu0
      %v2396 = vadd.f32 0.0, %v2395
      %v2397 = vpop.f32.mrb[0].mxu0
      %v2398 = vpop.f32.mrb[0].mxu0
      %v2399 = vadd.f32 0.0, %v2398
      %v2400 = vpop.f32.mrb[0].mxu0
      %2401 = vmatprep.mubr.bf16.mxu0 %v2272
      %2402 = vmatmul.mubr.bf16.gmra.mrb[0].mxu0 %v2157
      %v2403 = vpop.f32.mrb[0].mxu0
      %v2404 = vadd.f32 0.0, %v2403
      %v2405 = vpop.f32.mrb[0].mxu0
      %v2406 = vpop.f32.mrb[0].mxu0
      %v2407 = vadd.f32 0.0, %v2406
      %v2408 = vpop.f32.mrb[0].mxu0
      %2409 = vmatprep.mubr.bf16.mxu0 %v2275
      %2410 = vmatmul.mubr.bf16.gmra.mrb[0].mxu0 %v2159
      %v2411 = vpop.f32.mrb[0].mxu0
      %v2412 = vadd.f32 0.0, %v2411
      %v2413 = vpop.f32.mrb[0].mxu0
      %v2414 = vpop.f32.mrb[0].mxu0
      %v2415 = vadd.f32 0.0, %v2414
      %v2416 = vpop.f32.mrb[0].mxu0
      %2417 = vmatprep.mubr.bf16.mxu0 %v2278
      %2418 = vmatmul.mubr.bf16.gmra.mrb[0].mxu0 %v2161
      %v2419 = vpop.f32.mrb[0].mxu0
      %v2420 = vadd.f32 0.0, %v2419
      %v2421 = vpop.f32.mrb[0].mxu0
      %v2422 = vpop.f32.mrb[0].mxu0
      %v2423 = vadd.f32 0.0, %v2422
      %v2424 = vpop.f32.mrb[0].mxu0
      %2425 = vmatprep.mubr.bf16.mxu0 %v2281
      %2426 = vmatmul.mubr.bf16.gmra.mrb[0].mxu0 %v2163
      %v2427 = vpop.f32.mrb[0].mxu0
      %v2428 = vadd.f32 0.0, %v2427
      %v2429 = vpop.f32.mrb[0].mxu0
      %v2430 = vpop.f32.mrb[0].mxu0
      %v2431 = vadd.f32 0.0, %v2430
      %v2432 = vpop.f32.mrb[0].mxu0
      %2433 = vmatprep.mubr.bf16.mxu0 %v2284
      %2434 = vmatmul.mubr.bf16.gmra.mrb[0].mxu0 %v2165
      %v2435 = vpop.f32.mrb[0].mxu0
      %v2436 = vadd.f32 0.0, %v2435
      %v2437 = vpop.f32.mrb[0].mxu0
      %v2438 = vpop.f32.mrb[0].mxu0
      %v2439 = vadd.f32 0.0, %v2438
      %v2440 = vpop.f32.mrb[0].mxu0
      %2441 = vmatprep.mubr.bf16.mxu0 %v2287
      %2442 = vmatmul.mubr.bf16.gmra.mrb[0].mxu0 %v2167
      %v2443 = vpop.f32.mrb[0].mxu0
      %v2444 = vadd.f32 0.0, %v2443
      %v2445 = vpop.f32.mrb[0].mxu0
      %v2446 = vpop.f32.mrb[0].mxu0
      %v2447 = vadd.f32 0.0, %v2446
      %v2448 = vpop.f32.mrb[0].mxu0
      %2449 = vdwg.mxu0
      %v2450 = vld [vmem:[%s5] sm:$0x1]
      %v2452 = vlaneseq
      %v2453 = vshrl.u32 %v2452, 7
      %v2454 = vsub.s32 0, %v2453
      %v2455 = vrot.slane %v2450, %v2454
      %v2457 = vmul.f32 %v2324, %v2455
      %v2458 = vmul.f32 %v2327, %v2455
      %v2459 = vmul.f32 %v2332, %v2455
      %v2460 = vmul.f32 %v2335, %v2455
      %v2461 = vmul.f32 %v2340, %v2455
      %v2462 = vmul.f32 %v2343, %v2455
      %v2463 = vmul.f32 %v2348, %v2455
      %v2464 = vmul.f32 %v2351, %v2455
      %v2465 = vmul.f32 %v2356, %v2455
      %v2466 = vmul.f32 %v2359, %v2455
      %v2467 = vmul.f32 %v2364, %v2455
      %v2468 = vmul.f32 %v2367, %v2455
      %v2469 = vmul.f32 %v2372, %v2455
      %v2470 = vmul.f32 %v2375, %v2455
      %v2471 = vmul.f32 %v2380, %v2455
      %v2472 = vmul.f32 %v2383, %v2455
      %v2473 = vmul.f32 %v2388, %v2455
      %v2474 = vmul.f32 %v2391, %v2455
      %v2475 = vmul.f32 %v2396, %v2455
      %v2476 = vmul.f32 %v2399, %v2455
      %v2477 = vmul.f32 %v2404, %v2455
      %v2478 = vmul.f32 %v2407, %v2455
      %v2479 = vmul.f32 %v2412, %v2455
      %v2480 = vmul.f32 %v2415, %v2455
      %v2481 = vmul.f32 %v2420, %v2455
      %v2482 = vmul.f32 %v2423, %v2455
      %v2483 = vmul.f32 %v2428, %v2455
      %v2484 = vmul.f32 %v2431, %v2455
      %v2485 = vmul.f32 %v2436, %v2455
      %v2486 = vmul.f32 %v2439, %v2455
      %v2487 = vmul.f32 %v2444, %v2455
      %v2488 = vmul.f32 %v2447, %v2455
      %v2489 = vld [vmem:[%s6] sm:$0x1]
      %v2491 = vlaneseq
      %v2492 = vshrl.u32 %v2491, 7
      %v2493 = vsub.s32 0, %v2492
      %v2494 = vrot.slane %v2489, %v2493
      %v2496 = vadd.f32 %v2457, %v2494
      %v2497 = vadd.f32 %v2458, %v2494
      %v2498 = vadd.f32 %v2459, %v2494
      %v2499 = vadd.f32 %v2460, %v2494
      %v2500 = vadd.f32 %v2461, %v2494
      %v2501 = vadd.f32 %v2462, %v2494
      %v2502 = vadd.f32 %v2463, %v2494
      %v2503 = vadd.f32 %v2464, %v2494
      %v2504 = vadd.f32 %v2465, %v2494
      %v2505 = vadd.f32 %v2466, %v2494
      %v2506 = vadd.f32 %v2467, %v2494
      %v2507 = vadd.f32 %v2468, %v2494
      %v2508 = vadd.f32 %v2469, %v2494
      %v2509 = vadd.f32 %v2470, %v2494
      %v2510 = vadd.f32 %v2471, %v2494
      %v2511 = vadd.f32 %v2472, %v2494
      %v2512 = vadd.f32 %v2473, %v2494
      %v2513 = vadd.f32 %v2474, %v2494
      %v2514 = vadd.f32 %v2475, %v2494
      %v2515 = vadd.f32 %v2476, %v2494
      %v2516 = vadd.f32 %v2477, %v2494
      %v2517 = vadd.f32 %v2478, %v2494
      %v2518 = vadd.f32 %v2479, %v2494
      %v2519 = vadd.f32 %v2480, %v2494
      %v2520 = vadd.f32 %v2481, %v2494
      %v2521 = vadd.f32 %v2482, %v2494
      %v2522 = vadd.f32 %v2483, %v2494
      %v2523 = vadd.f32 %v2484, %v2494
      %v2524 = vadd.f32 %v2485, %v2494
      %v2525 = vadd.f32 %v2486, %v2494
      %v2526 = vadd.f32 %v2487, %v2494
      %v2527 = vadd.f32 %v2488, %v2494
      %v2528 = vmax.f32 %v2496, 0.0
      %v2529 = vmax.f32 %v2497, 0.0
      %v2530 = vmax.f32 %v2498, 0.0
      %v2531 = vmax.f32 %v2499, 0.0
      %v2532 = vmax.f32 %v2500, 0.0
      %v2533 = vmax.f32 %v2501, 0.0
      %v2534 = vmax.f32 %v2502, 0.0
      %v2535 = vmax.f32 %v2503, 0.0
      %v2536 = vmax.f32 %v2504, 0.0
      %v2537 = vmax.f32 %v2505, 0.0
      %v2538 = vmax.f32 %v2506, 0.0
      %v2539 = vmax.f32 %v2507, 0.0
      %v2540 = vmax.f32 %v2508, 0.0
      %v2541 = vmax.f32 %v2509, 0.0
      %v2542 = vmax.f32 %v2510, 0.0
      %v2543 = vmax.f32 %v2511, 0.0
      %v2544 = vmax.f32 %v2512, 0.0
      %v2545 = vmax.f32 %v2513, 0.0
      %v2546 = vmax.f32 %v2514, 0.0
      %v2547 = vmax.f32 %v2515, 0.0
      %v2548 = vmax.f32 %v2516, 0.0
      %v2549 = vmax.f32 %v2517, 0.0
      %v2550 = vmax.f32 %v2518, 0.0
      %v2551 = vmax.f32 %v2519, 0.0
      %v2552 = vmax.f32 %v2520, 0.0
      %v2553 = vmax.f32 %v2521, 0.0
      %v2554 = vmax.f32 %v2522, 0.0
      %v2555 = vmax.f32 %v2523, 0.0
      %v2556 = vmax.f32 %v2524, 0.0
      %v2557 = vmax.f32 %v2525, 0.0
      %v2558 = vmax.f32 %v2526, 0.0
      %v2559 = vmax.f32 %v2527, 0.0
      %v2560 = vpack.c.bf16 %v2529, %v2528
      %v2561 = vpack.c.bf16 %v2531, %v2530
      %v2562 = vpack.c.bf16 %v2533, %v2532
      %v2563 = vpack.c.bf16 %v2535, %v2534
      %v2564 = vpack.c.bf16 %v2537, %v2536
      %v2565 = vpack.c.bf16 %v2539, %v2538
      %v2566 = vpack.c.bf16 %v2541, %v2540
      %v2567 = vpack.c.bf16 %v2543, %v2542
      %v2568 = vpack.c.bf16 %v2545, %v2544
      %v2569 = vpack.c.bf16 %v2547, %v2546
      %v2570 = vpack.c.bf16 %v2549, %v2548
      %v2571 = vpack.c.bf16 %v2551, %v2550
      %v2572 = vpack.c.bf16 %v2553, %v2552
      %v2573 = vpack.c.bf16 %v2555, %v2554
      %v2574 = vpack.c.bf16 %v2557, %v2556
      %v2575 = vpack.c.bf16 %v2559, %v2558
      %v2576 = vld [vmem:[%s7] sm:$0xf]
      %v2577 = vld [vmem:[%s7 + $0x4] sm:$0xf]
      %v2580 = vunpack.c.l.b16 %v2576
      %v2581 = vunpack.c.l.b16 %v2577
      %v2582 = vpack.c.b16 %v2581, %v2580
      %v2585 = vsel %vm745, %v2560, 0
      %v2588 = vsel %vm745, %v2561, 0
      %v2591 = vsel %vm745, %v2562, 0
      %v2594 = vsel %vm745, %v2563, 0
      %v2597 = vsel %vm745, %v2564, 0
      %v2600 = vsel %vm745, %v2565, 0
      %v2603 = vsel %vm745, %v2566, 0
      %v2606 = vsel %vm745, %v2567, 0
      %v2609 = vsel %vm745, %v2568, 0
      %v2612 = vsel %vm745, %v2569, 0
      %v2615 = vsel %vm745, %v2570, 0
      %v2618 = vsel %vm745, %v2571, 0
      %v2621 = vsel %vm745, %v2572, 0
      %v2624 = vsel %vm745, %v2573, 0
      %v2627 = vsel %vm745, %v2574, 0
      %v2630 = vsel %vm745, %v2575, 0
      %2632 = vmatprep.subr.bf16.mxu0 0
      %2633 = vmatpush1.bf16.msra.mxu0 %v2582
      %2634 = vmatprep.subr.bf16.mxu0 0
      %2635 = vmatpush1.bf16.msra.mxu0 0
      %2636 = vmatprep.subr.bf16.mxu0 0
      %2637 = vmatpush1.bf16.msra.mxu0 0
      %2638 = vmatprep.subr.bf16.mxu0 0
      %2639 = vmatpush1.bf16.msra.mxu0 0
      %2640 = vmatprep.subr.bf16.mxu0 0
      %2641 = vmatpush1.bf16.msra.mxu0 0
      %2642 = vmatprep.subr.bf16.mxu0 0
      %2643 = vmatpush1.bf16.msra.mxu0 0
      %2644 = vmatprep.subr.bf16.mxu0 0
      %2645 = vmatpush1.bf16.msra.mxu0 0
      %2646 = vmatprep.subr.bf16.mxu0 0
      %2647 = vmatpush1.bf16.msra.mxu0 0
      %2648 = vmatprep.subr.bf16.mxu0 0
      %2649 = vmatpush1.bf16.msra.mxu0 0
      %2650 = vmatprep.subr.bf16.mxu0 0
      %2651 = vmatpush1.bf16.msra.mxu0 0
      %2652 = vmatprep.subr.bf16.mxu0 0
      %2653 = vmatpush1.bf16.msra.mxu0 0
      %2654 = vmatprep.subr.bf16.mxu0 0
      %2655 = vmatpush1.bf16.msra.mxu0 0
      %2656 = vmatprep.subr.bf16.mxu0 0
      %2657 = vmatpush1.bf16.msra.mxu0 0
      %2658 = vmatprep.subr.bf16.mxu0 0
      %2659 = vmatpush1.bf16.msra.mxu0 0
      %2660 = vmatprep.subr.bf16.mxu0 0
      %2661 = vmatpush1.bf16.msra.mxu0 0
      %2662 = vmatprep.subr.bf16.mxu0 0
      %2663 = vmatpush1.bf16.msra.mxu0 0
      %2664 = vmatprep.mubr.bf16.mxu0 0
      %2665 = vmatmul.mubr.bf16.gmra.mrb[0].mxu0 %v2585
      %v2666 = vpop.f32.mrb[0].mxu0
      %v2667 = vadd.f32 0.0, %v2666
      %v2668 = vpop.f32.mrb[0].mxu0
      %v2669 = vpop.f32.mrb[0].mxu0
      %v2670 = vadd.f32 0.0, %v2669
      %v2671 = vpop.f32.mrb[0].mxu0
      %2672 = vmatprep.mubr.bf16.mxu0 0
      %2673 = vmatmul.mubr.bf16.gmra.mrb[0].mxu0 %v2588
      %v2674 = vpop.f32.mrb[0].mxu0
      %v2675 = vadd.f32 0.0, %v2674
      %v2676 = vpop.f32.mrb[0].mxu0
      %v2677 = vpop.f32.mrb[0].mxu0
      %v2678 = vadd.f32 0.0, %v2677
      %v2679 = vpop.f32.mrb[0].mxu0
      %2680 = vmatprep.mubr.bf16.mxu0 0
      %2681 = vmatmul.mubr.bf16.gmra.mrb[0].mxu0 %v2591
      %v2682 = vpop.f32.mrb[0].mxu0
      %v2683 = vadd.f32 0.0, %v2682
      %v2684 = vpop.f32.mrb[0].mxu0
      %v2685 = vpop.f32.mrb[0].mxu0
      %v2686 = vadd.f32 0.0, %v2685
      %v2687 = vpop.f32.mrb[0].mxu0
      %2688 = vmatprep.mubr.bf16.mxu0 0
      %2689 = vmatmul.mubr.bf16.gmra.mrb[0].mxu0 %v2594
      %v2690 = vpop.f32.mrb[0].mxu0
      %v2691 = vadd.f32 0.0, %v2690
      %v2692 = vpop.f32.mrb[0].mxu0
      %v2693 = vpop.f32.mrb[0].mxu0
      %v2694 = vadd.f32 0.0, %v2693
      %v2695 = vpop.f32.mrb[0].mxu0
      %2696 = vmatprep.mubr.bf16.mxu0 0
      %2697 = vmatmul.mubr.bf16.gmra.mrb[0].mxu0 %v2597
      %v2698 = vpop.f32.mrb[0].mxu0
      %v2699 = vadd.f32 0.0, %v2698
      %v2700 = vpop.f32.mrb[0].mxu0
      %v2701 = vpop.f32.mrb[0].mxu0
      %v2702 = vadd.f32 0.0, %v2701
      %v2703 = vpop.f32.mrb[0].mxu0
      %2704 = vmatprep.mubr.bf16.mxu0 0
      %2705 = vmatmul.mubr.bf16.gmra.mrb[0].mxu0 %v2600
      %v2706 = vpop.f32.mrb[0].mxu0
      %v2707 = vadd.f32 0.0, %v2706
      %v2708 = vpop.f32.mrb[0].mxu0
      %v2709 = vpop.f32.mrb[0].mxu0
      %v2710 = vadd.f32 0.0, %v2709
      %v2711 = vpop.f32.mrb[0].mxu0
      %2712 = vmatprep.mubr.bf16.mxu0 0
      %2713 = vmatmul.mubr.bf16.gmra.mrb[0].mxu0 %v2603
      %v2714 = vpop.f32.mrb[0].mxu0
      %v2715 = vadd.f32 0.0, %v2714
      %v2716 = vpop.f32.mrb[0].mxu0
      %v2717 = vpop.f32.mrb[0].mxu0
      %v2718 = vadd.f32 0.0, %v2717
      %v2719 = vpop.f32.mrb[0].mxu0
      %2720 = vmatprep.mubr.bf16.mxu0 0
      %2721 = vmatmul.mubr.bf16.gmra.mrb[0].mxu0 %v2606
      %v2722 = vpop.f32.mrb[0].mxu0
      %v2723 = vadd.f32 0.0, %v2722
      %v2724 = vpop.f32.mrb[0].mxu0
      %v2725 = vpop.f32.mrb[0].mxu0
      %v2726 = vadd.f32 0.0, %v2725
      %v2727 = vpop.f32.mrb[0].mxu0
      %2728 = vmatprep.mubr.bf16.mxu0 0
      %2729 = vmatmul.mubr.bf16.gmra.mrb[0].mxu0 %v2609
      %v2730 = vpop.f32.mrb[0].mxu0
      %v2731 = vadd.f32 0.0, %v2730
      %v2732 = vpop.f32.mrb[0].mxu0
      %v2733 = vpop.f32.mrb[0].mxu0
      %v2734 = vadd.f32 0.0, %v2733
      %v2735 = vpop.f32.mrb[0].mxu0
      %2736 = vmatprep.mubr.bf16.mxu0 0
      %2737 = vmatmul.mubr.bf16.gmra.mrb[0].mxu0 %v2612
      %v2738 = vpop.f32.mrb[0].mxu0
      %v2739 = vadd.f32 0.0, %v2738
      %v2740 = vpop.f32.mrb[0].mxu0
      %v2741 = vpop.f32.mrb[0].mxu0
      %v2742 = vadd.f32 0.0, %v2741
      %v2743 = vpop.f32.mrb[0].mxu0
      %2744 = vmatprep.mubr.bf16.mxu0 0
      %2745 = vmatmul.mubr.bf16.gmra.mrb[0].mxu0 %v2615
      %v2746 = vpop.f32.mrb[0].mxu0
      %v2747 = vadd.f32 0.0, %v2746
      %v2748 = vpop.f32.mrb[0].mxu0
      %v2749 = vpop.f32.mrb[0].mxu0
      %v2750 = vadd.f32 0.0, %v2749
      %v2751 = vpop.f32.mrb[0].mxu0
      %2752 = vmatprep.mubr.bf16.mxu0 0
      %2753 = vmatmul.mubr.bf16.gmra.mrb[0].mxu0 %v2618
      %v2754 = vpop.f32.mrb[0].mxu0
      %v2755 = vadd.f32 0.0, %v2754
      %v2756 = vpop.f32.mrb[0].mxu0
      %v2757 = vpop.f32.mrb[0].mxu0
      %v2758 = vadd.f32 0.0, %v2757
      %v2759 = vpop.f32.mrb[0].mxu0
      %2760 = vmatprep.mubr.bf16.mxu0 0
      %2761 = vmatmul.mubr.bf16.gmra.mrb[0].mxu0 %v2621
      %v2762 = vpop.f32.mrb[0].mxu0
      %v2763 = vadd.f32 0.0, %v2762
      %v2764 = vpop.f32.mrb[0].mxu0
      %v2765 = vpop.f32.mrb[0].mxu0
      %v2766 = vadd.f32 0.0, %v2765
      %v2767 = vpop.f32.mrb[0].mxu0
      %2768 = vmatprep.mubr.bf16.mxu0 0
      %2769 = vmatmul.mubr.bf16.gmra.mrb[0].mxu0 %v2624
      %v2770 = vpop.f32.mrb[0].mxu0
      %v2771 = vadd.f32 0.0, %v2770
      %v2772 = vpop.f32.mrb[0].mxu0
      %v2773 = vpop.f32.mrb[0].mxu0
      %v2774 = vadd.f32 0.0, %v2773
      %v2775 = vpop.f32.mrb[0].mxu0
      %2776 = vmatprep.mubr.bf16.mxu0 0
      %2777 = vmatmul.mubr.bf16.gmra.mrb[0].mxu0 %v2627
      %v2778 = vpop.f32.mrb[0].mxu0
      %v2779 = vadd.f32 0.0, %v2778
      %v2780 = vpop.f32.mrb[0].mxu0
      %v2781 = vpop.f32.mrb[0].mxu0
      %v2782 = vadd.f32 0.0, %v2781
      %v2783 = vpop.f32.mrb[0].mxu0
      %2784 = vmatprep.mubr.bf16.mxu0 0
      %2785 = vmatmul.mubr.bf16.gmra.mrb[0].mxu0 %v2630
      %v2786 = vpop.f32.mrb[0].mxu0
      %v2787 = vadd.f32 0.0, %v2786
      %v2788 = vpop.f32.mrb[0].mxu0
      %v2789 = vpop.f32.mrb[0].mxu0
      %v2790 = vadd.f32 0.0, %v2789
      %v2791 = vpop.f32.mrb[0].mxu0
      %2792 = vdwg.mxu0
      %v2793 = vld [vmem:[%s8] sm:$0x1]
      %v2795 = vlaneseq
      %v2796 = vshrl.u32 %v2795, 7
      %v2797 = vsub.s32 0, %v2796
      %v2798 = vrot.slane %v2793, %v2797
      %v2800 = vmul.f32 %v2667, %v2798
      %v2801 = vmul.f32 %v2670, %v2798
      %v2802 = vmul.f32 %v2675, %v2798
      %v2803 = vmul.f32 %v2678, %v2798
      %v2804 = vmul.f32 %v2683, %v2798
      %v2805 = vmul.f32 %v2686, %v2798
      %v2806 = vmul.f32 %v2691, %v2798
      %v2807 = vmul.f32 %v2694, %v2798
      %v2808 = vmul.f32 %v2699, %v2798
      %v2809 = vmul.f32 %v2702, %v2798
      %v2810 = vmul.f32 %v2707, %v2798
      %v2811 = vmul.f32 %v2710, %v2798
      %v2812 = vmul.f32 %v2715, %v2798
      %v2813 = vmul.f32 %v2718, %v2798
      %v2814 = vmul.f32 %v2723, %v2798
      %v2815 = vmul.f32 %v2726, %v2798
      %v2816 = vmul.f32 %v2731, %v2798
      %v2817 = vmul.f32 %v2734, %v2798
      %v2818 = vmul.f32 %v2739, %v2798
      %v2819 = vmul.f32 %v2742, %v2798
      %v2820 = vmul.f32 %v2747, %v2798
      %v2821 = vmul.f32 %v2750, %v2798
      %v2822 = vmul.f32 %v2755, %v2798
      %v2823 = vmul.f32 %v2758, %v2798
      %v2824 = vmul.f32 %v2763, %v2798
      %v2825 = vmul.f32 %v2766, %v2798
      %v2826 = vmul.f32 %v2771, %v2798
      %v2827 = vmul.f32 %v2774, %v2798
      %v2828 = vmul.f32 %v2779, %v2798
      %v2829 = vmul.f32 %v2782, %v2798
      %v2830 = vmul.f32 %v2787, %v2798
      %v2831 = vmul.f32 %v2790, %v2798
      %v2832 = vld [vmem:[%s9] sm:$0x1]
      %v2834 = vlaneseq
      %v2835 = vshrl.u32 %v2834, 7
      %v2836 = vsub.s32 0, %v2835
      %v2837 = vrot.slane %v2832, %v2836
      %v2839 = vadd.f32 %v2800, %v2837
      %v2840 = vadd.f32 %v2801, %v2837
      %v2841 = vadd.f32 %v2802, %v2837
      %v2842 = vadd.f32 %v2803, %v2837
      %v2843 = vadd.f32 %v2804, %v2837
      %v2844 = vadd.f32 %v2805, %v2837
      %v2845 = vadd.f32 %v2806, %v2837
      %v2846 = vadd.f32 %v2807, %v2837
      %v2847 = vadd.f32 %v2808, %v2837
      %v2848 = vadd.f32 %v2809, %v2837
      %v2849 = vadd.f32 %v2810, %v2837
      %v2850 = vadd.f32 %v2811, %v2837
      %v2851 = vadd.f32 %v2812, %v2837
      %v2852 = vadd.f32 %v2813, %v2837
      %v2853 = vadd.f32 %v2814, %v2837
      %v2854 = vadd.f32 %v2815, %v2837
      %v2855 = vadd.f32 %v2816, %v2837
      %v2856 = vadd.f32 %v2817, %v2837
      %v2857 = vadd.f32 %v2818, %v2837
      %v2858 = vadd.f32 %v2819, %v2837
      %v2859 = vadd.f32 %v2820, %v2837
      %v2860 = vadd.f32 %v2821, %v2837
      %v2861 = vadd.f32 %v2822, %v2837
      %v2862 = vadd.f32 %v2823, %v2837
      %v2863 = vadd.f32 %v2824, %v2837
      %v2864 = vadd.f32 %v2825, %v2837
      %v2865 = vadd.f32 %v2826, %v2837
      %v2866 = vadd.f32 %v2827, %v2837
      %v2867 = vadd.f32 %v2828, %v2837
      %v2868 = vadd.f32 %v2829, %v2837
      %v2869 = vadd.f32 %v2830, %v2837
      %v2870 = vadd.f32 %v2831, %v2837
      %v2871 = vadd.f32 %v2839, %v361
      %v2872 = vadd.f32 %v2840, %v362
      %v2873 = vadd.f32 %v2841, %v363
      %v2874 = vadd.f32 %v2842, %v364
      %v2875 = vadd.f32 %v2843, %v365
      %v2876 = vadd.f32 %v2844, %v366
      %v2877 = vadd.f32 %v2845, %v367
      %v2878 = vadd.f32 %v2846, %v368
      %v2879 = vadd.f32 %v2847, %v369
      %v2880 = vadd.f32 %v2848, %v370
      %v2881 = vadd.f32 %v2849, %v371
      %v2882 = vadd.f32 %v2850, %v372
      %v2883 = vadd.f32 %v2851, %v373
      %v2884 = vadd.f32 %v2852, %v374
      %v2885 = vadd.f32 %v2853, %v375
      %v2886 = vadd.f32 %v2854, %v376
      %v2887 = vadd.f32 %v2855, %v377
      %v2888 = vadd.f32 %v2856, %v378
      %v2889 = vadd.f32 %v2857, %v379
      %v2890 = vadd.f32 %v2858, %v380
      %v2891 = vadd.f32 %v2859, %v381
      %v2892 = vadd.f32 %v2860, %v382
      %v2893 = vadd.f32 %v2861, %v383
      %v2894 = vadd.f32 %v2862, %v384
      %v2895 = vadd.f32 %v2863, %v385
      %v2896 = vadd.f32 %v2864, %v386
      %v2897 = vadd.f32 %v2865, %v387
      %v2898 = vadd.f32 %v2866, %v388
      %v2899 = vadd.f32 %v2867, %v389
      %v2900 = vadd.f32 %v2868, %v390
      %v2901 = vadd.f32 %v2869, %v391
      %v2902 = vadd.f32 %v2870, %v392
      %v2903 = vmax.f32 %v2871, 0.0
      %v2904 = vmax.f32 %v2872, 0.0
      %v2905 = vmax.f32 %v2873, 0.0
      %v2906 = vmax.f32 %v2874, 0.0
      %v2907 = vmax.f32 %v2875, 0.0
      %v2908 = vmax.f32 %v2876, 0.0
      %v2909 = vmax.f32 %v2877, 0.0
      %v2910 = vmax.f32 %v2878, 0.0
      %v2911 = vmax.f32 %v2879, 0.0
      %v2912 = vmax.f32 %v2880, 0.0
      %v2913 = vmax.f32 %v2881, 0.0
      %v2914 = vmax.f32 %v2882, 0.0
      %v2915 = vmax.f32 %v2883, 0.0
      %v2916 = vmax.f32 %v2884, 0.0
      %v2917 = vmax.f32 %v2885, 0.0
      %v2918 = vmax.f32 %v2886, 0.0
      %v2919 = vmax.f32 %v2887, 0.0
      %v2920 = vmax.f32 %v2888, 0.0
      %v2921 = vmax.f32 %v2889, 0.0
      %v2922 = vmax.f32 %v2890, 0.0
      %v2923 = vmax.f32 %v2891, 0.0
      %v2924 = vmax.f32 %v2892, 0.0
      %v2925 = vmax.f32 %v2893, 0.0
      %v2926 = vmax.f32 %v2894, 0.0
      %v2927 = vmax.f32 %v2895, 0.0
      %v2928 = vmax.f32 %v2896, 0.0
      %v2929 = vmax.f32 %v2897, 0.0
      %v2930 = vmax.f32 %v2898, 0.0
      %v2931 = vmax.f32 %v2899, 0.0
      %v2932 = vmax.f32 %v2900, 0.0
      %v2933 = vmax.f32 %v2901, 0.0
      %v2934 = vmax.f32 %v2902, 0.0
      %2935 = vst.msk [vmem:[%s359] sm:$0xff] %vm425, %v2903
      %2936 = vst.msk [vmem:[%s359 + $0x8] sm:$0xff] %vm425, %v2904
      %2937 = vst.msk [vmem:[%s359 + $0x10] sm:$0xff] %vm425, %v2905
      %2938 = vst.msk [vmem:[%s359 + $0x18] sm:$0xff] %vm425, %v2906
      %2939 = vst.msk [vmem:[%s359 + $0x20] sm:$0xff] %vm425, %v2907
      %2940 = vst.msk [vmem:[%s359 + $0x28] sm:$0xff] %vm425, %v2908
      %2941 = vst.msk [vmem:[%s359 + $0x30] sm:$0xff] %vm425, %v2909
      %2942 = vst.msk [vmem:[%s359 + $0x38] sm:$0xff] %vm425, %v2910
      %2943 = vst.msk [vmem:[%s359 + $0x40] sm:$0xff] %vm425, %v2911
      %2944 = vst.msk [vmem:[%s359 + $0x48] sm:$0xff] %vm425, %v2912
      %2945 = vst.msk [vmem:[%s359 + $0x50] sm:$0xff] %vm425, %v2913
      %2946 = vst.msk [vmem:[%s359 + $0x58] sm:$0xff] %vm425, %v2914
      %2947 = vst.msk [vmem:[%s359 + $0x60] sm:$0xff] %vm425, %v2915
      %2948 = vst.msk [vmem:[%s359 + $0x68] sm:$0xff] %vm425, %v2916
      %2949 = vst.msk [vmem:[%s359 + $0x70] sm:$0xff] %vm425, %v2917
      %2950 = vst.msk [vmem:[%s359 + $0x78] sm:$0xff] %vm425, %v2918
      %2951 = vst.msk [vmem:[%s359 + $0x80] sm:$0xff] %vm425, %v2919
      %2952 = vst.msk [vmem:[%s359 + $0x88] sm:$0xff] %vm425, %v2920
      %2953 = vst.msk [vmem:[%s359 + $0x90] sm:$0xff] %vm425, %v2921
      %2954 = vst.msk [vmem:[%s359 + $0x98] sm:$0xff] %vm425, %v2922
      %2955 = vst.msk [vmem:[%s359 + $0xa0] sm:$0xff] %vm425, %v2923
      %2956 = vst.msk [vmem:[%s359 + $0xa8] sm:$0xff] %vm425, %v2924
      %2957 = vst.msk [vmem:[%s359 + $0xb0] sm:$0xff] %vm425, %v2925
      %2958 = vst.msk [vmem:[%s359 + $0xb8] sm:$0xff] %vm425, %v2926
      %2959 = vst.msk [vmem:[%s359 + $0xc0] sm:$0xff] %vm425, %v2927
      %2960 = vst.msk [vmem:[%s359 + $0xc8] sm:$0xff] %vm425, %v2928
      %2961 = vst.msk [vmem:[%s359 + $0xd0] sm:$0xff] %vm425, %v2929
      %2962 = vst.msk [vmem:[%s359 + $0xd8] sm:$0xff] %vm425, %v2930
      %2963 = vst.msk [vmem:[%s359 + $0xe0] sm:$0xff] %vm425, %v2931
      %2964 = vst.msk [vmem:[%s359 + $0xe8] sm:$0xff] %vm425, %v2932
      %2965 = vst.msk [vmem:[%s359 + $0xf0] sm:$0xff] %vm425, %v2933
      %2966 = vst.msk [vmem:[%s359 + $0xf8] sm:$0xff] %vm425, %v2934
      %p2967 = scmp.lt.s32.totalorder %s21, 1
      %s2968 = scalar_select %p2967, %s21, 1
      %s2969 = smul.addr %s2968, 32
      %s2970 = smul.addr %s2969, 8
      %s2971 = scalar_lea.vmem %s10, %s2970
      // Predicated region
      $region61: #{tpu_custom_call.1} parent=59 // pred_check
        %p2972 = pneg %p254
      $region62: #{tpu_custom_call.1} parent=59 // pred_check_branch
        %2974 = sbr.rel (%p2972) target = $region64
      $region63: #{tpu_custom_call.1} parent=59 // pred_region
        _
      $region64: #{tpu_custom_call.1} parent=59 // pred_fallthru
        _
    $region60: #{tpu_custom_call.1} parent=5 // pred_fallthru
      _
    %p2975 = scmp.le.s32.totalorder 2, %s16
    // Predicated region
    $region65: #{tpu_custom_call.1} parent=5 // pred_check
      %p2976 = pneg %p2975
    $region66: #{tpu_custom_call.1} parent=5 // pred_check_branch
      %2978 = sbr.rel (%p2976) target = $region68
    $region67: #{tpu_custom_call.1} parent=5 // pred_region
      %s2979 = ssub.s32 %s16, 2
      // Predicated region
      $region69: #{tpu_custom_call.1} parent=67 // pred_check
        %p2980 = pneg %p260
      $region70: #{tpu_custom_call.1} parent=67 // pred_check_branch
        %2982 = sbr.rel (%p2980) target = $region72
      $region71: #{tpu_custom_call.1} parent=67 // pred_region
        %p2983 = scmp.lt.s32.totalorder %s22, 1
        %s2984 = scalar_select %p2983, %s22, 1
        %s2985 = smul.addr %s2984, 32
        %s2986 = smul.addr %s2985, 8
        %s2987 = scalar_lea.vmem %s10, %s2986
      $region72: #{tpu_custom_call.1} parent=67 // pred_fallthru
        _
    $region68: #{tpu_custom_call.1} parent=5 // pred_fallthru
      _
  $region6: #{tpu_custom_call.1} parent=0 // loop_footer
    %s20 = sadd.s32 1, %s16
  $region7: #{tpu_custom_call.1} parent=0 // loop_footer_branch
    %15 = sbr.rel target = $region3
  $region8: #{tpu_custom_call.1} parent=0 // loop_exit
    _

</llo_original>
